<compile_context>
chip_gen: v6e
topology: v6e:2x2x1
jax: 0.10.0
libtpu: 0.0.40
codegen_flags: <defaults>
</compile_context>

<pallas_src>
import math
import numpy as np
import jax
import jax.numpy as jnp
from jax import lax
from jax.experimental import pallas as pl
from jax.experimental.pallas import tpu as pltpu


# ---------------------------------------------------------------------------
# LowPassFilter buffer (same math as the PyTorch _build_filter)
# ---------------------------------------------------------------------------
def _i0(x):
    x = np.asarray(x, dtype=np.float64)
    out = np.ones_like(x)
    term = np.ones_like(x)
    for k in range(1, 60):
        term = term * (x / (2.0 * k)) ** 2
        out = out + term
    return out


def build_lowpass_filter(cutoff=0.5, kernel_size=6):
    half = kernel_size // 2
    L = 2 * half + 1
    t = np.arange(-half, half + 1, dtype=np.float32)
    beta = 12.0                                   # torch.kaiser_window default
    n = np.arange(L, dtype=np.float64)
    ratio = (n - L / 2.0) / (L / 2.0)             # periodic=True -> N = L
    window = (_i0(beta * np.sqrt(1.0 - ratio ** 2)) / _i0(beta)).astype(np.float32)
    sinc = (np.sin(np.float32(2.0 * math.pi * cutoff) * t)
            / (np.float32(math.pi) * t + np.float32(1e-8))).astype(np.float32)
    sinc[half] = np.float32(2.0 * cutoff)
    filt = window * sinc
    filt = filt / filt.sum()
    return filt.astype(np.float32)                # (7,)


def _banded_filter_matrix(n, filt64):
    """M such that (h @ M)[t, d] = sum_k filt[k] * h[t, d + k - P]  (zero padded)."""
    K = len(filt64)
    P = K // 2
    M = np.zeros((n, n), np.float64)
    idx = np.arange(n)
    for k in range(K):
        off = k - P
        src = idx + off
        valid = (src >= 0) & (src < n)
        M[src[valid], idx[valid]] = filt64[k]
    return M


# ---------------------------------------------------------------------------
# Pallas kernel
# ---------------------------------------------------------------------------
def make_kernel(T, D, H, HID, conv_on_features, filt_taps, eps=1e-5,
                compute_dtype=jnp.bfloat16):
    hd = D // H
    cdt = compute_dtype
    approx = (cdt == jnp.bfloat16)
    K = len(filt_taps)
    P = K // 2

    def normalize(v):
        # one-pass stats: the two cross-lane reductions are independent
        mu = jnp.mean(v, axis=-1, keepdims=True)
        m2 = jnp.mean(v * v, axis=-1, keepdims=True)
        return (v - mu) * lax.rsqrt(m2 - mu * mu + eps)

    def softmax_lastdim(s):
        s = s - jnp.max(s, axis=-1, keepdims=True)
        e = jnp.exp(s)
        d = jnp.sum(e, axis=-1, keepdims=True)
        if approx:
            return e * pl.reciprocal(d, approx=True)     # EUP slot
        return e / d                                      # exact on the f32 path

    def kernel(x_ref, ipw_ref, ipb_ref, opw_ref, opb_ref,
               l1w_ref, l1b_ref, alpha_ref, inv_alpha_ref,
               l2w_ref, l2b_ref, ln2w_ref, ln2b_ref, o_ref):
        x = x_ref[0].astype(jnp.float32)                  # (T, D)

        # ---- norm1 (affine + q-scale folded into in_proj) + attention ----
        h = normalize(x).astype(cdt)
        qkv = jnp.dot(h, ipw_ref[...],
                      preferred_element_type=jnp.float32) + ipb_ref[...]   # (T, 3D)

        # head-major (H, T, hd) stacks -> batched QK^T / PV on the MXU
        def stack_heads(base):
            return jnp.stack(
                [qkv[:, base + hh * hd: base + (hh + 1) * hd] for hh in range(H)],
                axis=0)
        qh = stack_heads(0).astype(cdt)        # scale already folded into W_q
        kh = stack_heads(D).astype(cdt)
        vh = stack_heads(2 * D).astype(cdt)

        s = jnp.einsum('htd,hsd->hts', qh, kh,
                       preferred_element_type=jnp.float32)     # (H, T, T)
        p = softmax_lastdim(s)
        ctx = jnp.einsum('hts,hsd->htd', p.astype(cdt), vh,
                         preferred_element_type=jnp.float32)   # (H, T, hd)

        # concat heads on the lane axis, then ONE full-D-contraction out-proj
        ctx2d = jnp.concatenate([ctx[hh] for hh in range(H)], axis=-1)      # (T, D)
        attn = jnp.dot(ctx2d.astype(cdt), opw_ref[...],
                       preferred_element_type=jnp.float32) + opb_ref[...]
        x1 = x + attn

        # ---- AMP feed-forward: Linear -> Snake -> Linear ------------------
        a = alpha_ref[...]                     # (1, HID)
        inv_a = inv_alpha_ref[...]             # exact 1/alpha (host-computed)
        h1 = jnp.dot(x1.astype(cdt), l1w_ref[...],
                     preferred_element_type=jnp.float32) + l1b_ref[...]
        sn = jnp.sin(a * h1)
        h1 = h1 + inv_a * sn * sn
        h2 = jnp.dot(h1.astype(cdt), l2w_ref[...],
                     preferred_element_type=jnp.float32) + l2b_ref[...]

        # ---- anti-aliasing low-pass ---------------------------------------
        if conv_on_features:
            # filter already folded into l2 weight/bias on the host
            hf = h2
        else:
            # 7-tap filter along the time (sublane) axis: XLU rolls + VPU MAC,
            # boundary handled with iota masks (zero-padded conv semantics).
            row = lax.broadcasted_iota(jnp.int32, (T, D), 0)
            hf = jnp.float32(filt_taps[P]) * h2
            for k in range(K):
                off = k - P
                if off == 0:
                    continue
                shifted = pltpu.roll(h2, shift=(-off) % T, axis=0)
                valid = (row + off >= 0) & (row + off < T)
                hf = hf + jnp.float32(filt_taps[k]) * jnp.where(valid, shifted, 0.0)

        x2 = x1 + hf
        out = normalize(x2) * ln2w_ref[...] + ln2b_ref[...]
        o_ref[0] = out.astype(o_ref.dtype)

    return kernel


# ---------------------------------------------------------------------------
# Wrapper
# ---------------------------------------------------------------------------
def periodic_transformer_layer(x, params, compute_dtype=jnp.bfloat16):
    B, T, D = x.shape
    H = int(params["num_heads"])
    assert D % H == 0
    hd = D // H
    HID = int(params["l1_w"].shape[0])
    conv_on_features = D > T                 # static LowPassFilter branch
    cdt = compute_dtype
    scale = 1.0 / math.sqrt(hd)

    filt32 = np.asarray(params["filter"], np.float32).reshape(-1)
    filt64 = filt32.astype(np.float64)

    # ---- host-side folds (float64 accumulation, cast once at the end) -----
    f64 = lambda name: np.asarray(params[name], np.float64)
    ln1w, ln1b = f64("ln1_w"), f64("ln1_b")
    ipw, ipb = f64("in_proj_w"), f64("in_proj_b")          # (3D, D), (3D,)
    ipw_t = ipw.T * ln1w[:, None]                          # fold LN1 gamma
    ipb_f = ipb + ln1b @ ipw.T                             # fold LN1 beta
    ipw_t[:, :D] *= scale                                  # fold 1/sqrt(hd) (Q)
    ipb_f = ipb_f.copy()
    ipb_f[:D] *= scale

    opw_t, opb = f64("out_proj_w").T, f64("out_proj_b")    # (D, D), (D,)
    l1w_t, l1b = f64("l1_w").T, f64("l1_b")                # (D, HID), (HID,)
    l2w_t, l2b = f64("l2_w").T, f64("l2_b")                # (HID, D), (D,)
    alpha64 = f64("alpha")
    inv_alpha = (1.0 / alpha64).astype(np.float32)

    if conv_on_features:
        # fold the feature-axis low-pass into the second FFN layer:
        #   filtered(h2) = h1 @ (W2 @ M) + b2 @ M     (mathematically exact)
        M = _banded_filter_matrix(D, filt64)
        l2w_t = l2w_t @ M
        l2b = l2b @ M

    to_cdt = lambda a: jnp.asarray(np.asarray(a, np.float32), dtype=cdt)
    row32 = lambda a: jnp.asarray(np.asarray(a, np.float32).reshape(1, -1))

    weights = (
        to_cdt(ipw_t), row32(ipb_f),
        to_cdt(opw_t), row32(opb),
        to_cdt(l1w_t), row32(l1b),
        row32(alpha64), row32(inv_alpha),
        to_cdt(l2w_t), row32(l2b),
        row32(params["ln2_w"]), row32(params["ln2_b"]),
    )
    operands = (x,) + weights                 # x stays in its native dtype

    kernel = make_kernel(T, D, H, HID, conv_on_features,
                         filt_taps=tuple(float(v) for v in filt32),
                         compute_dtype=cdt)

    # ---- generation-aware VMEM budget --------------------------------------
    try:
        vmem_cap = int(pltpu.get_tpu_info().vmem_capacity_bytes)
    except Exception:
        vmem_cap = 64 * 2 ** 20
    vmem_cap = (vmem_cap * 3) // 4            # ~48 MiB v7x, ~96 MiB v5e/v6e

    wbytes = sum(int(np.prod(a.shape)) * a.dtype.itemsize for a in weights)
    act_item = jnp.dtype(x.dtype).itemsize
    actbytes = 2 * 2 * T * D * act_item       # x + out, double-buffered
    interm = 4 * T * (3 * D + 3 * H * T + H * hd + 2 * HID + 8 * D)
    vmem_limit = int(min(vmem_cap,
                         max(16 * 2 ** 20,
                             2 * wbytes + actbytes + interm + (4 << 20))))

    def build(single_buffer_weights):
        def const_spec(shape):
            nd = len(shape)
            imap = lambda b, _nd=nd: (0,) * _nd
            if single_buffer_weights:
                # resident weights: single buffer (no pointless double-buffering)
                return pl.BlockSpec(shape, imap, pipeline_mode=pl.Buffered(1))
            return pl.BlockSpec(shape, imap)

        in_specs = [pl.BlockSpec((1, T, D), lambda b: (b, 0, 0))]
        in_specs += [const_spec(tuple(a.shape)) for a in weights]

        return pl.pallas_call(
            kernel,
            out_shape=jax.ShapeDtypeStruct((B, T, D), x.dtype),
            grid_spec=pltpu.PrefetchScalarGridSpec(
                num_scalar_prefetch=0,
                grid=(B,),
                in_specs=in_specs,
                out_specs=pl.BlockSpec((1, T, D), lambda b: (b, 0, 0)),
            ),
            compiler_params=pltpu.CompilerParams(
                dimension_semantics=("parallel",),
                vmem_limit_bytes=vmem_limit,
            ),
        )

    # Prefer single-buffered resident weights; fall back to default buffering
    # if this jax version rejects pipeline_mode / Buffered(1).
    last_err = None
    for single_buf in (True, False):
        try:
            out = build(single_buf)(*operands)
            jax.block_until_ready(out)
            return out
        except Exception as e:                # pragma: no cover - portability path
            last_err = e
            if not single_buf:
                raise
    raise last_err


# ---------------------------------------------------------------------------
# Pure-JAX reference (same math as the PyTorch module)
# ---------------------------------------------------------------------------
def reference(x, params):
    filt = jnp.asarray(params["filter"])
    eps = 1e-5

    def layernorm(v, w, b):
        mu = jnp.mean(v, -1, keepdims=True)
        var = jnp.mean((v - mu) ** 2, -1, keepdims=True)
        return (v - mu) / jnp.sqrt(var + eps) * w + b

    B, T, D = x.shape
    H = params["num_heads"]
    hd = D // H
    h = layernorm(x, params["ln1_w"], params["ln1_b"])
    qkv = h @ params["in_proj_w"].T + params["in_proj_b"]
    q, k, v = jnp.split(qkv, 3, axis=-1)
    toheads = lambda t: t.reshape(B, T, H, hd).transpose(0, 2, 1, 3)
    qh, kh, vh = toheads(q), toheads(k), toheads(v)
    s = jnp.einsum("bhtd,bhsd->bhts", qh / math.sqrt(hd), kh)
    p = jax.nn.softmax(s, axis=-1)
    attn = jnp.einsum("bhts,bhsd->bhtd", p, vh).transpose(0, 2, 1, 3).reshape(B, T, D)
    attn = attn @ params["out_proj_w"].T + params["out_proj_b"]
    x1 = x + attn

    h1 = x1 @ params["l1_w"].T + params["l1_b"]
    a = params["alpha"]
    h1 = h1 + (1.0 / a) * jnp.sin(a * h1) ** 2
    h2 = h1 @ params["l2_w"].T + params["l2_b"]

    K = filt.shape[0]
    P = K // 2
    if D > T:
        hp = jnp.pad(h2, ((0, 0), (0, 0), (P, P)))
        hf = sum(filt[kk] * hp[:, :, kk:kk + D] for kk in range(K))
    else:
        hp = jnp.pad(h2, ((0, 0), (P, P), (0, 0)))
        hf = sum(filt[kk] * hp[:, kk:kk + T, :] for kk in range(K))
    x2 = x1 + hf
    return layernorm(x2, params["ln2_w"], params["ln2_b"])


# ---------------------------------------------------------------------------
if __name__ == "__main__":
    def make_params(key, D, H, HID):
        ks = jax.random.split(key, 9)

        def lin(k, out_f, in_f):
            bound = 1.0 / math.sqrt(in_f)
            kw, kb = jax.random.split(k)
            w = jax.random.uniform(kw, (out_f, in_f), jnp.float32, -bound, bound)
            b = jax.random.uniform(kb, (out_f,), jnp.float32, -bound, bound)
            return w, b

        in_proj_w, in_proj_b = lin(ks[0], 3 * D, D)
        out_proj_w, out_proj_b = lin(ks[1], D, D)
        l1_w, l1_b = lin(ks[2], HID, D)
        l2_w, l2_b = lin(ks[3], D, HID)
        # non-trivial LN affines / alpha so the host-side folds are exercised
        ln1_w = 1.0 + 0.1 * jax.random.normal(ks[4], (D,), jnp.float32)
        ln1_b = 0.1 * jax.random.normal(ks[5], (D,), jnp.float32)
        ln2_w = 1.0 + 0.1 * jax.random.normal(ks[6], (D,), jnp.float32)
        ln2_b = 0.1 * jax.random.normal(ks[7], (D,), jnp.float32)
        alpha = 1.0 + 0.25 * jax.random.uniform(ks[8], (HID,), jnp.float32)
        return dict(
            num_heads=H,
            ln1_w=ln1_w, ln1_b=ln1_b,
            in_proj_w=in_proj_w, in_proj_b=in_proj_b,
            out_proj_w=out_proj_w, out_proj_b=out_proj_b,
            l1_w=l1_w, l1_b=l1_b, alpha=alpha, l2_w=l2_w, l2_b=l2_b,
            ln2_w=ln2_w, ln2_b=ln2_b,
            filter=jnp.asarray(build_lowpass_filter(cutoff=0.5, kernel_size=6)),
        )

    key = jax.random.PRNGKey(0)
    k_a, k_b, kx_a, kx_b = jax.random.split(key, 4)

    # Config A: D > T  -> feature-axis low-pass (folded into FFN weights)
    B, T, D, H = 2, 8, 32, 4
    params_a = make_params(k_a, D, H, 4 * D)
    x_a = jax.random.normal(kx_a, (B, T, D), jnp.float32)
    ref_a = jax.block_until_ready(reference(x_a, params_a))

    out_bf16 = jax.block_until_ready(periodic_transformer_layer(x_a, params_a))
    np.testing.assert_allclose(np.asarray(out_bf16), np.asarray(ref_a),
                               rtol=3e-2, atol=3e-2)

    out_f32 = jax.block_until_ready(
        periodic_transformer_layer(x_a, params_a, compute_dtype=jnp.float32))
    np.testing.assert_allclose(np.asarray(out_f32), np.asarray(ref_a),
                               rtol=2e-3, atol=2e-3)

    # Config B: T >= D -> time-axis low-pass via pltpu.roll (XLU) path
    B2, T2, D2, H2 = 2, 32, 16, 4
    params_b = make_params(k_b, D2, H2, 4 * D2)
    x_b = jax.random.normal(kx_b, (B2, T2, D2), jnp.float32)
    ref_b = jax.block_until_ready(reference(x_b, params_b))
    out_b = jax.block_until_ready(
        periodic_transformer_layer(x_b, params_b, compute_dtype=jnp.float32))
    np.testing.assert_allclose(np.asarray(out_b), np.asarray(ref_b),
                               rtol=2e-3, atol=2e-3)

    print("KERNEL_OK")
</pallas_src>

<mosaic_0001>
module attributes {stable_mosaic.version = 11 : i64} {
  func.func @kernel(%arg0: i32, %arg1: memref<1x8x32xf32, #tpu.memory_space<vmem>>, %arg2: memref<32x96xbf16, #tpu.memory_space<vmem>>, %arg3: memref<1x96xf32, #tpu.memory_space<vmem>>, %arg4: memref<32x32xbf16, #tpu.memory_space<vmem>>, %arg5: memref<1x32xf32, #tpu.memory_space<vmem>>, %arg6: memref<32x128xbf16, #tpu.memory_space<vmem>>, %arg7: memref<1x128xf32, #tpu.memory_space<vmem>>, %arg8: memref<1x128xf32, #tpu.memory_space<vmem>>, %arg9: memref<1x128xf32, #tpu.memory_space<vmem>>, %arg10: memref<128x32xbf16, #tpu.memory_space<vmem>>, %arg11: memref<1x32xf32, #tpu.memory_space<vmem>>, %arg12: memref<1x32xf32, #tpu.memory_space<vmem>>, %arg13: memref<1x32xf32, #tpu.memory_space<vmem>>, %arg14: memref<1x8x32xf32, #tpu.memory_space<vmem>>) attributes {dimension_semantics = [#tpu.dimension_semantics<parallel>], iteration_bounds = array<i64: 2>, scalar_prefetch = 0 : i64, scratch_operands = 0 : i64, tpu.core_type = #tpu.core_type<tc>, window_params = [{transform_indices = @transform_0, window_bounds = array<i64: 1, 8, 32>}, {pipeline_mode = #tpu.pipeline_mode<synchronous>, transform_indices = @transform_1, window_bounds = array<i64: 32, 96>}, {pipeline_mode = #tpu.pipeline_mode<synchronous>, transform_indices = @transform_2, window_bounds = array<i64: 1, 96>}, {pipeline_mode = #tpu.pipeline_mode<synchronous>, transform_indices = @transform_3, window_bounds = array<i64: 32, 32>}, {pipeline_mode = #tpu.pipeline_mode<synchronous>, transform_indices = @transform_4, window_bounds = array<i64: 1, 32>}, {pipeline_mode = #tpu.pipeline_mode<synchronous>, transform_indices = @transform_5, window_bounds = array<i64: 32, 128>}, {pipeline_mode = #tpu.pipeline_mode<synchronous>, transform_indices = @transform_6, window_bounds = array<i64: 1, 128>}, {pipeline_mode = #tpu.pipeline_mode<synchronous>, transform_indices = @transform_7, window_bounds = array<i64: 1, 128>}, {pipeline_mode = #tpu.pipeline_mode<synchronous>, transform_indices = @transform_8, window_bounds = array<i64: 1, 128>}, {pipeline_mode = #tpu.pipeline_mode<synchronous>, transform_indices = @transform_9, window_bounds = array<i64: 128, 32>}, {pipeline_mode = #tpu.pipeline_mode<synchronous>, transform_indices = @transform_10, window_bounds = array<i64: 1, 32>}, {pipeline_mode = #tpu.pipeline_mode<synchronous>, transform_indices = @transform_11, window_bounds = array<i64: 1, 32>}, {pipeline_mode = #tpu.pipeline_mode<synchronous>, transform_indices = @transform_12, window_bounds = array<i64: 1, 32>}, {transform_indices = @transform_13, window_bounds = array<i64: 1, 8, 32>}]} {
    %c0 = arith.constant 0 : index
    %c0_0 = arith.constant 0 : index
    %c0_1 = arith.constant 0 : index
    %0 = vector.load %arg1[%c0, %c0_0, %c0_1] : memref<1x8x32xf32, #tpu.memory_space<vmem>>, vector<1x8x32xf32>
    %1 = vector.shape_cast %0 : vector<1x8x32xf32> to vector<8x32xf32>
    %cst = arith.constant dense<0.000000e+00> : vector<8xf32>
    %2 = vector.multi_reduction <add>, %1, %cst [1] : vector<8x32xf32> to vector<8xf32>
    %3 = vector.shape_cast %2 : vector<8xf32> to vector<8x1xf32>
    %cst_2 = arith.constant 3.200000e+01 : f32
    %4 = vector.broadcast %cst_2 : f32 to vector<8x1xf32>
    %5 = arith.divf %3, %4 : vector<8x1xf32>
    %6 = arith.mulf %1, %1 : vector<8x32xf32>
    %cst_3 = arith.constant dense<0.000000e+00> : vector<8xf32>
    %7 = vector.multi_reduction <add>, %6, %cst_3 [1] : vector<8x32xf32> to vector<8xf32>
    %8 = vector.shape_cast %7 : vector<8xf32> to vector<8x1xf32>
    %cst_4 = arith.constant 3.200000e+01 : f32
    %9 = vector.broadcast %cst_4 : f32 to vector<8x1xf32>
    %10 = arith.divf %8, %9 : vector<8x1xf32>
    %11 = vector.broadcast %5 : vector<8x1xf32> to vector<8x32xf32>
    %12 = arith.subf %1, %11 : vector<8x32xf32>
    %13 = arith.mulf %5, %5 : vector<8x1xf32>
    %14 = arith.subf %10, %13 : vector<8x1xf32>
    %cst_5 = arith.constant 9.99999974E-6 : f32
    %15 = vector.broadcast %cst_5 : f32 to vector<8x1xf32>
    %16 = arith.addf %14, %15 : vector<8x1xf32>
    %17 = math.rsqrt %16 : vector<8x1xf32>
    %18 = vector.broadcast %17 : vector<8x1xf32> to vector<8x32xf32>
    %19 = arith.mulf %12, %18 : vector<8x32xf32>
    %20 = arith.truncf %19 : vector<8x32xf32> to vector<8x32xbf16>
    %c0_6 = arith.constant 0 : index
    %c0_7 = arith.constant 0 : index
    %21 = vector.load %arg2[%c0_6, %c0_7] : memref<32x96xbf16, #tpu.memory_space<vmem>>, vector<32x96xbf16>
    %cst_8 = arith.constant dense<0.000000e+00> : vector<8x96xf32>
    %22 = tpu.matmul %20, %21, %cst_8 {dimension_numbers = #tpu.dot_dimension_numbers<[1], [0], [0], [1], [0, 0, 1, 1], [], []>} : vector<8x32xbf16>, vector<32x96xbf16>, vector<8x96xf32> -> vector<8x96xf32>
    %c0_9 = arith.constant 0 : index
    %c0_10 = arith.constant 0 : index
    %23 = vector.load %arg3[%c0_9, %c0_10] : memref<1x96xf32, #tpu.memory_space<vmem>>, vector<1x96xf32>
    %24 = vector.broadcast %23 : vector<1x96xf32> to vector<8x96xf32>
    %25 = arith.addf %22, %24 : vector<8x96xf32>
    %26 = vector.extract_strided_slice %25 {offsets = [0, 0], sizes = [8, 8], strides = [1, 1]} : vector<8x96xf32> to vector<8x8xf32>
    %27 = vector.extract_strided_slice %25 {offsets = [0, 8], sizes = [8, 8], strides = [1, 1]} : vector<8x96xf32> to vector<8x8xf32>
    %28 = vector.extract_strided_slice %25 {offsets = [0, 16], sizes = [8, 8], strides = [1, 1]} : vector<8x96xf32> to vector<8x8xf32>
    %29 = vector.extract_strided_slice %25 {offsets = [0, 24], sizes = [8, 8], strides = [1, 1]} : vector<8x96xf32> to vector<8x8xf32>
    %30 = vector.shape_cast %26 : vector<8x8xf32> to vector<1x8x8xf32>
    %31 = vector.shape_cast %27 : vector<8x8xf32> to vector<1x8x8xf32>
    %32 = vector.shape_cast %28 : vector<8x8xf32> to vector<1x8x8xf32>
    %33 = vector.shape_cast %29 : vector<8x8xf32> to vector<1x8x8xf32>
    %34 = tpu.concatenate %30, %31, %32, %33 in 0 : vector<1x8x8xf32>, vector<1x8x8xf32>, vector<1x8x8xf32>, vector<1x8x8xf32> -> vector<4x8x8xf32>
    %35 = arith.truncf %34 : vector<4x8x8xf32> to vector<4x8x8xbf16>
    %36 = vector.extract_strided_slice %25 {offsets = [0, 32], sizes = [8, 8], strides = [1, 1]} : vector<8x96xf32> to vector<8x8xf32>
    %37 = vector.extract_strided_slice %25 {offsets = [0, 40], sizes = [8, 8], strides = [1, 1]} : vector<8x96xf32> to vector<8x8xf32>
    %38 = vector.extract_strided_slice %25 {offsets = [0, 48], sizes = [8, 8], strides = [1, 1]} : vector<8x96xf32> to vector<8x8xf32>
    %39 = vector.extract_strided_slice %25 {offsets = [0, 56], sizes = [8, 8], strides = [1, 1]} : vector<8x96xf32> to vector<8x8xf32>
    %40 = vector.shape_cast %36 : vector<8x8xf32> to vector<1x8x8xf32>
    %41 = vector.shape_cast %37 : vector<8x8xf32> to vector<1x8x8xf32>
    %42 = vector.shape_cast %38 : vector<8x8xf32> to vector<1x8x8xf32>
    %43 = vector.shape_cast %39 : vector<8x8xf32> to vector<1x8x8xf32>
    %44 = tpu.concatenate %40, %41, %42, %43 in 0 : vector<1x8x8xf32>, vector<1x8x8xf32>, vector<1x8x8xf32>, vector<1x8x8xf32> -> vector<4x8x8xf32>
    %45 = arith.truncf %44 : vector<4x8x8xf32> to vector<4x8x8xbf16>
    %46 = vector.extract_strided_slice %25 {offsets = [0, 64], sizes = [8, 8], strides = [1, 1]} : vector<8x96xf32> to vector<8x8xf32>
    %47 = vector.extract_strided_slice %25 {offsets = [0, 72], sizes = [8, 8], strides = [1, 1]} : vector<8x96xf32> to vector<8x8xf32>
    %48 = vector.extract_strided_slice %25 {offsets = [0, 80], sizes = [8, 8], strides = [1, 1]} : vector<8x96xf32> to vector<8x8xf32>
    %49 = vector.extract_strided_slice %25 {offsets = [0, 88], sizes = [8, 8], strides = [1, 1]} : vector<8x96xf32> to vector<8x8xf32>
    %50 = vector.shape_cast %46 : vector<8x8xf32> to vector<1x8x8xf32>
    %51 = vector.shape_cast %47 : vector<8x8xf32> to vector<1x8x8xf32>
    %52 = vector.shape_cast %48 : vector<8x8xf32> to vector<1x8x8xf32>
    %53 = vector.shape_cast %49 : vector<8x8xf32> to vector<1x8x8xf32>
    %54 = tpu.concatenate %50, %51, %52, %53 in 0 : vector<1x8x8xf32>, vector<1x8x8xf32>, vector<1x8x8xf32>, vector<1x8x8xf32> -> vector<4x8x8xf32>
    %55 = arith.truncf %54 : vector<4x8x8xf32> to vector<4x8x8xbf16>
    "tpu.trace_start"() <{level = 10 : i32, message = "htd,hsd->hts"}> : () -> ()
    %cst_11 = arith.constant dense<0.000000e+00> : vector<4x8x8xf32>
    %56 = tpu.matmul %35, %45, %cst_11 {dimension_numbers = #tpu.dot_dimension_numbers<[2], [2], [1], [1], [0, 0, 0, 1, 1, 1], [0], [0]>} : vector<4x8x8xbf16>, vector<4x8x8xbf16>, vector<4x8x8xf32> -> vector<4x8x8xf32>
    "tpu.trace_stop"() : () -> ()
    %cst_12 = arith.constant dense<0xFF800000> : vector<4x8xf32>
    %57 = vector.multi_reduction <maximumf>, %56, %cst_12 [2] : vector<4x8x8xf32> to vector<4x8xf32>
    %58 = vector.shape_cast %57 : vector<4x8xf32> to vector<4x8x1xf32>
    %59 = vector.broadcast %58 : vector<4x8x1xf32> to vector<4x8x8xf32>
    %60 = arith.subf %56, %59 : vector<4x8x8xf32>
    %61 = math.exp %60 : vector<4x8x8xf32>
    %cst_13 = arith.constant dense<0.000000e+00> : vector<4x8xf32>
    %62 = vector.multi_reduction <add>, %61, %cst_13 [2] : vector<4x8x8xf32> to vector<4x8xf32>
    %63 = vector.shape_cast %62 : vector<4x8xf32> to vector<4x8x1xf32>
    %64 = tpu.reciprocal %63 {approx = true} : vector<4x8x1xf32> -> vector<4x8x1xf32>
    %65 = vector.broadcast %64 : vector<4x8x1xf32> to vector<4x8x8xf32>
    %66 = arith.mulf %61, %65 : vector<4x8x8xf32>
    %67 = arith.truncf %66 : vector<4x8x8xf32> to vector<4x8x8xbf16>
    "tpu.trace_start"() <{level = 10 : i32, message = "hts,hsd->htd"}> : () -> ()
    %cst_14 = arith.constant dense<0.000000e+00> : vector<4x8x8xf32>
    %68 = tpu.matmul %67, %55, %cst_14 {dimension_numbers = #tpu.dot_dimension_numbers<[2], [1], [1], [2], [0, 0, 0, 1, 1, 2], [0], [0]>} : vector<4x8x8xbf16>, vector<4x8x8xbf16>, vector<4x8x8xf32> -> vector<4x8x8xf32>
    "tpu.trace_stop"() : () -> ()
    %69 = vector.extract_strided_slice %68 {offsets = [0, 0, 0], sizes = [1, 8, 8], strides = [1, 1, 1]} : vector<4x8x8xf32> to vector<1x8x8xf32>
    %70 = vector.shape_cast %69 : vector<1x8x8xf32> to vector<8x8xf32>
    %71 = vector.extract_strided_slice %68 {offsets = [1, 0, 0], sizes = [1, 8, 8], strides = [1, 1, 1]} : vector<4x8x8xf32> to vector<1x8x8xf32>
    %72 = vector.shape_cast %71 : vector<1x8x8xf32> to vector<8x8xf32>
    %73 = vector.extract_strided_slice %68 {offsets = [2, 0, 0], sizes = [1, 8, 8], strides = [1, 1, 1]} : vector<4x8x8xf32> to vector<1x8x8xf32>
    %74 = vector.shape_cast %73 : vector<1x8x8xf32> to vector<8x8xf32>
    %75 = vector.extract_strided_slice %68 {offsets = [3, 0, 0], sizes = [1, 8, 8], strides = [1, 1, 1]} : vector<4x8x8xf32> to vector<1x8x8xf32>
    %76 = vector.shape_cast %75 : vector<1x8x8xf32> to vector<8x8xf32>
    %77 = tpu.concatenate %70, %72, %74, %76 in 1 : vector<8x8xf32>, vector<8x8xf32>, vector<8x8xf32>, vector<8x8xf32> -> vector<8x32xf32>
    %78 = arith.truncf %77 : vector<8x32xf32> to vector<8x32xbf16>
    %c0_15 = arith.constant 0 : index
    %c0_16 = arith.constant 0 : index
    %79 = vector.load %arg4[%c0_15, %c0_16] : memref<32x32xbf16, #tpu.memory_space<vmem>>, vector<32x32xbf16>
    %cst_17 = arith.constant dense<0.000000e+00> : vector<8x32xf32>
    %80 = tpu.matmul %78, %79, %cst_17 {dimension_numbers = #tpu.dot_dimension_numbers<[1], [0], [0], [1], [0, 0, 1, 1], [], []>} : vector<8x32xbf16>, vector<32x32xbf16>, vector<8x32xf32> -> vector<8x32xf32>
    %c0_18 = arith.constant 0 : index
    %c0_19 = arith.constant 0 : index
    %81 = vector.load %arg5[%c0_18, %c0_19] : memref<1x32xf32, #tpu.memory_space<vmem>>, vector<1x32xf32>
    %82 = vector.broadcast %81 : vector<1x32xf32> to vector<8x32xf32>
    %83 = arith.addf %80, %82 : vector<8x32xf32>
    %84 = arith.addf %1, %83 : vector<8x32xf32>
    %c0_20 = arith.constant 0 : index
    %c0_21 = arith.constant 0 : index
    %85 = vector.load %arg8[%c0_20, %c0_21] : memref<1x128xf32, #tpu.memory_space<vmem>>, vector<1x128xf32>
    %c0_22 = arith.constant 0 : index
    %c0_23 = arith.constant 0 : index
    %86 = vector.load %arg9[%c0_22, %c0_23] : memref<1x128xf32, #tpu.memory_space<vmem>>, vector<1x128xf32>
    %87 = arith.truncf %84 : vector<8x32xf32> to vector<8x32xbf16>
    %c0_24 = arith.constant 0 : index
    %c0_25 = arith.constant 0 : index
    %88 = vector.load %arg6[%c0_24, %c0_25] : memref<32x128xbf16, #tpu.memory_space<vmem>>, vector<32x128xbf16>
    %cst_26 = arith.constant dense<0.000000e+00> : vector<8x128xf32>
    %89 = tpu.matmul %87, %88, %cst_26 {dimension_numbers = #tpu.dot_dimension_numbers<[1], [0], [0], [1], [0, 0, 1, 1], [], []>} : vector<8x32xbf16>, vector<32x128xbf16>, vector<8x128xf32> -> vector<8x128xf32>
    %c0_27 = arith.constant 0 : index
    %c0_28 = arith.constant 0 : index
    %90 = vector.load %arg7[%c0_27, %c0_28] : memref<1x128xf32, #tpu.memory_space<vmem>>, vector<1x128xf32>
    %91 = vector.broadcast %90 : vector<1x128xf32> to vector<8x128xf32>
    %92 = arith.addf %89, %91 : vector<8x128xf32>
    %93 = vector.broadcast %85 : vector<1x128xf32> to vector<8x128xf32>
    %94 = arith.mulf %93, %92 : vector<8x128xf32>
    %95 = math.sin %94 : vector<8x128xf32>
    %96 = vector.broadcast %86 : vector<1x128xf32> to vector<8x128xf32>
    %97 = arith.mulf %96, %95 : vector<8x128xf32>
    %98 = arith.mulf %97, %95 : vector<8x128xf32>
    %99 = arith.addf %92, %98 : vector<8x128xf32>
    %100 = arith.truncf %99 : vector<8x128xf32> to vector<8x128xbf16>
    %c0_29 = arith.constant 0 : index
    %c0_30 = arith.constant 0 : index
    %101 = vector.load %arg10[%c0_29, %c0_30] : memref<128x32xbf16, #tpu.memory_space<vmem>>, vector<128x32xbf16>
    %cst_31 = arith.constant dense<0.000000e+00> : vector<8x32xf32>
    %102 = tpu.matmul %100, %101, %cst_31 {dimension_numbers = #tpu.dot_dimension_numbers<[1], [0], [0], [1], [0, 0, 1, 1], [], []>} : vector<8x128xbf16>, vector<128x32xbf16>, vector<8x32xf32> -> vector<8x32xf32>
    %c0_32 = arith.constant 0 : index
    %c0_33 = arith.constant 0 : index
    %103 = vector.load %arg11[%c0_32, %c0_33] : memref<1x32xf32, #tpu.memory_space<vmem>>, vector<1x32xf32>
    %104 = vector.broadcast %103 : vector<1x32xf32> to vector<8x32xf32>
    %105 = arith.addf %102, %104 : vector<8x32xf32>
    %106 = arith.addf %84, %105 : vector<8x32xf32>
    %cst_34 = arith.constant dense<0.000000e+00> : vector<8xf32>
    %107 = vector.multi_reduction <add>, %106, %cst_34 [1] : vector<8x32xf32> to vector<8xf32>
    %108 = vector.shape_cast %107 : vector<8xf32> to vector<8x1xf32>
    %cst_35 = arith.constant 3.200000e+01 : f32
    %109 = vector.broadcast %cst_35 : f32 to vector<8x1xf32>
    %110 = arith.divf %108, %109 : vector<8x1xf32>
    %111 = arith.mulf %106, %106 : vector<8x32xf32>
    %cst_36 = arith.constant dense<0.000000e+00> : vector<8xf32>
    %112 = vector.multi_reduction <add>, %111, %cst_36 [1] : vector<8x32xf32> to vector<8xf32>
    %113 = vector.shape_cast %112 : vector<8xf32> to vector<8x1xf32>
    %cst_37 = arith.constant 3.200000e+01 : f32
    %114 = vector.broadcast %cst_37 : f32 to vector<8x1xf32>
    %115 = arith.divf %113, %114 : vector<8x1xf32>
    %116 = vector.broadcast %110 : vector<8x1xf32> to vector<8x32xf32>
    %117 = arith.subf %106, %116 : vector<8x32xf32>
    %118 = arith.mulf %110, %110 : vector<8x1xf32>
    %119 = arith.subf %115, %118 : vector<8x1xf32>
    %cst_38 = arith.constant 9.99999974E-6 : f32
    %120 = vector.broadcast %cst_38 : f32 to vector<8x1xf32>
    %121 = arith.addf %119, %120 : vector<8x1xf32>
    %122 = math.rsqrt %121 : vector<8x1xf32>
    %123 = vector.broadcast %122 : vector<8x1xf32> to vector<8x32xf32>
    %124 = arith.mulf %117, %123 : vector<8x32xf32>
    %c0_39 = arith.constant 0 : index
    %c0_40 = arith.constant 0 : index
    %125 = vector.load %arg12[%c0_39, %c0_40] : memref<1x32xf32, #tpu.memory_space<vmem>>, vector<1x32xf32>
    %126 = vector.broadcast %125 : vector<1x32xf32> to vector<8x32xf32>
    %127 = arith.mulf %124, %126 : vector<8x32xf32>
    %c0_41 = arith.constant 0 : index
    %c0_42 = arith.constant 0 : index
    %128 = vector.load %arg13[%c0_41, %c0_42] : memref<1x32xf32, #tpu.memory_space<vmem>>, vector<1x32xf32>
    %129 = vector.broadcast %128 : vector<1x32xf32> to vector<8x32xf32>
    %130 = arith.addf %127, %129 : vector<8x32xf32>
    %c0_43 = arith.constant 0 : index
    %c0_44 = arith.constant 0 : index
    %c0_45 = arith.constant 0 : index
    %131 = vector.load %arg14[%c0_43, %c0_44, %c0_45] : memref<1x8x32xf32, #tpu.memory_space<vmem>>, vector<1x8x32xf32>
    %132 = vector.shape_cast %131 : vector<1x8x32xf32> to vector<8x32xf32>
    %133 = vector.shape_cast %130 : vector<8x32xf32> to vector<1x8x32xf32>
    tpu.vector_store %arg14[%c0_43, %c0_44, %c0_45], %133 {strides = array<i32>} : memref<1x8x32xf32, #tpu.memory_space<vmem>>, vector<1x8x32xf32>,
    return
  }
  func.func @transform_0(%arg0: i32) -> (i32, i32, i32) {
    %c0_i32 = arith.constant 0 : i32
    %c0_i32_0 = arith.constant 0 : i32
    %c0_i32_1 = arith.constant 0 : i32
    return %arg0, %c0_i32, %c0_i32_0 : i32, i32, i32
  }
  func.func @transform_1(%arg0: i32) -> (i32, i32) {
    %c0_i32 = arith.constant 0 : i32
    %c0_i32_0 = arith.constant 0 : i32
    %c0_i32_1 = arith.constant 0 : i32
    return %c0_i32, %c0_i32_0 : i32, i32
  }
  func.func @transform_2(%arg0: i32) -> (i32, i32) {
    %c0_i32 = arith.constant 0 : i32
    %c0_i32_0 = arith.constant 0 : i32
    %c0_i32_1 = arith.constant 0 : i32
    return %c0_i32, %c0_i32_0 : i32, i32
  }
  func.func @transform_3(%arg0: i32) -> (i32, i32) {
    %c0_i32 = arith.constant 0 : i32
    %c0_i32_0 = arith.constant 0 : i32
    %c0_i32_1 = arith.constant 0 : i32
    return %c0_i32, %c0_i32_0 : i32, i32
  }
  func.func @transform_4(%arg0: i32) -> (i32, i32) {
    %c0_i32 = arith.constant 0 : i32
    %c0_i32_0 = arith.constant 0 : i32
    %c0_i32_1 = arith.constant 0 : i32
    return %c0_i32, %c0_i32_0 : i32, i32
  }
  func.func @transform_5(%arg0: i32) -> (i32, i32) {
    %c0_i32 = arith.constant 0 : i32
    %c0_i32_0 = arith.constant 0 : i32
    %c0_i32_1 = arith.constant 0 : i32
    return %c0_i32, %c0_i32_0 : i32, i32
  }
  func.func @transform_6(%arg0: i32) -> (i32, i32) {
    %c0_i32 = arith.constant 0 : i32
    %c0_i32_0 = arith.constant 0 : i32
    %c0_i32_1 = arith.constant 0 : i32
    return %c0_i32, %c0_i32_0 : i32, i32
  }
  func.func @transform_7(%arg0: i32) -> (i32, i32) {
    %c0_i32 = arith.constant 0 : i32
    %c0_i32_0 = arith.constant 0 : i32
    %c0_i32_1 = arith.constant 0 : i32
    return %c0_i32, %c0_i32_0 : i32, i32
  }
  func.func @transform_8(%arg0: i32) -> (i32, i32) {
    %c0_i32 = arith.constant 0 : i32
    %c0_i32_0 = arith.constant 0 : i32
    %c0_i32_1 = arith.constant 0 : i32
    return %c0_i32, %c0_i32_0 : i32, i32
  }
  func.func @transform_9(%arg0: i32) -> (i32, i32) {
    %c0_i32 = arith.constant 0 : i32
    %c0_i32_0 = arith.constant 0 : i32
    %c0_i32_1 = arith.constant 0 : i32
    return %c0_i32, %c0_i32_0 : i32, i32
  }
  func.func @transform_10(%arg0: i32) -> (i32, i32) {
    %c0_i32 = arith.constant 0 : i32
    %c0_i32_0 = arith.constant 0 : i32
    %c0_i32_1 = arith.constant 0 : i32
    return %c0_i32, %c0_i32_0 : i32, i32
  }
  func.func @transform_11(%arg0: i32) -> (i32, i32) {
    %c0_i32 = arith.constant 0 : i32
    %c0_i32_0 = arith.constant 0 : i32
    %c0_i32_1 = arith.constant 0 : i32
    return %c0_i32, %c0_i32_0 : i32, i32
  }
  func.func @transform_12(%arg0: i32) -> (i32, i32) {
    %c0_i32 = arith.constant 0 : i32
    %c0_i32_0 = arith.constant 0 : i32
    %c0_i32_1 = arith.constant 0 : i32
    return %c0_i32, %c0_i32_0 : i32, i32
  }
  func.func @transform_13(%arg0: i32) -> (i32, i32, i32) {
    %c0_i32 = arith.constant 0 : i32
    %c0_i32_0 = arith.constant 0 : i32
    %c0_i32_1 = arith.constant 0 : i32
    return %arg0, %c0_i32, %c0_i32_0 : i32, i32, i32
  }
}

module attributes {stable_mosaic.version = 11 : i64} {
  func.func @kernel(%arg0: i32, %arg1: memref<1x8x32xf32, #tpu.memory_space<vmem>>, %arg2: memref<32x96xbf16, #tpu.memory_space<vmem>>, %arg3: memref<1x96xf32, #tpu.memory_space<vmem>>, %arg4: memref<32x32xbf16, #tpu.memory_space<vmem>>, %arg5: memref<1x32xf32, #tpu.memory_space<vmem>>, %arg6: memref<32x128xbf16, #tpu.memory_space<vmem>>, %arg7: memref<1x128xf32, #tpu.memory_space<vmem>>, %arg8: memref<1x128xf32, #tpu.memory_space<vmem>>, %arg9: memref<1x128xf32, #tpu.memory_space<vmem>>, %arg10: memref<128x32xbf16, #tpu.memory_space<vmem>>, %arg11: memref<1x32xf32, #tpu.memory_space<vmem>>, %arg12: memref<1x32xf32, #tpu.memory_space<vmem>>, %arg13: memref<1x32xf32, #tpu.memory_space<vmem>>, %arg14: memref<1x8x32xf32, #tpu.memory_space<vmem>>) attributes {dimension_semantics = [#tpu.dimension_semantics<parallel>], iteration_bounds = array<i64: 2>, scalar_prefetch = 0 : i64, scratch_operands = 0 : i64, tpu.core_type = #tpu.core_type<tc>, window_params = [{transform_indices = @transform_0, window_bounds = array<i64: 1, 8, 32>}, {pipeline_mode = #tpu.pipeline_mode<synchronous>, transform_indices = @transform_1, window_bounds = array<i64: 32, 96>}, {pipeline_mode = #tpu.pipeline_mode<synchronous>, transform_indices = @transform_2, window_bounds = array<i64: 1, 96>}, {pipeline_mode = #tpu.pipeline_mode<synchronous>, transform_indices = @transform_3, window_bounds = array<i64: 32, 32>}, {pipeline_mode = #tpu.pipeline_mode<synchronous>, transform_indices = @transform_4, window_bounds = array<i64: 1, 32>}, {pipeline_mode = #tpu.pipeline_mode<synchronous>, transform_indices = @transform_5, window_bounds = array<i64: 32, 128>}, {pipeline_mode = #tpu.pipeline_mode<synchronous>, transform_indices = @transform_6, window_bounds = array<i64: 1, 128>}, {pipeline_mode = #tpu.pipeline_mode<synchronous>, transform_indices = @transform_7, window_bounds = array<i64: 1, 128>}, {pipeline_mode = #tpu.pipeline_mode<synchronous>, transform_indices = @transform_8, window_bounds = array<i64: 1, 128>}, {pipeline_mode = #tpu.pipeline_mode<synchronous>, transform_indices = @transform_9, window_bounds = array<i64: 128, 32>}, {pipeline_mode = #tpu.pipeline_mode<synchronous>, transform_indices = @transform_10, window_bounds = array<i64: 1, 32>}, {pipeline_mode = #tpu.pipeline_mode<synchronous>, transform_indices = @transform_11, window_bounds = array<i64: 1, 32>}, {pipeline_mode = #tpu.pipeline_mode<synchronous>, transform_indices = @transform_12, window_bounds = array<i64: 1, 32>}, {transform_indices = @transform_13, window_bounds = array<i64: 1, 8, 32>}]} {
    %c0 = arith.constant 0 : index
    %c0_0 = arith.constant 0 : index
    %c0_1 = arith.constant 0 : index
    %0 = vector.load %arg1[%c0, %c0_0, %c0_1] : memref<1x8x32xf32, #tpu.memory_space<vmem>>, vector<1x8x32xf32>
    %1 = vector.shape_cast %0 : vector<1x8x32xf32> to vector<8x32xf32>
    %cst = arith.constant dense<0.000000e+00> : vector<8xf32>
    %2 = vector.multi_reduction <add>, %1, %cst [1] : vector<8x32xf32> to vector<8xf32>
    %3 = vector.shape_cast %2 : vector<8xf32> to vector<8x1xf32>
    %cst_2 = arith.constant 3.200000e+01 : f32
    %4 = vector.broadcast %cst_2 : f32 to vector<8x1xf32>
    %5 = arith.divf %3, %4 : vector<8x1xf32>
    %6 = arith.mulf %1, %1 : vector<8x32xf32>
    %cst_3 = arith.constant dense<0.000000e+00> : vector<8xf32>
    %7 = vector.multi_reduction <add>, %6, %cst_3 [1] : vector<8x32xf32> to vector<8xf32>
    %8 = vector.shape_cast %7 : vector<8xf32> to vector<8x1xf32>
    %cst_4 = arith.constant 3.200000e+01 : f32
    %9 = vector.broadcast %cst_4 : f32 to vector<8x1xf32>
    %10 = arith.divf %8, %9 : vector<8x1xf32>
    %11 = vector.broadcast %5 : vector<8x1xf32> to vector<8x32xf32>
    %12 = arith.subf %1, %11 : vector<8x32xf32>
    %13 = arith.mulf %5, %5 : vector<8x1xf32>
    %14 = arith.subf %10, %13 : vector<8x1xf32>
    %cst_5 = arith.constant 9.99999974E-6 : f32
    %15 = vector.broadcast %cst_5 : f32 to vector<8x1xf32>
    %16 = arith.addf %14, %15 : vector<8x1xf32>
    %17 = math.rsqrt %16 : vector<8x1xf32>
    %18 = vector.broadcast %17 : vector<8x1xf32> to vector<8x32xf32>
    %19 = arith.mulf %12, %18 : vector<8x32xf32>
    %20 = arith.truncf %19 : vector<8x32xf32> to vector<8x32xbf16>
    %c0_6 = arith.constant 0 : index
    %c0_7 = arith.constant 0 : index
    %21 = vector.load %arg2[%c0_6, %c0_7] : memref<32x96xbf16, #tpu.memory_space<vmem>>, vector<32x96xbf16>
    %cst_8 = arith.constant dense<0.000000e+00> : vector<8x96xf32>
    %22 = tpu.matmul %20, %21, %cst_8 {dimension_numbers = #tpu.dot_dimension_numbers<[1], [0], [0], [1], [0, 0, 1, 1], [], []>} : vector<8x32xbf16>, vector<32x96xbf16>, vector<8x96xf32> -> vector<8x96xf32>
    %c0_9 = arith.constant 0 : index
    %c0_10 = arith.constant 0 : index
    %23 = vector.load %arg3[%c0_9, %c0_10] : memref<1x96xf32, #tpu.memory_space<vmem>>, vector<1x96xf32>
    %24 = vector.broadcast %23 : vector<1x96xf32> to vector<8x96xf32>
    %25 = arith.addf %22, %24 : vector<8x96xf32>
    %26 = vector.extract_strided_slice %25 {offsets = [0, 0], sizes = [8, 8], strides = [1, 1]} : vector<8x96xf32> to vector<8x8xf32>
    %27 = vector.extract_strided_slice %25 {offsets = [0, 8], sizes = [8, 8], strides = [1, 1]} : vector<8x96xf32> to vector<8x8xf32>
    %28 = vector.extract_strided_slice %25 {offsets = [0, 16], sizes = [8, 8], strides = [1, 1]} : vector<8x96xf32> to vector<8x8xf32>
    %29 = vector.extract_strided_slice %25 {offsets = [0, 24], sizes = [8, 8], strides = [1, 1]} : vector<8x96xf32> to vector<8x8xf32>
    %30 = vector.shape_cast %26 : vector<8x8xf32> to vector<1x8x8xf32>
    %31 = vector.shape_cast %27 : vector<8x8xf32> to vector<1x8x8xf32>
    %32 = vector.shape_cast %28 : vector<8x8xf32> to vector<1x8x8xf32>
    %33 = vector.shape_cast %29 : vector<8x8xf32> to vector<1x8x8xf32>
    %34 = tpu.concatenate %30, %31, %32, %33 in 0 : vector<1x8x8xf32>, vector<1x8x8xf32>, vector<1x8x8xf32>, vector<1x8x8xf32> -> vector<4x8x8xf32>
    %35 = arith.truncf %34 : vector<4x8x8xf32> to vector<4x8x8xbf16>
    %36 = vector.extract_strided_slice %25 {offsets = [0, 32], sizes = [8, 8], strides = [1, 1]} : vector<8x96xf32> to vector<8x8xf32>
    %37 = vector.extract_strided_slice %25 {offsets = [0, 40], sizes = [8, 8], strides = [1, 1]} : vector<8x96xf32> to vector<8x8xf32>
    %38 = vector.extract_strided_slice %25 {offsets = [0, 48], sizes = [8, 8], strides = [1, 1]} : vector<8x96xf32> to vector<8x8xf32>
    %39 = vector.extract_strided_slice %25 {offsets = [0, 56], sizes = [8, 8], strides = [1, 1]} : vector<8x96xf32> to vector<8x8xf32>
    %40 = vector.shape_cast %36 : vector<8x8xf32> to vector<1x8x8xf32>
    %41 = vector.shape_cast %37 : vector<8x8xf32> to vector<1x8x8xf32>
    %42 = vector.shape_cast %38 : vector<8x8xf32> to vector<1x8x8xf32>
    %43 = vector.shape_cast %39 : vector<8x8xf32> to vector<1x8x8xf32>
    %44 = tpu.concatenate %40, %41, %42, %43 in 0 : vector<1x8x8xf32>, vector<1x8x8xf32>, vector<1x8x8xf32>, vector<1x8x8xf32> -> vector<4x8x8xf32>
    %45 = arith.truncf %44 : vector<4x8x8xf32> to vector<4x8x8xbf16>
    %46 = vector.extract_strided_slice %25 {offsets = [0, 64], sizes = [8, 8], strides = [1, 1]} : vector<8x96xf32> to vector<8x8xf32>
    %47 = vector.extract_strided_slice %25 {offsets = [0, 72], sizes = [8, 8], strides = [1, 1]} : vector<8x96xf32> to vector<8x8xf32>
    %48 = vector.extract_strided_slice %25 {offsets = [0, 80], sizes = [8, 8], strides = [1, 1]} : vector<8x96xf32> to vector<8x8xf32>
    %49 = vector.extract_strided_slice %25 {offsets = [0, 88], sizes = [8, 8], strides = [1, 1]} : vector<8x96xf32> to vector<8x8xf32>
    %50 = vector.shape_cast %46 : vector<8x8xf32> to vector<1x8x8xf32>
    %51 = vector.shape_cast %47 : vector<8x8xf32> to vector<1x8x8xf32>
    %52 = vector.shape_cast %48 : vector<8x8xf32> to vector<1x8x8xf32>
    %53 = vector.shape_cast %49 : vector<8x8xf32> to vector<1x8x8xf32>
    %54 = tpu.concatenate %50, %51, %52, %53 in 0 : vector<1x8x8xf32>, vector<1x8x8xf32>, vector<1x8x8xf32>, vector<1x8x8xf32> -> vector<4x8x8xf32>
    %55 = arith.truncf %54 : vector<4x8x8xf32> to vector<4x8x8xbf16>
    "tpu.trace_start"() <{level = 10 : i32, message = "htd,hsd->hts"}> : () -> ()
    %cst_11 = arith.constant dense<0.000000e+00> : vector<4x8x8xf32>
    %56 = tpu.matmul %35, %45, %cst_11 {dimension_numbers = #tpu.dot_dimension_numbers<[2], [2], [1], [1], [0, 0, 0, 1, 1, 1], [0], [0]>} : vector<4x8x8xbf16>, vector<4x8x8xbf16>, vector<4x8x8xf32> -> vector<4x8x8xf32>
    "tpu.trace_stop"() : () -> ()
    %cst_12 = arith.constant dense<0xFF800000> : vector<4x8xf32>
    %57 = vector.multi_reduction <maximumf>, %56, %cst_12 [2] : vector<4x8x8xf32> to vector<4x8xf32>
    %58 = vector.shape_cast %57 : vector<4x8xf32> to vector<4x8x1xf32>
    %59 = vector.broadcast %58 : vector<4x8x1xf32> to vector<4x8x8xf32>
    %60 = arith.subf %56, %59 : vector<4x8x8xf32>
    %61 = math.exp %60 : vector<4x8x8xf32>
    %cst_13 = arith.constant dense<0.000000e+00> : vector<4x8xf32>
    %62 = vector.multi_reduction <add>, %61, %cst_13 [2] : vector<4x8x8xf32> to vector<4x8xf32>
    %63 = vector.shape_cast %62 : vector<4x8xf32> to vector<4x8x1xf32>
    %64 = tpu.reciprocal %63 {approx = true} : vector<4x8x1xf32> -> vector<4x8x1xf32>
    %65 = vector.broadcast %64 : vector<4x8x1xf32> to vector<4x8x8xf32>
    %66 = arith.mulf %61, %65 : vector<4x8x8xf32>
    %67 = arith.truncf %66 : vector<4x8x8xf32> to vector<4x8x8xbf16>
    "tpu.trace_start"() <{level = 10 : i32, message = "hts,hsd->htd"}> : () -> ()
    %cst_14 = arith.constant dense<0.000000e+00> : vector<4x8x8xf32>
    %68 = tpu.matmul %67, %55, %cst_14 {dimension_numbers = #tpu.dot_dimension_numbers<[2], [1], [1], [2], [0, 0, 0, 1, 1, 2], [0], [0]>} : vector<4x8x8xbf16>, vector<4x8x8xbf16>, vector<4x8x8xf32> -> vector<4x8x8xf32>
    "tpu.trace_stop"() : () -> ()
    %69 = vector.extract_strided_slice %68 {offsets = [0, 0, 0], sizes = [1, 8, 8], strides = [1, 1, 1]} : vector<4x8x8xf32> to vector<1x8x8xf32>
    %70 = vector.shape_cast %69 : vector<1x8x8xf32> to vector<8x8xf32>
    %71 = vector.extract_strided_slice %68 {offsets = [1, 0, 0], sizes = [1, 8, 8], strides = [1, 1, 1]} : vector<4x8x8xf32> to vector<1x8x8xf32>
    %72 = vector.shape_cast %71 : vector<1x8x8xf32> to vector<8x8xf32>
    %73 = vector.extract_strided_slice %68 {offsets = [2, 0, 0], sizes = [1, 8, 8], strides = [1, 1, 1]} : vector<4x8x8xf32> to vector<1x8x8xf32>
    %74 = vector.shape_cast %73 : vector<1x8x8xf32> to vector<8x8xf32>
    %75 = vector.extract_strided_slice %68 {offsets = [3, 0, 0], sizes = [1, 8, 8], strides = [1, 1, 1]} : vector<4x8x8xf32> to vector<1x8x8xf32>
    %76 = vector.shape_cast %75 : vector<1x8x8xf32> to vector<8x8xf32>
    %77 = tpu.concatenate %70, %72, %74, %76 in 1 : vector<8x8xf32>, vector<8x8xf32>, vector<8x8xf32>, vector<8x8xf32> -> vector<8x32xf32>
    %78 = arith.truncf %77 : vector<8x32xf32> to vector<8x32xbf16>
    %c0_15 = arith.constant 0 : index
    %c0_16 = arith.constant 0 : index
    %79 = vector.load %arg4[%c0_15, %c0_16] : memref<32x32xbf16, #tpu.memory_space<vmem>>, vector<32x32xbf16>
    %cst_17 = arith.constant dense<0.000000e+00> : vector<8x32xf32>
    %80 = tpu.matmul %78, %79, %cst_17 {dimension_numbers = #tpu.dot_dimension_numbers<[1], [0], [0], [1], [0, 0, 1, 1], [], []>} : vector<8x32xbf16>, vector<32x32xbf16>, vector<8x32xf32> -> vector<8x32xf32>
    %c0_18 = arith.constant 0 : index
    %c0_19 = arith.constant 0 : index
    %81 = vector.load %arg5[%c0_18, %c0_19] : memref<1x32xf32, #tpu.memory_space<vmem>>, vector<1x32xf32>
    %82 = vector.broadcast %81 : vector<1x32xf32> to vector<8x32xf32>
    %83 = arith.addf %80, %82 : vector<8x32xf32>
    %84 = arith.addf %1, %83 : vector<8x32xf32>
    %c0_20 = arith.constant 0 : index
    %c0_21 = arith.constant 0 : index
    %85 = vector.load %arg8[%c0_20, %c0_21] : memref<1x128xf32, #tpu.memory_space<vmem>>, vector<1x128xf32>
    %c0_22 = arith.constant 0 : index
    %c0_23 = arith.constant 0 : index
    %86 = vector.load %arg9[%c0_22, %c0_23] : memref<1x128xf32, #tpu.memory_space<vmem>>, vector<1x128xf32>
    %87 = arith.truncf %84 : vector<8x32xf32> to vector<8x32xbf16>
    %c0_24 = arith.constant 0 : index
    %c0_25 = arith.constant 0 : index
    %88 = vector.load %arg6[%c0_24, %c0_25] : memref<32x128xbf16, #tpu.memory_space<vmem>>, vector<32x128xbf16>
    %cst_26 = arith.constant dense<0.000000e+00> : vector<8x128xf32>
    %89 = tpu.matmul %87, %88, %cst_26 {dimension_numbers = #tpu.dot_dimension_numbers<[1], [0], [0], [1], [0, 0, 1, 1], [], []>} : vector<8x32xbf16>, vector<32x128xbf16>, vector<8x128xf32> -> vector<8x128xf32>
    %c0_27 = arith.constant 0 : index
    %c0_28 = arith.constant 0 : index
    %90 = vector.load %arg7[%c0_27, %c0_28] : memref<1x128xf32, #tpu.memory_space<vmem>>, vector<1x128xf32>
    %91 = vector.broadcast %90 : vector<1x128xf32> to vector<8x128xf32>
    %92 = arith.addf %89, %91 : vector<8x128xf32>
    %93 = vector.broadcast %85 : vector<1x128xf32> to vector<8x128xf32>
    %94 = arith.mulf %93, %92 : vector<8x128xf32>
    %95 = math.sin %94 : vector<8x128xf32>
    %96 = vector.broadcast %86 : vector<1x128xf32> to vector<8x128xf32>
    %97 = arith.mulf %96, %95 : vector<8x128xf32>
    %98 = arith.mulf %97, %95 : vector<8x128xf32>
    %99 = arith.addf %92, %98 : vector<8x128xf32>
    %100 = arith.truncf %99 : vector<8x128xf32> to vector<8x128xbf16>
    %c0_29 = arith.constant 0 : index
    %c0_30 = arith.constant 0 : index
    %101 = vector.load %arg10[%c0_29, %c0_30] : memref<128x32xbf16, #tpu.memory_space<vmem>>, vector<128x32xbf16>
    %cst_31 = arith.constant dense<0.000000e+00> : vector<8x32xf32>
    %102 = tpu.matmul %100, %101, %cst_31 {dimension_numbers = #tpu.dot_dimension_numbers<[1], [0], [0], [1], [0, 0, 1, 1], [], []>} : vector<8x128xbf16>, vector<128x32xbf16>, vector<8x32xf32> -> vector<8x32xf32>
    %c0_32 = arith.constant 0 : index
    %c0_33 = arith.constant 0 : index
    %103 = vector.load %arg11[%c0_32, %c0_33] : memref<1x32xf32, #tpu.memory_space<vmem>>, vector<1x32xf32>
    %104 = vector.broadcast %103 : vector<1x32xf32> to vector<8x32xf32>
    %105 = arith.addf %102, %104 : vector<8x32xf32>
    %106 = arith.addf %84, %105 : vector<8x32xf32>
    %cst_34 = arith.constant dense<0.000000e+00> : vector<8xf32>
    %107 = vector.multi_reduction <add>, %106, %cst_34 [1] : vector<8x32xf32> to vector<8xf32>
    %108 = vector.shape_cast %107 : vector<8xf32> to vector<8x1xf32>
    %cst_35 = arith.constant 3.200000e+01 : f32
    %109 = vector.broadcast %cst_35 : f32 to vector<8x1xf32>
    %110 = arith.divf %108, %109 : vector<8x1xf32>
    %111 = arith.mulf %106, %106 : vector<8x32xf32>
    %cst_36 = arith.constant dense<0.000000e+00> : vector<8xf32>
    %112 = vector.multi_reduction <add>, %111, %cst_36 [1] : vector<8x32xf32> to vector<8xf32>
    %113 = vector.shape_cast %112 : vector<8xf32> to vector<8x1xf32>
    %cst_37 = arith.constant 3.200000e+01 : f32
    %114 = vector.broadcast %cst_37 : f32 to vector<8x1xf32>
    %115 = arith.divf %113, %114 : vector<8x1xf32>
    %116 = vector.broadcast %110 : vector<8x1xf32> to vector<8x32xf32>
    %117 = arith.subf %106, %116 : vector<8x32xf32>
    %118 = arith.mulf %110, %110 : vector<8x1xf32>
    %119 = arith.subf %115, %118 : vector<8x1xf32>
    %cst_38 = arith.constant 9.99999974E-6 : f32
    %120 = vector.broadcast %cst_38 : f32 to vector<8x1xf32>
    %121 = arith.addf %119, %120 : vector<8x1xf32>
    %122 = math.rsqrt %121 : vector<8x1xf32>
    %123 = vector.broadcast %122 : vector<8x1xf32> to vector<8x32xf32>
    %124 = arith.mulf %117, %123 : vector<8x32xf32>
    %c0_39 = arith.constant 0 : index
    %c0_40 = arith.constant 0 : index
    %125 = vector.load %arg12[%c0_39, %c0_40] : memref<1x32xf32, #tpu.memory_space<vmem>>, vector<1x32xf32>
    %126 = vector.broadcast %125 : vector<1x32xf32> to vector<8x32xf32>
    %127 = arith.mulf %124, %126 : vector<8x32xf32>
    %c0_41 = arith.constant 0 : index
    %c0_42 = arith.constant 0 : index
    %128 = vector.load %arg13[%c0_41, %c0_42] : memref<1x32xf32, #tpu.memory_space<vmem>>, vector<1x32xf32>
    %129 = vector.broadcast %128 : vector<1x32xf32> to vector<8x32xf32>
    %130 = arith.addf %127, %129 : vector<8x32xf32>
    %c0_43 = arith.constant 0 : index
    %c0_44 = arith.constant 0 : index
    %c0_45 = arith.constant 0 : index
    %131 = vector.load %arg14[%c0_43, %c0_44, %c0_45] : memref<1x8x32xf32, #tpu.memory_space<vmem>>, vector<1x8x32xf32>
    %132 = vector.shape_cast %131 : vector<1x8x32xf32> to vector<8x32xf32>
    %133 = vector.shape_cast %130 : vector<8x32xf32> to vector<1x8x32xf32>
    tpu.vector_store %arg14[%c0_43, %c0_44, %c0_45], %133 {strides = array<i32>} : memref<1x8x32xf32, #tpu.memory_space<vmem>>, vector<1x8x32xf32>,
    return
  }
  func.func @transform_0(%arg0: i32) -> (i32, i32, i32) {
    %c0_i32 = arith.constant 0 : i32
    %c0_i32_0 = arith.constant 0 : i32
    %c0_i32_1 = arith.constant 0 : i32
    return %arg0, %c0_i32, %c0_i32_0 : i32, i32, i32
  }
  func.func @transform_1(%arg0: i32) -> (i32, i32) {
    %c0_i32 = arith.constant 0 : i32
    %c0_i32_0 = arith.constant 0 : i32
    %c0_i32_1 = arith.constant 0 : i32
    return %c0_i32, %c0_i32_0 : i32, i32
  }
  func.func @transform_2(%arg0: i32) -> (i32, i32) {
    %c0_i32 = arith.constant 0 : i32
    %c0_i32_0 = arith.constant 0 : i32
    %c0_i32_1 = arith.constant 0 : i32
    return %c0_i32, %c0_i32_0 : i32, i32
  }
  func.func @transform_3(%arg0: i32) -> (i32, i32) {
    %c0_i32 = arith.constant 0 : i32
    %c0_i32_0 = arith.constant 0 : i32
    %c0_i32_1 = arith.constant 0 : i32
    return %c0_i32, %c0_i32_0 : i32, i32
  }
  func.func @transform_4(%arg0: i32) -> (i32, i32) {
    %c0_i32 = arith.constant 0 : i32
    %c0_i32_0 = arith.constant 0 : i32
    %c0_i32_1 = arith.constant 0 : i32
    return %c0_i32, %c0_i32_0 : i32, i32
  }
  func.func @transform_5(%arg0: i32) -> (i32, i32) {
    %c0_i32 = arith.constant 0 : i32
    %c0_i32_0 = arith.constant 0 : i32
    %c0_i32_1 = arith.constant 0 : i32
    return %c0_i32, %c0_i32_0 : i32, i32
  }
  func.func @transform_6(%arg0: i32) -> (i32, i32) {
    %c0_i32 = arith.constant 0 : i32
    %c0_i32_0 = arith.constant 0 : i32
    %c0_i32_1 = arith.constant 0 : i32
    return %c0_i32, %c0_i32_0 : i32, i32
  }
  func.func @transform_7(%arg0: i32) -> (i32, i32) {
    %c0_i32 = arith.constant 0 : i32
    %c0_i32_0 = arith.constant 0 : i32
    %c0_i32_1 = arith.constant 0 : i32
    return %c0_i32, %c0_i32_0 : i32, i32
  }
  func.func @transform_8(%arg0: i32) -> (i32, i32) {
    %c0_i32 = arith.constant 0 : i32
    %c0_i32_0 = arith.constant 0 : i32
    %c0_i32_1 = arith.constant 0 : i32
    return %c0_i32, %c0_i32_0 : i32, i32
  }
  func.func @transform_9(%arg0: i32) -> (i32, i32) {
    %c0_i32 = arith.constant 0 : i32
    %c0_i32_0 = arith.constant 0 : i32
    %c0_i32_1 = arith.constant 0 : i32
    return %c0_i32, %c0_i32_0 : i32, i32
  }
  func.func @transform_10(%arg0: i32) -> (i32, i32) {
    %c0_i32 = arith.constant 0 : i32
    %c0_i32_0 = arith.constant 0 : i32
    %c0_i32_1 = arith.constant 0 : i32
    return %c0_i32, %c0_i32_0 : i32, i32
  }
  func.func @transform_11(%arg0: i32) -> (i32, i32) {
    %c0_i32 = arith.constant 0 : i32
    %c0_i32_0 = arith.constant 0 : i32
    %c0_i32_1 = arith.constant 0 : i32
    return %c0_i32, %c0_i32_0 : i32, i32
  }
  func.func @transform_12(%arg0: i32) -> (i32, i32) {
    %c0_i32 = arith.constant 0 : i32
    %c0_i32_0 = arith.constant 0 : i32
    %c0_i32_1 = arith.constant 0 : i32
    return %c0_i32, %c0_i32_0 : i32, i32
  }
  func.func @transform_13(%arg0: i32) -> (i32, i32, i32) {
    %c0_i32 = arith.constant 0 : i32
    %c0_i32_0 = arith.constant 0 : i32
    %c0_i32_1 = arith.constant 0 : i32
    return %arg0, %c0_i32, %c0_i32_0 : i32, i32, i32
  }
}

</mosaic_0001>

<llo_original>
// kernel: tpu_custom_call.1
$region0: #{tpu_custom_call.1}
  #allocation0 [shape = 'u32[]', space=smem, size = 0x4, offset = 0x4, fixed_abs, tag = 'smem constant byte address 0x4 - core index']
  #allocation1 [shape = 'u32[144,128]{1,0:T(1,128)}', space=vmem, size = 0x12000, scoped, tag = 'internal scratch']
  %s0 = inlined_call_operand.vmem [shape: f32[2,8,32], index: 0, kind: input, shape index: {}]
  %s1 = inlined_call_operand.vmem [shape: bf16[32,96], index: 1, kind: input, shape index: {}]
  %s2 = inlined_call_operand.vmem [shape: f32[1,96], index: 2, kind: input, shape index: {}]
  %s3 = inlined_call_operand.vmem [shape: bf16[32,32], index: 3, kind: input, shape index: {}]
  %s4 = inlined_call_operand.vmem [shape: f32[1,32], index: 4, kind: input, shape index: {}]
  %s5 = inlined_call_operand.vmem [shape: bf16[32,128], index: 5, kind: input, shape index: {}]
  %s6 = inlined_call_operand.vmem [shape: f32[1,128], index: 6, kind: input, shape index: {}]
  %s7 = inlined_call_operand.vmem [shape: f32[1,128], index: 7, kind: input, shape index: {}]
  %s8 = inlined_call_operand.vmem [shape: f32[1,128], index: 8, kind: input, shape index: {}]
  %s9 = inlined_call_operand.vmem [shape: bf16[128,32], index: 9, kind: input, shape index: {}]
  %s10 = inlined_call_operand.vmem [shape: f32[1,32], index: 10, kind: input, shape index: {}]
  %s11 = inlined_call_operand.vmem [shape: f32[1,32], index: 11, kind: input, shape index: {}]
  %s12 = inlined_call_operand.vmem [shape: f32[1,32], index: 12, kind: input, shape index: {}]
  %s13 = inlined_call_operand.hbm [shape: f32[2,8,32], index: 13, kind: output, shape index: {}]
  %s14 = sld [smem:[#allocation0]]
  $region85: #{tpu_custom_call.1} parent=0
    _
  %s16 = ssub.s32 1, %s14
  %s17 = scalar_select 0, %s16, %s14
  $region1: #{tpu_custom_call.1} parent=0
    #allocation2 [shape = 'u8[8192]{0}', space=vmem, size = 0x2000, scoped, tag = 'output window, operand 0']
    #allocation3 [shape = 's32[2]{0}', space=sflag, size = 0x8, scoped, tag = 'scoped memory for tpu_custom_call.1']
    %18 = vsyncpa [#allocation3], 0
    %s19 = scalar_lea.sflag [#allocation3], 1
    %20 = vsyncpa %s19, 0
    loop: start=0, step=1, limit=4
    $region2: #{tpu_custom_call.1} parent=1 // loop_pre_header
      _
    $region3: #{tpu_custom_call.1} parent=1 // loop_header
      %s22 = sphi 0, %s26
      %p23 = scmp.ge.s32.totalorder %s22, 4
      %s32 = sphi 0, %s34
      %s35 = sphi 0, %s32
      %s36 = sphi 0, %s35
      %s52 = sphi 0, %s36
      %s56 = sphi 0, %s56
      %s58 = sphi 0, %s56
      %s59 = sphi 0, %s58
      %s73 = sphi 0, %s59
      %s77 = sphi 0, %s77
      %s79 = sphi 0, %s77
      %s80 = sphi 0, %s79
      %s94 = sphi 0, %s80
      %s98 = sphi 0, %s98
      %s100 = sphi 0, %s98
      %s101 = sphi 0, %s100
      %s115 = sphi 0, %s101
      %s119 = sphi 0, %s119
      %s121 = sphi 0, %s119
      %s122 = sphi 0, %s121
      %s136 = sphi 0, %s122
      %s140 = sphi 0, %s140
      %s142 = sphi 0, %s140
      %s143 = sphi 0, %s142
      %s157 = sphi 0, %s143
      %s161 = sphi 0, %s161
      %s163 = sphi 0, %s161
      %s164 = sphi 0, %s163
      %s178 = sphi 0, %s164
      %s182 = sphi 0, %s182
      %s184 = sphi 0, %s182
      %s185 = sphi 0, %s184
      %s199 = sphi 0, %s185
      %s203 = sphi 0, %s203
      %s205 = sphi 0, %s203
      %s206 = sphi 0, %s205
      %s220 = sphi 0, %s206
      %s224 = sphi 0, %s224
      %s226 = sphi 0, %s224
      %s227 = sphi 0, %s226
      %s241 = sphi 0, %s227
      %s245 = sphi 0, %s245
      %s247 = sphi 0, %s245
      %s248 = sphi 0, %s247
      %s262 = sphi 0, %s248
      %s266 = sphi 0, %s266
      %s268 = sphi 0, %s266
      %s269 = sphi 0, %s268
      %s283 = sphi 0, %s269
      %s287 = sphi 0, %s287
      %s289 = sphi 0, %s287
      %s290 = sphi 0, %s289
      %s304 = sphi 0, %s290
      %s310 = sphi 0, %s312
      %s313 = sphi 0, %s310
      %s314 = sphi 0, %s313
      %s330 = sphi 0, %s314
    $region4: #{tpu_custom_call.1} parent=1 // loop_header_branch
      %25 = sbr.rel (%p23) target = $region8
    $region5: #{tpu_custom_call.1} parent=1 // loop_body
      %s27 = ssub.s32 %s22, 1
      %s28 = ssub.s32 %s22, 2
      %s29 = sadd.s32 %s22, 1
      %s30 = ssub.s32 %s22, %s29
      %p31 = scmp.eq.s32.totalorder %s30, 0
      %s33 = sadd.s32 %s32, 1
      %s34 = scalar_select %p31, %s32, %s33
      %p37 = pneg %p31
      %p38 = scmp.eq.s32.totalorder %s22, 1
      %p39 = por %p37, %p38
      %p40 = scmp.ne.s32.totalorder %s32, %s35
      %p41 = scmp.eq.s32.totalorder %s22, 0
      %p42 = por %p40, %p41
      %p43 = scmp.ne.s32.totalorder %s32, %s35
      %p44 = scmp.eq.s32.totalorder %s27, 1
      %p45 = por %p43, %p44
      %p46 = scmp.ne.s32.totalorder %s35, %s36
      %p47 = scmp.eq.s32.totalorder %s27, 0
      %p48 = por %p46, %p47
      %p49 = scmp.ne.s32.totalorder %s35, %s36
      %p50 = scmp.eq.s32.totalorder %s28, 1
      %p51 = por %p49, %p50
      %p53 = scmp.ne.s32.totalorder %s36, %s52
      %p54 = scmp.eq.s32.totalorder %s28, 0
      %p55 = por %p53, %p54
      %s57 = sadd.s32 %s56, 1
      %p60 = scmp.eq.s32.totalorder %s22, 1
      %p61 = scmp.ne.s32.totalorder %s56, %s58
      %p62 = scmp.eq.s32.totalorder %s22, 0
      %p63 = por %p61, %p62
      %p64 = scmp.ne.s32.totalorder %s56, %s58
      %p65 = scmp.eq.s32.totalorder %s27, 1
      %p66 = por %p64, %p65
      %p67 = scmp.ne.s32.totalorder %s58, %s59
      %p68 = scmp.eq.s32.totalorder %s27, 0
      %p69 = por %p67, %p68
      %p70 = scmp.ne.s32.totalorder %s58, %s59
      %p71 = scmp.eq.s32.totalorder %s28, 1
      %p72 = por %p70, %p71
      %p74 = scmp.ne.s32.totalorder %s59, %s73
      %p75 = scmp.eq.s32.totalorder %s28, 0
      %p76 = por %p74, %p75
      %s78 = sadd.s32 %s77, 1
      %p81 = scmp.eq.s32.totalorder %s22, 1
      %p82 = scmp.ne.s32.totalorder %s77, %s79
      %p83 = scmp.eq.s32.totalorder %s22, 0
      %p84 = por %p82, %p83
      %p85 = scmp.ne.s32.totalorder %s77, %s79
      %p86 = scmp.eq.s32.totalorder %s27, 1
      %p87 = por %p85, %p86
      %p88 = scmp.ne.s32.totalorder %s79, %s80
      %p89 = scmp.eq.s32.totalorder %s27, 0
      %p90 = por %p88, %p89
      %p91 = scmp.ne.s32.totalorder %s79, %s80
      %p92 = scmp.eq.s32.totalorder %s28, 1
      %p93 = por %p91, %p92
      %p95 = scmp.ne.s32.totalorder %s80, %s94
      %p96 = scmp.eq.s32.totalorder %s28, 0
      %p97 = por %p95, %p96
      %s99 = sadd.s32 %s98, 1
      %p102 = scmp.eq.s32.totalorder %s22, 1
      %p103 = scmp.ne.s32.totalorder %s98, %s100
      %p104 = scmp.eq.s32.totalorder %s22, 0
      %p105 = por %p103, %p104
      %p106 = scmp.ne.s32.totalorder %s98, %s100
      %p107 = scmp.eq.s32.totalorder %s27, 1
      %p108 = por %p106, %p107
      %p109 = scmp.ne.s32.totalorder %s100, %s101
      %p110 = scmp.eq.s32.totalorder %s27, 0
      %p111 = por %p109, %p110
      %p112 = scmp.ne.s32.totalorder %s100, %s101
      %p113 = scmp.eq.s32.totalorder %s28, 1
      %p114 = por %p112, %p113
      %p116 = scmp.ne.s32.totalorder %s101, %s115
      %p117 = scmp.eq.s32.totalorder %s28, 0
      %p118 = por %p116, %p117
      %s120 = sadd.s32 %s119, 1
      %p123 = scmp.eq.s32.totalorder %s22, 1
      %p124 = scmp.ne.s32.totalorder %s119, %s121
      %p125 = scmp.eq.s32.totalorder %s22, 0
      %p126 = por %p124, %p125
      %p127 = scmp.ne.s32.totalorder %s119, %s121
      %p128 = scmp.eq.s32.totalorder %s27, 1
      %p129 = por %p127, %p128
      %p130 = scmp.ne.s32.totalorder %s121, %s122
      %p131 = scmp.eq.s32.totalorder %s27, 0
      %p132 = por %p130, %p131
      %p133 = scmp.ne.s32.totalorder %s121, %s122
      %p134 = scmp.eq.s32.totalorder %s28, 1
      %p135 = por %p133, %p134
      %p137 = scmp.ne.s32.totalorder %s122, %s136
      %p138 = scmp.eq.s32.totalorder %s28, 0
      %p139 = por %p137, %p138
      %s141 = sadd.s32 %s140, 1
      %p144 = scmp.eq.s32.totalorder %s22, 1
      %p145 = scmp.ne.s32.totalorder %s140, %s142
      %p146 = scmp.eq.s32.totalorder %s22, 0
      %p147 = por %p145, %p146
      %p148 = scmp.ne.s32.totalorder %s140, %s142
      %p149 = scmp.eq.s32.totalorder %s27, 1
      %p150 = por %p148, %p149
      %p151 = scmp.ne.s32.totalorder %s142, %s143
      %p152 = scmp.eq.s32.totalorder %s27, 0
      %p153 = por %p151, %p152
      %p154 = scmp.ne.s32.totalorder %s142, %s143
      %p155 = scmp.eq.s32.totalorder %s28, 1
      %p156 = por %p154, %p155
      %p158 = scmp.ne.s32.totalorder %s143, %s157
      %p159 = scmp.eq.s32.totalorder %s28, 0
      %p160 = por %p158, %p159
      %s162 = sadd.s32 %s161, 1
      %p165 = scmp.eq.s32.totalorder %s22, 1
      %p166 = scmp.ne.s32.totalorder %s161, %s163
      %p167 = scmp.eq.s32.totalorder %s22, 0
      %p168 = por %p166, %p167
      %p169 = scmp.ne.s32.totalorder %s161, %s163
      %p170 = scmp.eq.s32.totalorder %s27, 1
      %p171 = por %p169, %p170
      %p172 = scmp.ne.s32.totalorder %s163, %s164
      %p173 = scmp.eq.s32.totalorder %s27, 0
      %p174 = por %p172, %p173
      %p175 = scmp.ne.s32.totalorder %s163, %s164
      %p176 = scmp.eq.s32.totalorder %s28, 1
      %p177 = por %p175, %p176
      %p179 = scmp.ne.s32.totalorder %s164, %s178
      %p180 = scmp.eq.s32.totalorder %s28, 0
      %p181 = por %p179, %p180
      %s183 = sadd.s32 %s182, 1
      %p186 = scmp.eq.s32.totalorder %s22, 1
      %p187 = scmp.ne.s32.totalorder %s182, %s184
      %p188 = scmp.eq.s32.totalorder %s22, 0
      %p189 = por %p187, %p188
      %p190 = scmp.ne.s32.totalorder %s182, %s184
      %p191 = scmp.eq.s32.totalorder %s27, 1
      %p192 = por %p190, %p191
      %p193 = scmp.ne.s32.totalorder %s184, %s185
      %p194 = scmp.eq.s32.totalorder %s27, 0
      %p195 = por %p193, %p194
      %p196 = scmp.ne.s32.totalorder %s184, %s185
      %p197 = scmp.eq.s32.totalorder %s28, 1
      %p198 = por %p196, %p197
      %p200 = scmp.ne.s32.totalorder %s185, %s199
      %p201 = scmp.eq.s32.totalorder %s28, 0
      %p202 = por %p200, %p201
      %s204 = sadd.s32 %s203, 1
      %p207 = scmp.eq.s32.totalorder %s22, 1
      %p208 = scmp.ne.s32.totalorder %s203, %s205
      %p209 = scmp.eq.s32.totalorder %s22, 0
      %p210 = por %p208, %p209
      %p211 = scmp.ne.s32.totalorder %s203, %s205
      %p212 = scmp.eq.s32.totalorder %s27, 1
      %p213 = por %p211, %p212
      %p214 = scmp.ne.s32.totalorder %s205, %s206
      %p215 = scmp.eq.s32.totalorder %s27, 0
      %p216 = por %p214, %p215
      %p217 = scmp.ne.s32.totalorder %s205, %s206
      %p218 = scmp.eq.s32.totalorder %s28, 1
      %p219 = por %p217, %p218
      %p221 = scmp.ne.s32.totalorder %s206, %s220
      %p222 = scmp.eq.s32.totalorder %s28, 0
      %p223 = por %p221, %p222
      %s225 = sadd.s32 %s224, 1
      %p228 = scmp.eq.s32.totalorder %s22, 1
      %p229 = scmp.ne.s32.totalorder %s224, %s226
      %p230 = scmp.eq.s32.totalorder %s22, 0
      %p231 = por %p229, %p230
      %p232 = scmp.ne.s32.totalorder %s224, %s226
      %p233 = scmp.eq.s32.totalorder %s27, 1
      %p234 = por %p232, %p233
      %p235 = scmp.ne.s32.totalorder %s226, %s227
      %p236 = scmp.eq.s32.totalorder %s27, 0
      %p237 = por %p235, %p236
      %p238 = scmp.ne.s32.totalorder %s226, %s227
      %p239 = scmp.eq.s32.totalorder %s28, 1
      %p240 = por %p238, %p239
      %p242 = scmp.ne.s32.totalorder %s227, %s241
      %p243 = scmp.eq.s32.totalorder %s28, 0
      %p244 = por %p242, %p243
      %s246 = sadd.s32 %s245, 1
      %p249 = scmp.eq.s32.totalorder %s22, 1
      %p250 = scmp.ne.s32.totalorder %s245, %s247
      %p251 = scmp.eq.s32.totalorder %s22, 0
      %p252 = por %p250, %p251
      %p253 = scmp.ne.s32.totalorder %s245, %s247
      %p254 = scmp.eq.s32.totalorder %s27, 1
      %p255 = por %p253, %p254
      %p256 = scmp.ne.s32.totalorder %s247, %s248
      %p257 = scmp.eq.s32.totalorder %s27, 0
      %p258 = por %p256, %p257
      %p259 = scmp.ne.s32.totalorder %s247, %s248
      %p260 = scmp.eq.s32.totalorder %s28, 1
      %p261 = por %p259, %p260
      %p263 = scmp.ne.s32.totalorder %s248, %s262
      %p264 = scmp.eq.s32.totalorder %s28, 0
      %p265 = por %p263, %p264
      %s267 = sadd.s32 %s266, 1
      %p270 = scmp.eq.s32.totalorder %s22, 1
      %p271 = scmp.ne.s32.totalorder %s266, %s268
      %p272 = scmp.eq.s32.totalorder %s22, 0
      %p273 = por %p271, %p272
      %p274 = scmp.ne.s32.totalorder %s266, %s268
      %p275 = scmp.eq.s32.totalorder %s27, 1
      %p276 = por %p274, %p275
      %p277 = scmp.ne.s32.totalorder %s268, %s269
      %p278 = scmp.eq.s32.totalorder %s27, 0
      %p279 = por %p277, %p278
      %p280 = scmp.ne.s32.totalorder %s268, %s269
      %p281 = scmp.eq.s32.totalorder %s28, 1
      %p282 = por %p280, %p281
      %p284 = scmp.ne.s32.totalorder %s269, %s283
      %p285 = scmp.eq.s32.totalorder %s28, 0
      %p286 = por %p284, %p285
      %s288 = sadd.s32 %s287, 1
      %p291 = scmp.eq.s32.totalorder %s22, 1
      %p292 = scmp.ne.s32.totalorder %s287, %s289
      %p293 = scmp.eq.s32.totalorder %s22, 0
      %p294 = por %p292, %p293
      %p295 = scmp.ne.s32.totalorder %s287, %s289
      %p296 = scmp.eq.s32.totalorder %s27, 1
      %p297 = por %p295, %p296
      %p298 = scmp.ne.s32.totalorder %s289, %s290
      %p299 = scmp.eq.s32.totalorder %s27, 0
      %p300 = por %p298, %p299
      %p301 = scmp.ne.s32.totalorder %s289, %s290
      %p302 = scmp.eq.s32.totalorder %s28, 1
      %p303 = por %p301, %p302
      %p305 = scmp.ne.s32.totalorder %s290, %s304
      %p306 = scmp.eq.s32.totalorder %s28, 0
      %p307 = por %p305, %p306
      %s308 = ssub.s32 %s22, %s29
      %p309 = scmp.eq.s32.totalorder %s308, 0
      %s311 = sadd.s32 %s310, 1
      %s312 = scalar_select %p309, %s310, %s311
      %p315 = pneg %p309
      %p316 = scmp.eq.s32.totalorder %s22, 1
      %p317 = por %p315, %p316
      %p318 = scmp.ne.s32.totalorder %s310, %s313
      %p319 = scmp.eq.s32.totalorder %s22, 0
      %p320 = por %p318, %p319
      %p321 = scmp.ne.s32.totalorder %s310, %s313
      %p322 = scmp.eq.s32.totalorder %s27, 1
      %p323 = por %p321, %p322
      %p324 = scmp.ne.s32.totalorder %s313, %s314
      %p325 = scmp.eq.s32.totalorder %s27, 0
      %p326 = por %p324, %p325
      %p327 = scmp.ne.s32.totalorder %s313, %s314
      %p328 = scmp.eq.s32.totalorder %s28, 1
      %p329 = por %p327, %p328
      %p331 = scmp.ne.s32.totalorder %s314, %s330
      %p332 = scmp.eq.s32.totalorder %s28, 0
      %p333 = por %p331, %p332
      %p334 = scmp.le.s32.totalorder 1, %s22
      %p335 = scmp.lt.s32.totalorder %s22, 3
      %p336 = pnand %p334, %p335
      %p337 = pneg %p336
      // Predicated region
      $region9: #{tpu_custom_call.1} parent=5 // pred_check
        _
      $region10: #{tpu_custom_call.1} parent=5 // pred_check_branch
        %339 = sbr.rel (%p336) target = $region12
      $region11: #{tpu_custom_call.1} parent=5 // pred_region
        %s340 = ssub.s32 %s22, 1
        // Predicated region
        $region13: #{tpu_custom_call.1} parent=11 // pred_check
          %p341 = pneg %p69
        $region14: #{tpu_custom_call.1} parent=11 // pred_check_branch
          %343 = sbr.rel (%p341) target = $region16
        $region15: #{tpu_custom_call.1} parent=11 // pred_region
          _
        $region16: #{tpu_custom_call.1} parent=11 // pred_fallthru
          _
        // Predicated region
        $region17: #{tpu_custom_call.1} parent=11 // pred_check
          %p344 = pneg %p90
        $region18: #{tpu_custom_call.1} parent=11 // pred_check_branch
          %346 = sbr.rel (%p344) target = $region20
        $region19: #{tpu_custom_call.1} parent=11 // pred_region
          _
        $region20: #{tpu_custom_call.1} parent=11 // pred_fallthru
          _
        // Predicated region
        $region21: #{tpu_custom_call.1} parent=11 // pred_check
          %p347 = pneg %p111
        $region22: #{tpu_custom_call.1} parent=11 // pred_check_branch
          %349 = sbr.rel (%p347) target = $region24
        $region23: #{tpu_custom_call.1} parent=11 // pred_region
          _
        $region24: #{tpu_custom_call.1} parent=11 // pred_fallthru
          _
        // Predicated region
        $region25: #{tpu_custom_call.1} parent=11 // pred_check
          %p350 = pneg %p132
        $region26: #{tpu_custom_call.1} parent=11 // pred_check_branch
          %352 = sbr.rel (%p350) target = $region28
        $region27: #{tpu_custom_call.1} parent=11 // pred_region
          _
        $region28: #{tpu_custom_call.1} parent=11 // pred_fallthru
          _
        // Predicated region
        $region29: #{tpu_custom_call.1} parent=11 // pred_check
          %p353 = pneg %p153
        $region30: #{tpu_custom_call.1} parent=11 // pred_check_branch
          %355 = sbr.rel (%p353) target = $region32
        $region31: #{tpu_custom_call.1} parent=11 // pred_region
          _
        $region32: #{tpu_custom_call.1} parent=11 // pred_fallthru
          _
        // Predicated region
        $region33: #{tpu_custom_call.1} parent=11 // pred_check
          %p356 = pneg %p174
        $region34: #{tpu_custom_call.1} parent=11 // pred_check_branch
          %358 = sbr.rel (%p356) target = $region36
        $region35: #{tpu_custom_call.1} parent=11 // pred_region
          _
        $region36: #{tpu_custom_call.1} parent=11 // pred_fallthru
          _
        // Predicated region
        $region37: #{tpu_custom_call.1} parent=11 // pred_check
          %p359 = pneg %p195
        $region38: #{tpu_custom_call.1} parent=11 // pred_check_branch
          %361 = sbr.rel (%p359) target = $region40
        $region39: #{tpu_custom_call.1} parent=11 // pred_region
          _
        $region40: #{tpu_custom_call.1} parent=11 // pred_fallthru
          _
        // Predicated region
        $region41: #{tpu_custom_call.1} parent=11 // pred_check
          %p362 = pneg %p216
        $region42: #{tpu_custom_call.1} parent=11 // pred_check_branch
          %364 = sbr.rel (%p362) target = $region44
        $region43: #{tpu_custom_call.1} parent=11 // pred_region
          _
        $region44: #{tpu_custom_call.1} parent=11 // pred_fallthru
          _
        // Predicated region
        $region45: #{tpu_custom_call.1} parent=11 // pred_check
          %p365 = pneg %p237
        $region46: #{tpu_custom_call.1} parent=11 // pred_check_branch
          %367 = sbr.rel (%p365) target = $region48
        $region47: #{tpu_custom_call.1} parent=11 // pred_region
          _
        $region48: #{tpu_custom_call.1} parent=11 // pred_fallthru
          _
        // Predicated region
        $region49: #{tpu_custom_call.1} parent=11 // pred_check
          %p368 = pneg %p258
        $region50: #{tpu_custom_call.1} parent=11 // pred_check_branch
          %370 = sbr.rel (%p368) target = $region52
        $region51: #{tpu_custom_call.1} parent=11 // pred_region
          _
        $region52: #{tpu_custom_call.1} parent=11 // pred_fallthru
          _
        // Predicated region
        $region53: #{tpu_custom_call.1} parent=11 // pred_check
          %p371 = pneg %p279
        $region54: #{tpu_custom_call.1} parent=11 // pred_check_branch
          %373 = sbr.rel (%p371) target = $region56
        $region55: #{tpu_custom_call.1} parent=11 // pred_region
          _
        $region56: #{tpu_custom_call.1} parent=11 // pred_fallthru
          _
        // Predicated region
        $region57: #{tpu_custom_call.1} parent=11 // pred_check
          %p374 = pneg %p300
        $region58: #{tpu_custom_call.1} parent=11 // pred_check_branch
          %376 = sbr.rel (%p374) target = $region60
        $region59: #{tpu_custom_call.1} parent=11 // pred_region
          _
        $region60: #{tpu_custom_call.1} parent=11 // pred_fallthru
          _
      $region12: #{tpu_custom_call.1} parent=5 // pred_fallthru
        _
      %p377 = scmp.lt.s32.totalorder %s22, 2
      // Predicated region
      $region61: #{tpu_custom_call.1} parent=5 // pred_check
        %p378 = pneg %p377
      $region62: #{tpu_custom_call.1} parent=5 // pred_check_branch
        %380 = sbr.rel (%p378) target = $region64
      $region63: #{tpu_custom_call.1} parent=5 // pred_region
        // Predicated region
        $region65: #{tpu_custom_call.1} parent=63 // pred_check
          %p381 = pneg %p42
        $region66: #{tpu_custom_call.1} parent=63 // pred_check_branch
          %383 = sbr.rel (%p381) target = $region68
        $region67: #{tpu_custom_call.1} parent=63 // pred_region
          %p384 = scmp.lt.s32.totalorder %s22, 1
          %s385 = scalar_select %p384, %s22, 1
          %s386 = smul.addr %s385, 8
          %s387 = scalar_lea.vmem %s0, %s386
        $region68: #{tpu_custom_call.1} parent=63 // pred_fallthru
          _
      $region64: #{tpu_custom_call.1} parent=5 // pred_fallthru
        _
      %p388 = scmp.le.s32.totalorder 1, %s22
      %p389 = scmp.lt.s32.totalorder %s22, 3
      %p390 = pnand %p388, %p389
      %p391 = pneg %p390
      // Predicated region
      $region69: #{tpu_custom_call.1} parent=5 // pred_check
        _
      $region70: #{tpu_custom_call.1} parent=5 // pred_check_branch
        %393 = sbr.rel (%p390) target = $region72
      $region71: #{tpu_custom_call.1} parent=5 // pred_region
        %s394 = ssub.s32 %s22, 1
        %p395 = scmp.lt.s32.totalorder %s27, 1
        %s396 = scalar_select %p395, %s27, 1
        %s397 = smul.addr %s396, 8
        %s398 = scalar_lea.vmem %s0, %s397
        %p399 = pneg %p48
        %p400 = pneg %p45
        %p401 = pneg %p69
        %p402 = pneg %p66
        %p403 = pneg %p90
        %p404 = pneg %p87
        %p405 = pneg %p111
        %p406 = pneg %p108
        %p407 = pneg %p132
        %p408 = pneg %p129
        %p409 = pneg %p153
        %p410 = pneg %p150
        %p411 = pneg %p174
        %p412 = pneg %p171
        %p413 = pneg %p195
        %p414 = pneg %p192
        %p415 = pneg %p216
        %p416 = pneg %p213
        %p417 = pneg %p237
        %p418 = pneg %p234
        %p419 = pneg %p258
        %p420 = pneg %p255
        %p421 = pneg %p279
        %p422 = pneg %p276
        %p423 = pneg %p300
        %p424 = pneg %p297
        %p425 = pneg %p326
        %p426 = pneg %p323
        %s427 = sand.u32 %s313, 1
        %s428 = scalar_lea.sflag [#allocation3], %s427
        %s429 = sand.u32 %s313, 1
        %s430 = smul.addr %s429, 8
        %s431 = scalar_lea.vmem [#allocation2], %s430
        %p432 = scmp.lt.s32.totalorder %s27, 1
        %s433 = scalar_select %p432, %s27, 1
        %s434 = smul.addr %s433, 8
        %s435 = scalar_lea.vmem %s0, %s434
        %v437 = vld [vmem:[%s435] sm:$0xff]
        %vm438 = vcmask 261120
        %v439 = vsel %vm438, %v437, 0.0
        %440 = vadd.xlane.f32.xlu0 %v439
        %v441 = vpop.xlane.xlu0 %440
        %v442 = vrcp.pop 32.0
        %v443 = vmul.f32 %v441, %v442
        %v444 = vmul.f32 %v437, %v437
        %v445 = vsel %vm438, %v444, 0.0
        %446 = vadd.xlane.f32.xlu0 %v445
        %v447 = vpop.xlane.xlu0 %446
        %v448 = vmul.f32 %v447, %v442
        %v449 = vsub.f32 %v437, %v443
        %v450 = vmul.f32 %v443, %v443
        %v451 = vsub.f32 %v448, %v450
        %v452 = vadd.f32 %v451, 1e-05
        %v453 = vrsqrt.pop %v452
        %v454 = vmul.f32 %v449, %v453
        %v455 = vpack.c.bf16 %v454, %v454
        %v456 = vld [vmem:[%s1] sm:$0xf]
        %v457 = vld [vmem:[%s1 + $0x4] sm:$0xf]
        %v458 = vld [vmem:[%s1 + $0x8] sm:$0xf]
        %v459 = vld [vmem:[%s1 + $0xc] sm:$0xf]
        %v460 = vld [vmem:[%s2] sm:$0x1]
        %v462 = vlaneseq
        %v463 = vshrl.u32 %v462, 7
        %v464 = vsub.s32 0, %v463
        %v465 = vrot.slane %v460, %v464
        %v471 = vunpack.c.l.b16 %v456
        %v472 = vunpack.c.l.b16 %v457
        %v473 = vunpack.c.l.b16 %v458
        %v474 = vunpack.c.l.b16 %v459
        %v475 = vpack.c.b16 %v472, %v471
        %v476 = vpack.c.b16 %v474, %v473
        %v480 = vsel %vm438, %v455, 0
        %482 = vmatprep.subr.bf16.mxu0 0
        %483 = vmatpush1.bf16.msra.mxu0 0
        %484 = vmatprep.subr.bf16.mxu0 0
        %485 = vmatpush1.bf16.msra.mxu0 0
        %486 = vmatprep.subr.bf16.mxu0 0
        %487 = vmatpush1.bf16.msra.mxu0 0
        %488 = vmatprep.subr.bf16.mxu0 0
        %489 = vmatpush1.bf16.msra.mxu0 0
        %490 = vmatprep.subr.bf16.mxu0 0
        %491 = vmatpush1.bf16.msra.mxu0 0
        %492 = vmatprep.subr.bf16.mxu0 0
        %493 = vmatpush1.bf16.msra.mxu0 0
        %494 = vmatprep.subr.bf16.mxu0 0
        %495 = vmatpush1.bf16.msra.mxu0 %v476
        %496 = vmatprep.subr.bf16.mxu0 0
        %497 = vmatpush1.bf16.msra.mxu0 %v475
        %498 = vmatprep.subr.bf16.mxu0 0
        %499 = vmatpush2.bf16.msra.mxu0 0
        %500 = vmatprep.subr.bf16.mxu0 0
        %501 = vmatpush2.bf16.msra.mxu0 0
        %502 = vmatprep.subr.bf16.mxu0 0
        %503 = vmatpush2.bf16.msra.mxu0 0
        %504 = vmatprep.subr.bf16.mxu0 0
        %505 = vmatpush2.bf16.msra.mxu0 0
        %506 = vmatprep.subr.bf16.mxu0 0
        %507 = vmatpush2.bf16.msra.mxu0 0
        %508 = vmatprep.subr.bf16.mxu0 0
        %509 = vmatpush2.bf16.msra.mxu0 0
        %510 = vmatprep.subr.bf16.mxu0 0
        %511 = vmatpush2.bf16.msra.mxu0 0
        %512 = vmatprep.subr.bf16.mxu0 0
        %513 = vmatpush2.bf16.msra.mxu0 0
        %514 = vmatprep.mubr.bf16.mxu0 0
        %515 = vmatmul.mubr.bf16.gmra.mxu0 %v480
        %v516 = vpop.f32.mrf.mxu0
        %v517 = vadd.f32 %v465, %v516
        %v518 = vpop.f32.mrf.mxu0
        %v519 = vpop.f32.mrf.mxu0
        %v520 = vpop.f32.mrf.mxu0
        %521 = vdwg.mxu0
        %523 = vrot.lane.b32.xlu0 %v517, 120
        %v524 = vpop.permute.xlu0 %523
        %526 = vrot.lane.b32.xlu0 %v517, 112
        %v527 = vpop.permute.xlu0 %526
        %529 = vrot.lane.b32.xlu0 %v517, 104
        %v530 = vpop.permute.xlu0 %529
        %v532 = vpack.c.bf16 %v517, %v517
        %v533 = vpack.c.bf16 %v524, %v524
        %v534 = vpack.c.bf16 %v527, %v527
        %v535 = vpack.c.bf16 %v530, %v530
        %537 = vrot.lane.b32.xlu0 %v532, 96
        %v538 = vpop.permute.xlu0 %537
        %vm539 = vcmask 64512
        %v541 = vsel %vm539, %v532, 0
        %v544 = vsel %vm539, %v538, 0
        %546 = vmatprep.subr.bf16.mxu0 0
        %547 = vmatpush1.bf16.xpose.msra.mxu0 0
        %548 = vmatprep.subr.bf16.mxu0 0
        %549 = vmatpush1.bf16.xpose.msra.mxu0 0
        %550 = vmatprep.subr.bf16.mxu0 0
        %551 = vmatpush1.bf16.xpose.msra.mxu0 0
        %552 = vmatprep.subr.bf16.mxu0 0
        %553 = vmatpush1.bf16.xpose.msra.mxu0 0
        %554 = vmatprep.subr.bf16.mxu0 0
        %555 = vmatpush1.bf16.xpose.msra.mxu0 0
        %556 = vmatprep.subr.bf16.mxu0 0
        %557 = vmatpush1.bf16.xpose.msra.mxu0 0
        %558 = vmatprep.subr.bf16.mxu0 0
        %559 = vmatpush1.bf16.xpose.msra.mxu0 0
        %560 = vmatprep.subr.bf16.mxu0 0
        %561 = vmatpush1.bf16.xpose.msra.mxu0 %v544
        %562 = vmatprep.subr.bf16.mxu0 0
        %563 = vmatpush2.bf16.xpose.msra.mxu0 0
        %564 = vmatprep.subr.bf16.mxu0 0
        %565 = vmatpush2.bf16.xpose.msra.mxu0 0
        %566 = vmatprep.subr.bf16.mxu0 0
        %567 = vmatpush2.bf16.xpose.msra.mxu0 0
        %568 = vmatprep.subr.bf16.mxu0 0
        %569 = vmatpush2.bf16.xpose.msra.mxu0 0
        %570 = vmatprep.subr.bf16.mxu0 0
        %571 = vmatpush2.bf16.xpose.msra.mxu0 0
        %572 = vmatprep.subr.bf16.mxu0 0
        %573 = vmatpush2.bf16.xpose.msra.mxu0 0
        %574 = vmatprep.subr.bf16.mxu0 0
        %575 = vmatpush2.bf16.xpose.msra.mxu0 0
        %576 = vmatprep.subr.bf16.mxu0 0
        %577 = vmatpush2.bf16.xpose.msra.mxu0 0
        %578 = vmatprep.mubr.bf16.mxu0 0
        %579 = vmatmul.mubr.bf16.gmra.mxu0 %v541
        %v580 = vpop.f32.mrf.mxu0
        %v581 = vadd.f32 0.0, %v580
        %v582 = vpop.f32.mrf.mxu0
        %v583 = vpop.f32.mrf.mxu0
        %v584 = vpop.f32.mrf.mxu0
        %585 = vdwg.mxu0
        %587 = vrot.lane.b32.xlu0 %v533, 96
        %v588 = vpop.permute.xlu0 %587
        %v590 = vsel %vm539, %v533, 0
        %v593 = vsel %vm539, %v588, 0
        %595 = vmatprep.subr.bf16.mxu0 0
        %596 = vmatpush1.bf16.xpose.msra.mxu0 0
        %597 = vmatprep.subr.bf16.mxu0 0
        %598 = vmatpush1.bf16.xpose.msra.mxu0 0
        %599 = vmatprep.subr.bf16.mxu0 0
        %600 = vmatpush1.bf16.xpose.msra.mxu0 0
        %601 = vmatprep.subr.bf16.mxu0 0
        %602 = vmatpush1.bf16.xpose.msra.mxu0 0
        %603 = vmatprep.subr.bf16.mxu0 0
        %604 = vmatpush1.bf16.xpose.msra.mxu0 0
        %605 = vmatprep.subr.bf16.mxu0 0
        %606 = vmatpush1.bf16.xpose.msra.mxu0 0
        %607 = vmatprep.subr.bf16.mxu0 0
        %608 = vmatpush1.bf16.xpose.msra.mxu0 0
        %609 = vmatprep.subr.bf16.mxu0 0
        %610 = vmatpush1.bf16.xpose.msra.mxu0 %v593
        %611 = vmatprep.subr.bf16.mxu0 0
        %612 = vmatpush2.bf16.xpose.msra.mxu0 0
        %613 = vmatprep.subr.bf16.mxu0 0
        %614 = vmatpush2.bf16.xpose.msra.mxu0 0
        %615 = vmatprep.subr.bf16.mxu0 0
        %616 = vmatpush2.bf16.xpose.msra.mxu0 0
        %617 = vmatprep.subr.bf16.mxu0 0
        %618 = vmatpush2.bf16.xpose.msra.mxu0 0
        %619 = vmatprep.subr.bf16.mxu0 0
        %620 = vmatpush2.bf16.xpose.msra.mxu0 0
        %621 = vmatprep.subr.bf16.mxu0 0
        %622 = vmatpush2.bf16.xpose.msra.mxu0 0
        %623 = vmatprep.subr.bf16.mxu0 0
        %624 = vmatpush2.bf16.xpose.msra.mxu0 0
        %625 = vmatprep.subr.bf16.mxu0 0
        %626 = vmatpush2.bf16.xpose.msra.mxu0 0
        %627 = vmatprep.mubr.bf16.mxu0 0
        %628 = vmatmul.mubr.bf16.gmra.mxu0 %v590
        %v629 = vpop.f32.mrf.mxu0
        %v630 = vadd.f32 0.0, %v629
        %v631 = vpop.f32.mrf.mxu0
        %v632 = vpop.f32.mrf.mxu0
        %v633 = vpop.f32.mrf.mxu0
        %634 = vdwg.mxu0
        %636 = vrot.lane.b32.xlu0 %v534, 96
        %v637 = vpop.permute.xlu0 %636
        %v639 = vsel %vm539, %v534, 0
        %v642 = vsel %vm539, %v637, 0
        %644 = vmatprep.subr.bf16.mxu0 0
        %645 = vmatpush1.bf16.xpose.msra.mxu0 0
        %646 = vmatprep.subr.bf16.mxu0 0
        %647 = vmatpush1.bf16.xpose.msra.mxu0 0
        %648 = vmatprep.subr.bf16.mxu0 0
        %649 = vmatpush1.bf16.xpose.msra.mxu0 0
        %650 = vmatprep.subr.bf16.mxu0 0
        %651 = vmatpush1.bf16.xpose.msra.mxu0 0
        %652 = vmatprep.subr.bf16.mxu0 0
        %653 = vmatpush1.bf16.xpose.msra.mxu0 0
        %654 = vmatprep.subr.bf16.mxu0 0
        %655 = vmatpush1.bf16.xpose.msra.mxu0 0
        %656 = vmatprep.subr.bf16.mxu0 0
        %657 = vmatpush1.bf16.xpose.msra.mxu0 0
        %658 = vmatprep.subr.bf16.mxu0 0
        %659 = vmatpush1.bf16.xpose.msra.mxu0 %v642
        %660 = vmatprep.subr.bf16.mxu0 0
        %661 = vmatpush2.bf16.xpose.msra.mxu0 0
        %662 = vmatprep.subr.bf16.mxu0 0
        %663 = vmatpush2.bf16.xpose.msra.mxu0 0
        %664 = vmatprep.subr.bf16.mxu0 0
        %665 = vmatpush2.bf16.xpose.msra.mxu0 0
        %666 = vmatprep.subr.bf16.mxu0 0
        %667 = vmatpush2.bf16.xpose.msra.mxu0 0
        %668 = vmatprep.subr.bf16.mxu0 0
        %669 = vmatpush2.bf16.xpose.msra.mxu0 0
        %670 = vmatprep.subr.bf16.mxu0 0
        %671 = vmatpush2.bf16.xpose.msra.mxu0 0
        %672 = vmatprep.subr.bf16.mxu0 0
        %673 = vmatpush2.bf16.xpose.msra.mxu0 0
        %674 = vmatprep.subr.bf16.mxu0 0
        %675 = vmatpush2.bf16.xpose.msra.mxu0 0
        %676 = vmatprep.mubr.bf16.mxu0 0
        %677 = vmatmul.mubr.bf16.gmra.mxu0 %v639
        %v678 = vpop.f32.mrf.mxu0
        %v679 = vadd.f32 0.0, %v678
        %v680 = vpop.f32.mrf.mxu0
        %v681 = vpop.f32.mrf.mxu0
        %v682 = vpop.f32.mrf.mxu0
        %683 = vdwg.mxu0
        %685 = vrot.lane.b32.xlu0 %v535, 96
        %v686 = vpop.permute.xlu0 %685
        %v688 = vsel %vm539, %v535, 0
        %v691 = vsel %vm539, %v686, 0
        %693 = vmatprep.subr.bf16.mxu0 0
        %694 = vmatpush1.bf16.xpose.msra.mxu0 0
        %695 = vmatprep.subr.bf16.mxu0 0
        %696 = vmatpush1.bf16.xpose.msra.mxu0 0
        %697 = vmatprep.subr.bf16.mxu0 0
        %698 = vmatpush1.bf16.xpose.msra.mxu0 0
        %699 = vmatprep.subr.bf16.mxu0 0
        %700 = vmatpush1.bf16.xpose.msra.mxu0 0
        %701 = vmatprep.subr.bf16.mxu0 0
        %702 = vmatpush1.bf16.xpose.msra.mxu0 0
        %703 = vmatprep.subr.bf16.mxu0 0
        %704 = vmatpush1.bf16.xpose.msra.mxu0 0
        %705 = vmatprep.subr.bf16.mxu0 0
        %706 = vmatpush1.bf16.xpose.msra.mxu0 0
        %707 = vmatprep.subr.bf16.mxu0 0
        %708 = vmatpush1.bf16.xpose.msra.mxu0 %v691
        %709 = vmatprep.subr.bf16.mxu0 0
        %710 = vmatpush2.bf16.xpose.msra.mxu0 0
        %711 = vmatprep.subr.bf16.mxu0 0
        %712 = vmatpush2.bf16.xpose.msra.mxu0 0
        %713 = vmatprep.subr.bf16.mxu0 0
        %714 = vmatpush2.bf16.xpose.msra.mxu0 0
        %715 = vmatprep.subr.bf16.mxu0 0
        %716 = vmatpush2.bf16.xpose.msra.mxu0 0
        %717 = vmatprep.subr.bf16.mxu0 0
        %718 = vmatpush2.bf16.xpose.msra.mxu0 0
        %719 = vmatprep.subr.bf16.mxu0 0
        %720 = vmatpush2.bf16.xpose.msra.mxu0 0
        %721 = vmatprep.subr.bf16.mxu0 0
        %722 = vmatpush2.bf16.xpose.msra.mxu0 0
        %723 = vmatprep.subr.bf16.mxu0 0
        %724 = vmatpush2.bf16.xpose.msra.mxu0 0
        %725 = vmatprep.mubr.bf16.mxu0 0
        %726 = vmatmul.mubr.bf16.gmra.mxu0 %v688
        %v727 = vpop.f32.mrf.mxu0
        %v728 = vadd.f32 0.0, %v727
        %v729 = vpop.f32.mrf.mxu0
        %v730 = vpop.f32.mrf.mxu0
        %v731 = vpop.f32.mrf.mxu0
        %732 = vdwg.mxu0
        %v733 = vsel %vm539, %v581, -inf
        %734 = vmax.xlane.f32.xlu0 %v733
        %v735 = vpop.xlane.xlu0 %734
        %v736 = vsel %vm539, %v630, -inf
        %737 = vmax.xlane.f32.xlu0 %v736
        %v738 = vpop.xlane.xlu0 %737
        %v739 = vsel %vm539, %v679, -inf
        %740 = vmax.xlane.f32.xlu0 %v739
        %v741 = vpop.xlane.xlu0 %740
        %v742 = vsel %vm539, %v728, -inf
        %743 = vmax.xlane.f32.xlu0 %v742
        %v744 = vpop.xlane.xlu0 %743
        %v745 = vsub.f32 %v581, %v735
        %v746 = vsub.f32 %v630, %v738
        %v747 = vsub.f32 %v679, %v741
        %v748 = vsub.f32 %v728, %v744
        %v749 = vmul.f32 %v745, 1.442695
        %v750 = vpow.pop %v749
        %v751 = vmul.f32 %v746, 1.442695
        %v752 = vpow.pop %v751
        %v753 = vmul.f32 %v747, 1.442695
        %v754 = vpow.pop %v753
        %v755 = vmul.f32 %v748, 1.442695
        %v756 = vpow.pop %v755
        %v757 = vsel %vm539, %v750, 0.0
        %758 = vadd.xlane.f32.xlu0 %v757
        %v759 = vpop.xlane.xlu0 %758
        %v760 = vsel %vm539, %v752, 0.0
        %761 = vadd.xlane.f32.xlu0 %v760
        %v762 = vpop.xlane.xlu0 %761
        %v763 = vsel %vm539, %v754, 0.0
        %764 = vadd.xlane.f32.xlu0 %v763
        %v765 = vpop.xlane.xlu0 %764
        %v766 = vsel %vm539, %v756, 0.0
        %767 = vadd.xlane.f32.xlu0 %v766
        %v768 = vpop.xlane.xlu0 %767
        %v769 = vrcp.pop %v759
        %v770 = vrcp.pop %v762
        %v771 = vrcp.pop %v765
        %v772 = vrcp.pop %v768
        %v773 = vmul.f32 %v750, %v769
        %v774 = vmul.f32 %v752, %v770
        %v775 = vmul.f32 %v754, %v771
        %v776 = vmul.f32 %v756, %v772
        %v777 = vpack.c.bf16 %v773, %v773
        %v778 = vpack.c.bf16 %v774, %v774
        %v779 = vpack.c.bf16 %v775, %v775
        %v780 = vpack.c.bf16 %v776, %v776
        %781 = vrot.lane.b32.xlu0 %v532, 64
        %v782 = vpop.permute.xlu0 %781
        %v784 = vsel %vm539, %v777, 0
        %vm786 = vcmask 1043456
        %v788 = vsel %vm786, %v782, 0
        %790 = vmatprep.subr.bf16.mxu0 0
        %791 = vmatpush1.bf16.msra.mxu0 0
        %792 = vmatprep.subr.bf16.mxu0 0
        %793 = vmatpush1.bf16.msra.mxu0 0
        %794 = vmatprep.subr.bf16.mxu0 0
        %795 = vmatpush1.bf16.msra.mxu0 0
        %796 = vmatprep.subr.bf16.mxu0 0
        %797 = vmatpush1.bf16.msra.mxu0 0
        %798 = vmatprep.subr.bf16.mxu0 0
        %799 = vmatpush1.bf16.msra.mxu0 0
        %800 = vmatprep.subr.bf16.mxu0 0
        %801 = vmatpush1.bf16.msra.mxu0 0
        %802 = vmatprep.subr.bf16.mxu0 0
        %803 = vmatpush1.bf16.msra.mxu0 0
        %804 = vmatprep.subr.bf16.mxu0 0
        %805 = vmatpush1.bf16.msra.mxu0 %v788
        %806 = vmatprep.subr.bf16.mxu0 0
        %807 = vmatpush2.bf16.msra.mxu0 0
        %808 = vmatprep.subr.bf16.mxu0 0
        %809 = vmatpush2.bf16.msra.mxu0 0
        %810 = vmatprep.subr.bf16.mxu0 0
        %811 = vmatpush2.bf16.msra.mxu0 0
        %812 = vmatprep.subr.bf16.mxu0 0
        %813 = vmatpush2.bf16.msra.mxu0 0
        %814 = vmatprep.subr.bf16.mxu0 0
        %815 = vmatpush2.bf16.msra.mxu0 0
        %816 = vmatprep.subr.bf16.mxu0 0
        %817 = vmatpush2.bf16.msra.mxu0 0
        %818 = vmatprep.subr.bf16.mxu0 0
        %819 = vmatpush2.bf16.msra.mxu0 0
        %820 = vmatprep.subr.bf16.mxu0 0
        %821 = vmatpush2.bf16.msra.mxu0 0
        %822 = vmatprep.mubr.bf16.mxu0 0
        %823 = vmatmul.mubr.bf16.gmra.mxu0 %v784
        %v824 = vpop.f32.mrf.mxu0
        %v825 = vadd.f32 0.0, %v824
        %v826 = vpop.f32.mrf.mxu0
        %v827 = vpop.f32.mrf.mxu0
        %v828 = vpop.f32.mrf.mxu0
        %829 = vdwg.mxu0
        %830 = vrot.lane.b32.xlu0 %v533, 64
        %v831 = vpop.permute.xlu0 %830
        %v833 = vsel %vm539, %v778, 0
        %v836 = vsel %vm786, %v831, 0
        %838 = vmatprep.subr.bf16.mxu0 0
        %839 = vmatpush1.bf16.msra.mxu0 0
        %840 = vmatprep.subr.bf16.mxu0 0
        %841 = vmatpush1.bf16.msra.mxu0 0
        %842 = vmatprep.subr.bf16.mxu0 0
        %843 = vmatpush1.bf16.msra.mxu0 0
        %844 = vmatprep.subr.bf16.mxu0 0
        %845 = vmatpush1.bf16.msra.mxu0 0
        %846 = vmatprep.subr.bf16.mxu0 0
        %847 = vmatpush1.bf16.msra.mxu0 0
        %848 = vmatprep.subr.bf16.mxu0 0
        %849 = vmatpush1.bf16.msra.mxu0 0
        %850 = vmatprep.subr.bf16.mxu0 0
        %851 = vmatpush1.bf16.msra.mxu0 0
        %852 = vmatprep.subr.bf16.mxu0 0
        %853 = vmatpush1.bf16.msra.mxu0 %v836
        %854 = vmatprep.subr.bf16.mxu0 0
        %855 = vmatpush2.bf16.msra.mxu0 0
        %856 = vmatprep.subr.bf16.mxu0 0
        %857 = vmatpush2.bf16.msra.mxu0 0
        %858 = vmatprep.subr.bf16.mxu0 0
        %859 = vmatpush2.bf16.msra.mxu0 0
        %860 = vmatprep.subr.bf16.mxu0 0
        %861 = vmatpush2.bf16.msra.mxu0 0
        %862 = vmatprep.subr.bf16.mxu0 0
        %863 = vmatpush2.bf16.msra.mxu0 0
        %864 = vmatprep.subr.bf16.mxu0 0
        %865 = vmatpush2.bf16.msra.mxu0 0
        %866 = vmatprep.subr.bf16.mxu0 0
        %867 = vmatpush2.bf16.msra.mxu0 0
        %868 = vmatprep.subr.bf16.mxu0 0
        %869 = vmatpush2.bf16.msra.mxu0 0
        %870 = vmatprep.mubr.bf16.mxu0 0
        %871 = vmatmul.mubr.bf16.gmra.mxu0 %v833
        %v872 = vpop.f32.mrf.mxu0
        %v873 = vadd.f32 0.0, %v872
        %v874 = vpop.f32.mrf.mxu0
        %v875 = vpop.f32.mrf.mxu0
        %v876 = vpop.f32.mrf.mxu0
        %877 = vdwg.mxu0
        %878 = vrot.lane.b32.xlu0 %v534, 64
        %v879 = vpop.permute.xlu0 %878
        %v881 = vsel %vm539, %v779, 0
        %v884 = vsel %vm786, %v879, 0
        %886 = vmatprep.subr.bf16.mxu0 0
        %887 = vmatpush1.bf16.msra.mxu0 0
        %888 = vmatprep.subr.bf16.mxu0 0
        %889 = vmatpush1.bf16.msra.mxu0 0
        %890 = vmatprep.subr.bf16.mxu0 0
        %891 = vmatpush1.bf16.msra.mxu0 0
        %892 = vmatprep.subr.bf16.mxu0 0
        %893 = vmatpush1.bf16.msra.mxu0 0
        %894 = vmatprep.subr.bf16.mxu0 0
        %895 = vmatpush1.bf16.msra.mxu0 0
        %896 = vmatprep.subr.bf16.mxu0 0
        %897 = vmatpush1.bf16.msra.mxu0 0
        %898 = vmatprep.subr.bf16.mxu0 0
        %899 = vmatpush1.bf16.msra.mxu0 0
        %900 = vmatprep.subr.bf16.mxu0 0
        %901 = vmatpush1.bf16.msra.mxu0 %v884
        %902 = vmatprep.subr.bf16.mxu0 0
        %903 = vmatpush2.bf16.msra.mxu0 0
        %904 = vmatprep.subr.bf16.mxu0 0
        %905 = vmatpush2.bf16.msra.mxu0 0
        %906 = vmatprep.subr.bf16.mxu0 0
        %907 = vmatpush2.bf16.msra.mxu0 0
        %908 = vmatprep.subr.bf16.mxu0 0
        %909 = vmatpush2.bf16.msra.mxu0 0
        %910 = vmatprep.subr.bf16.mxu0 0
        %911 = vmatpush2.bf16.msra.mxu0 0
        %912 = vmatprep.subr.bf16.mxu0 0
        %913 = vmatpush2.bf16.msra.mxu0 0
        %914 = vmatprep.subr.bf16.mxu0 0
        %915 = vmatpush2.bf16.msra.mxu0 0
        %916 = vmatprep.subr.bf16.mxu0 0
        %917 = vmatpush2.bf16.msra.mxu0 0
        %918 = vmatprep.mubr.bf16.mxu0 0
        %919 = vmatmul.mubr.bf16.gmra.mxu0 %v881
        %v920 = vpop.f32.mrf.mxu0
        %v921 = vadd.f32 0.0, %v920
        %v922 = vpop.f32.mrf.mxu0
        %v923 = vpop.f32.mrf.mxu0
        %v924 = vpop.f32.mrf.mxu0
        %925 = vdwg.mxu0
        %926 = vrot.lane.b32.xlu0 %v535, 64
        %v927 = vpop.permute.xlu0 %926
        %v929 = vsel %vm539, %v780, 0
        %v932 = vsel %vm786, %v927, 0
        %934 = vmatprep.subr.bf16.mxu0 0
        %935 = vmatpush1.bf16.msra.mxu0 0
        %936 = vmatprep.subr.bf16.mxu0 0
        %937 = vmatpush1.bf16.msra.mxu0 0
        %938 = vmatprep.subr.bf16.mxu0 0
        %939 = vmatpush1.bf16.msra.mxu0 0
        %940 = vmatprep.subr.bf16.mxu0 0
        %941 = vmatpush1.bf16.msra.mxu0 0
        %942 = vmatprep.subr.bf16.mxu0 0
        %943 = vmatpush1.bf16.msra.mxu0 0
        %944 = vmatprep.subr.bf16.mxu0 0
        %945 = vmatpush1.bf16.msra.mxu0 0
        %946 = vmatprep.subr.bf16.mxu0 0
        %947 = vmatpush1.bf16.msra.mxu0 0
        %948 = vmatprep.subr.bf16.mxu0 0
        %949 = vmatpush1.bf16.msra.mxu0 %v932
        %950 = vmatprep.subr.bf16.mxu0 0
        %951 = vmatpush2.bf16.msra.mxu0 0
        %952 = vmatprep.subr.bf16.mxu0 0
        %953 = vmatpush2.bf16.msra.mxu0 0
        %954 = vmatprep.subr.bf16.mxu0 0
        %955 = vmatpush2.bf16.msra.mxu0 0
        %956 = vmatprep.subr.bf16.mxu0 0
        %957 = vmatpush2.bf16.msra.mxu0 0
        %958 = vmatprep.subr.bf16.mxu0 0
        %959 = vmatpush2.bf16.msra.mxu0 0
        %960 = vmatprep.subr.bf16.mxu0 0
        %961 = vmatpush2.bf16.msra.mxu0 0
        %962 = vmatprep.subr.bf16.mxu0 0
        %963 = vmatpush2.bf16.msra.mxu0 0
        %964 = vmatprep.subr.bf16.mxu0 0
        %965 = vmatpush2.bf16.msra.mxu0 0
        %966 = vmatprep.mubr.bf16.mxu0 0
        %967 = vmatmul.mubr.bf16.gmra.mxu0 %v929
        %v968 = vpop.f32.mrf.mxu0
        %v969 = vadd.f32 0.0, %v968
        %v970 = vpop.f32.mrf.mxu0
        %v971 = vpop.f32.mrf.mxu0
        %v972 = vpop.f32.mrf.mxu0
        %973 = vdwg.mxu0
        %975 = vrot.lane.b32.xlu0 %v873, 8
        %v976 = vpop.permute.xlu0 %975
        %979 = vrot.lane.b32.xlu0 %v921, 16
        %v980 = vpop.permute.xlu0 %979
        %983 = vrot.lane.b32.xlu0 %v969, 24
        %v984 = vpop.permute.xlu0 %983
        %v986 = vsel %vm539, %v825, %v976
        %vm987 = vcmask 130048
        %v988 = vsel %vm987, %v986, %v980
        %vm989 = vcmask 195584
        %v990 = vsel %vm989, %v988, %v984
        %v991 = vpack.c.bf16 %v990, %v990
        %v992 = vld [vmem:[%s3] sm:$0xf]
        %v993 = vld [vmem:[%s3 + $0x4] sm:$0xf]
        %v994 = vld [vmem:[%s3 + $0x8] sm:$0xf]
        %v995 = vld [vmem:[%s3 + $0xc] sm:$0xf]
        %v996 = vld [vmem:[%s4] sm:$0x1]
        %v998 = vlaneseq
        %v999 = vshrl.u32 %v998, 7
        %v1000 = vsub.s32 0, %v999
        %v1001 = vrot.slane %v996, %v1000
        %v1007 = vunpack.c.l.b16 %v992
        %v1008 = vunpack.c.l.b16 %v993
        %v1009 = vunpack.c.l.b16 %v994
        %v1010 = vunpack.c.l.b16 %v995
        %v1011 = vpack.c.b16 %v1008, %v1007
        %v1012 = vpack.c.b16 %v1010, %v1009
        %v1016 = vsel %vm438, %v991, 0
        %1018 = vmatprep.subr.bf16.mxu0 0
        %1019 = vmatpush1.bf16.msra.mxu0 0
        %1020 = vmatprep.subr.bf16.mxu0 0
        %1021 = vmatpush1.bf16.msra.mxu0 0
        %1022 = vmatprep.subr.bf16.mxu0 0
        %1023 = vmatpush1.bf16.msra.mxu0 0
        %1024 = vmatprep.subr.bf16.mxu0 0
        %1025 = vmatpush1.bf16.msra.mxu0 0
        %1026 = vmatprep.subr.bf16.mxu0 0
        %1027 = vmatpush1.bf16.msra.mxu0 0
        %1028 = vmatprep.subr.bf16.mxu0 0
        %1029 = vmatpush1.bf16.msra.mxu0 0
        %1030 = vmatprep.subr.bf16.mxu0 0
        %1031 = vmatpush1.bf16.msra.mxu0 %v1012
        %1032 = vmatprep.subr.bf16.mxu0 0
        %1033 = vmatpush1.bf16.msra.mxu0 %v1011
        %1034 = vmatprep.subr.bf16.mxu0 0
        %1035 = vmatpush2.bf16.msra.mxu0 0
        %1036 = vmatprep.subr.bf16.mxu0 0
        %1037 = vmatpush2.bf16.msra.mxu0 0
        %1038 = vmatprep.subr.bf16.mxu0 0
        %1039 = vmatpush2.bf16.msra.mxu0 0
        %1040 = vmatprep.subr.bf16.mxu0 0
        %1041 = vmatpush2.bf16.msra.mxu0 0
        %1042 = vmatprep.subr.bf16.mxu0 0
        %1043 = vmatpush2.bf16.msra.mxu0 0
        %1044 = vmatprep.subr.bf16.mxu0 0
        %1045 = vmatpush2.bf16.msra.mxu0 0
        %1046 = vmatprep.subr.bf16.mxu0 0
        %1047 = vmatpush2.bf16.msra.mxu0 0
        %1048 = vmatprep.subr.bf16.mxu0 0
        %1049 = vmatpush2.bf16.msra.mxu0 0
        %1050 = vmatprep.mubr.bf16.mxu0 0
        %1051 = vmatmul.mubr.bf16.gmra.mxu0 %v1016
        %v1052 = vpop.f32.mrf.mxu0
        %v1053 = vadd.f32 %v1001, %v1052
        %v1054 = vpop.f32.mrf.mxu0
        %v1055 = vpop.f32.mrf.mxu0
        %v1056 = vpop.f32.mrf.mxu0
        %1057 = vdwg.mxu0
        %v1058 = vadd.f32 %v437, %v1053
        %v1059 = vld [vmem:[%s7] sm:$0x1]
        %v1060 = vld [vmem:[%s8] sm:$0x1]
        %v1061 = vpack.c.bf16 %v1058, %v1058
        %v1062 = vld [vmem:[%s5] sm:$0xf]
        %v1063 = vld [vmem:[%s5 + $0x4] sm:$0xf]
        %v1064 = vld [vmem:[%s5 + $0x8] sm:$0xf]
        %v1065 = vld [vmem:[%s5 + $0xc] sm:$0xf]
        %v1066 = vld [vmem:[%s6] sm:$0x1]
        %v1068 = vlaneseq
        %v1069 = vshrl.u32 %v1068, 7
        %v1070 = vsub.s32 0, %v1069
        %v1071 = vrot.slane %v1066, %v1070
        %v1077 = vunpack.c.l.b16 %v1062
        %v1078 = vunpack.c.l.b16 %v1063
        %v1079 = vunpack.c.l.b16 %v1064
        %v1080 = vunpack.c.l.b16 %v1065
        %v1081 = vpack.c.b16 %v1078, %v1077
        %v1082 = vpack.c.b16 %v1080, %v1079
        %v1086 = vsel %vm438, %v1061, 0
        %1088 = vmatprep.subr.bf16.mxu0 0
        %1089 = vmatpush1.bf16.msra.mxu0 0
        %1090 = vmatprep.subr.bf16.mxu0 0
        %1091 = vmatpush1.bf16.msra.mxu0 0
        %1092 = vmatprep.subr.bf16.mxu0 0
        %1093 = vmatpush1.bf16.msra.mxu0 0
        %1094 = vmatprep.subr.bf16.mxu0 0
        %1095 = vmatpush1.bf16.msra.mxu0 0
        %1096 = vmatprep.subr.bf16.mxu0 0
        %1097 = vmatpush1.bf16.msra.mxu0 0
        %1098 = vmatprep.subr.bf16.mxu0 0
        %1099 = vmatpush1.bf16.msra.mxu0 0
        %1100 = vmatprep.subr.bf16.mxu0 0
        %1101 = vmatpush1.bf16.msra.mxu0 %v1082
        %1102 = vmatprep.subr.bf16.mxu0 0
        %1103 = vmatpush1.bf16.msra.mxu0 %v1081
        %1104 = vmatprep.subr.bf16.mxu0 0
        %1105 = vmatpush2.bf16.msra.mxu0 0
        %1106 = vmatprep.subr.bf16.mxu0 0
        %1107 = vmatpush2.bf16.msra.mxu0 0
        %1108 = vmatprep.subr.bf16.mxu0 0
        %1109 = vmatpush2.bf16.msra.mxu0 0
        %1110 = vmatprep.subr.bf16.mxu0 0
        %1111 = vmatpush2.bf16.msra.mxu0 0
        %1112 = vmatprep.subr.bf16.mxu0 0
        %1113 = vmatpush2.bf16.msra.mxu0 0
        %1114 = vmatprep.subr.bf16.mxu0 0
        %1115 = vmatpush2.bf16.msra.mxu0 0
        %1116 = vmatprep.subr.bf16.mxu0 0
        %1117 = vmatpush2.bf16.msra.mxu0 0
        %1118 = vmatprep.subr.bf16.mxu0 0
        %1119 = vmatpush2.bf16.msra.mxu0 0
        %1120 = vmatprep.mubr.bf16.mxu0 0
        %1121 = vmatmul.mubr.bf16.gmra.mxu0 %v1086
        %v1122 = vpop.f32.mrf.mxu0
        %v1123 = vadd.f32 %v1071, %v1122
        %v1124 = vpop.f32.mrf.mxu0
        %v1125 = vpop.f32.mrf.mxu0
        %v1126 = vpop.f32.mrf.mxu0
        %1127 = vdwg.mxu0
        %v1129 = vlaneseq
        %v1130 = vshrl.u32 %v1129, 7
        %v1131 = vsub.s32 0, %v1130
        %v1132 = vrot.slane %v1059, %v1131
        %v1134 = vmul.f32 %v1132, %v1123
        %v1135 = vand.u32 2147483647, %v1134
        %vm1136 = vcmp.le.f32.partialorder %v1135, 0.7853982
        %vm1137 = vcmp.lt.s32.totalorder %v1134, 0
        %v1138 = vand.u32 %v1134, 2139095040
        %v1139 = vshrl.u32 %v1138, 23
        %v1140 = vsub.s32 %v1139, 127
        %v1141 = vand.u32 2147483647, %v1134
        %v1142 = vand.u32 %v1141, 8388607
        %v1143 = vor.u32 %v1142, 8388608
        %v1144 = vsub.s32 0, %v1143
        %v1145 = vadd.s32 %v1140, 1
        %vm1146 = vcmp.gt.s32.totalorder %v1145, 0
        %v1147 = vsel %vm1146, %v1145, 0
        %v1148 = vshrl.u32 %v1147, 5
        %v1149 = vand.u32 %v1147, 31
        %v1150 = vsub.s32 32, %v1149
        %v1151 = vshrl.u32 683565275, %v1150
        %v1152 = vshll.u32 683565275, %v1149
        %v1153 = vshrl.u32 2475754826, %v1150
        %v1154 = vor.u32 %v1152, %v1153
        %v1155 = vshll.u32 2475754826, %v1149
        %v1156 = vshrl.u32 2131351028, %v1150
        %v1157 = vor.u32 %v1155, %v1156
        %v1158 = vshll.u32 2131351028, %v1149
        %v1159 = vshrl.u32 2102212464, %v1150
        %v1160 = vor.u32 %v1158, %v1159
        %v1161 = vshll.u32 2102212464, %v1149
        %v1162 = vshrl.u32 920167782, %v1150
        %v1163 = vor.u32 %v1161, %v1162
        %v1164 = vshll.u32 920167782, %v1149
        %v1165 = vshrl.u32 1326507024, %v1150
        %v1166 = vor.u32 %v1164, %v1165
        %vm1167 = vcmp.lt.s32.totalorder %v1148, 1
        %vm1168 = vcmp.lt.s32.totalorder %v1148, 2
        %vm1169 = vcmp.lt.s32.totalorder %v1148, 3
        %vm1170 = vcmp.lt.s32.totalorder %v1148, 4
        %v1171 = vsel %vm1167, %v1151, %v1154
        %v1172 = vsel %vm1170, %v1160, 2102212464
        %v1173 = vsel %vm1169, %v1157, %v1172
        %v1174 = vsel %vm1168, %v1171, %v1173
        %v1175 = vsel %vm1167, %v1154, %v1157
        %v1176 = vsel %vm1170, %v1163, 920167782
        %v1177 = vsel %vm1169, %v1160, %v1176
        %v1178 = vsel %vm1168, %v1175, %v1177
        %v1179 = vsel %vm1167, %v1157, %v1160
        %v1180 = vsel %vm1170, %v1166, 1326507024
        %v1181 = vsel %vm1169, %v1163, %v1180
        %v1182 = vsel %vm1168, %v1179, %v1181
        %v1183 = vshll.u32 %v1143, 8
        %v1184 = vmul.u32.u64.compose %v1183, %v1182
        %v1185 = vextract.low.u32 %v1184
        %v1186 = vextract.high.u32 %v1184
        %v1187 = vmul.u32.u64.compose %v1183, %v1178
        %v1188 = vextract.low.u32 %v1187
        %v1189 = vextract.high.u32 %v1187
        %v1190 = vmul.u32 %v1183, %v1174
        %v1191 = vadd.s32 %v1186, %v1188
        %vm1192 = vc.u32 %v1186, %v1188
        %v1193 = vadd.s32 %v1189, 1
        %v1194 = vsel %vm1192, %v1193, %v1189
        %v1195 = vadd.s32 %v1190, %v1194
        %v1196 = vadd.s32 %v1195, 536870912
        %v1197 = vshrl.u32 %v1196, 30
        %v1198 = vshll.u32 %v1197, 30
        %v1199 = vsub.s32 %v1195, %v1198
        %vm1200 = vcmp.lt.s32.totalorder %v1199, 0
        %v1201 = vsub.s32 0, %v1199
        %v1202 = vsel %vm1200, %v1201, %v1199
        %v1203 = vclz %v1202
        %v1204 = vsub.s32 %v1203, 2
        %vm1205 = vcmp.gt.s32.totalorder 0, %v1204
        %v1206 = vsel %vm1205, 0, %v1204
        %v1207 = vsub.s32 32, %v1206
        %v1208 = vshll.u32 %v1199, %v1206
        %v1209 = vshrl.u32 %v1191, %v1207
        %v1210 = vor.u32 %v1208, %v1209
        %v1211 = vsub.s32 4294967266, %v1206
        %v1212 = vadd.s32 %v1211, 127
        %v1213 = vshll.u32 %v1212, 23
        %v1214 = vor.u32 4788187, %v1213
        %v1215 = vand.u32 2147483647, %v1214
        %v1217 = vcvt.s32.f32 %v1210
        %v1218 = vmul.f32 %v1217, %v1215
        %v1219 = vxor.u32 %v1218, 2147483648
        %v1220 = vsel %vm1137, %v1219, %v1218
        %v1221 = vsub.s32 4, %v1197
        %v1222 = vsel %vm1137, %v1221, %v1197
        %v1223 = vsel %vm1136, %v1134, %v1220
        %v1224 = vsel %vm1136, 0, %v1222
        %v1225 = vcosq.f32.pop %v1223
        %v1226 = vsinq.f32.pop %v1223
        %vm1227 = vweird.f32 %v1134
        %v1228 = vadd.s32 %v1224, 3
        %v1229 = vand.u32 %v1228, 3
        %vm1230 = vcmp.lt.s32.totalorder %v1229, 2
        %vm1231 = vcmp.eq.s32.totalorder %v1229, 0
        %v1232 = vxor.u32 %v1226, 2147483648
        %v1233 = vsel %vm1231, %v1225, %v1232
        %vm1234 = vcmp.eq.s32.totalorder %v1229, 2
        %v1235 = vxor.u32 %v1225, 2147483648
        %v1236 = vsel %vm1234, %v1235, %v1226
        %v1237 = vsel %vm1230, %v1233, %v1236
        %v1238 = vsel %vm1227, nan, %v1237
        %v1240 = vlaneseq
        %v1241 = vshrl.u32 %v1240, 7
        %v1242 = vsub.s32 0, %v1241
        %v1243 = vrot.slane %v1060, %v1242
        %v1245 = vmul.f32 %v1243, %v1238
        %v1246 = vmul.f32 %v1245, %v1238
        %v1247 = vadd.f32 %v1123, %v1246
        %v1248 = vpack.c.bf16 %v1247, %v1247
        %v1249 = vld [vmem:[%s9] sm:$0xf]
        %v1250 = vld [vmem:[%s9 + $0x4] sm:$0xf]
        %v1251 = vld [vmem:[%s9 + $0x8] sm:$0xf]
        %v1252 = vld [vmem:[%s9 + $0xc] sm:$0xf]
        %v1253 = vld [vmem:[%s9 + $0x10] sm:$0xf]
        %v1254 = vld [vmem:[%s9 + $0x14] sm:$0xf]
        %v1255 = vld [vmem:[%s9 + $0x18] sm:$0xf]
        %v1256 = vld [vmem:[%s9 + $0x1c] sm:$0xf]
        %v1257 = vld [vmem:[%s9 + $0x20] sm:$0xf]
        %v1258 = vld [vmem:[%s9 + $0x24] sm:$0xf]
        %v1259 = vld [vmem:[%s9 + $0x28] sm:$0xf]
        %v1260 = vld [vmem:[%s9 + $0x2c] sm:$0xf]
        %v1261 = vld [vmem:[%s9 + $0x30] sm:$0xf]
        %v1262 = vld [vmem:[%s9 + $0x34] sm:$0xf]
        %v1263 = vld [vmem:[%s9 + $0x38] sm:$0xf]
        %v1264 = vld [vmem:[%s9 + $0x3c] sm:$0xf]
        %v1265 = vld [vmem:[%s10] sm:$0x1]
        %v1267 = vlaneseq
        %v1268 = vshrl.u32 %v1267, 7
        %v1269 = vsub.s32 0, %v1268
        %v1270 = vrot.slane %v1265, %v1269
        %v1288 = vunpack.c.l.b16 %v1249
        %v1289 = vunpack.c.l.b16 %v1250
        %v1290 = vunpack.c.l.b16 %v1251
        %v1291 = vunpack.c.l.b16 %v1252
        %v1292 = vunpack.c.l.b16 %v1253
        %v1293 = vunpack.c.l.b16 %v1254
        %v1294 = vunpack.c.l.b16 %v1255
        %v1295 = vunpack.c.l.b16 %v1256
        %v1296 = vunpack.c.l.b16 %v1257
        %v1297 = vunpack.c.l.b16 %v1258
        %v1298 = vunpack.c.l.b16 %v1259
        %v1299 = vunpack.c.l.b16 %v1260
        %v1300 = vunpack.c.l.b16 %v1261
        %v1301 = vunpack.c.l.b16 %v1262
        %v1302 = vunpack.c.l.b16 %v1263
        %v1303 = vunpack.c.l.b16 %v1264
        %v1304 = vpack.c.b16 %v1289, %v1288
        %v1305 = vpack.c.b16 %v1291, %v1290
        %v1306 = vpack.c.b16 %v1293, %v1292
        %v1307 = vpack.c.b16 %v1295, %v1294
        %v1308 = vpack.c.b16 %v1297, %v1296
        %v1309 = vpack.c.b16 %v1299, %v1298
        %v1310 = vpack.c.b16 %v1301, %v1300
        %v1311 = vpack.c.b16 %v1303, %v1302
        %1320 = vmatprep.subr.bf16.mxu0 0
        %1321 = vmatpush1.bf16.msra.mxu0 %v1311
        %1322 = vmatprep.subr.bf16.mxu0 0
        %1323 = vmatpush1.bf16.msra.mxu0 %v1310
        %1324 = vmatprep.subr.bf16.mxu0 0
        %1325 = vmatpush1.bf16.msra.mxu0 %v1309
        %1326 = vmatprep.subr.bf16.mxu0 0
        %1327 = vmatpush1.bf16.msra.mxu0 %v1308
        %1328 = vmatprep.subr.bf16.mxu0 0
        %1329 = vmatpush1.bf16.msra.mxu0 %v1307
        %1330 = vmatprep.subr.bf16.mxu0 0
        %1331 = vmatpush1.bf16.msra.mxu0 %v1306
        %1332 = vmatprep.subr.bf16.mxu0 0
        %1333 = vmatpush1.bf16.msra.mxu0 %v1305
        %1334 = vmatprep.subr.bf16.mxu0 0
        %1335 = vmatpush1.bf16.msra.mxu0 %v1304
        %1336 = vmatprep.subr.bf16.mxu0 0
        %1337 = vmatpush2.bf16.msra.mxu0 0
        %1338 = vmatprep.subr.bf16.mxu0 0
        %1339 = vmatpush2.bf16.msra.mxu0 0
        %1340 = vmatprep.subr.bf16.mxu0 0
        %1341 = vmatpush2.bf16.msra.mxu0 0
        %1342 = vmatprep.subr.bf16.mxu0 0
        %1343 = vmatpush2.bf16.msra.mxu0 0
        %1344 = vmatprep.subr.bf16.mxu0 0
        %1345 = vmatpush2.bf16.msra.mxu0 0
        %1346 = vmatprep.subr.bf16.mxu0 0
        %1347 = vmatpush2.bf16.msra.mxu0 0
        %1348 = vmatprep.subr.bf16.mxu0 0
        %1349 = vmatpush2.bf16.msra.mxu0 0
        %1350 = vmatprep.subr.bf16.mxu0 0
        %1351 = vmatpush2.bf16.msra.mxu0 0
        %1352 = vmatprep.mubr.bf16.mxu0 0
        %1353 = vmatmul.mubr.bf16.gmra.mxu0 %v1248
        %v1354 = vpop.f32.mrf.mxu0
        %v1355 = vadd.f32 %v1270, %v1354
        %v1356 = vpop.f32.mrf.mxu0
        %v1357 = vpop.f32.mrf.mxu0
        %v1358 = vpop.f32.mrf.mxu0
        %1359 = vdwg.mxu0
        %v1360 = vadd.f32 %v1058, %v1355
        %v1361 = vsel %vm438, %v1360, 0.0
        %1362 = vadd.xlane.f32.xlu0 %v1361
        %v1363 = vpop.xlane.xlu0 %1362
        %v1364 = vmul.f32 %v1363, %v442
        %v1365 = vmul.f32 %v1360, %v1360
        %v1366 = vsel %vm438, %v1365, 0.0
        %1367 = vadd.xlane.f32.xlu0 %v1366
        %v1368 = vpop.xlane.xlu0 %1367
        %v1369 = vmul.f32 %v1368, %v442
        %v1370 = vsub.f32 %v1360, %v1364
        %v1371 = vmul.f32 %v1364, %v1364
        %v1372 = vsub.f32 %v1369, %v1371
        %v1373 = vadd.f32 %v1372, 1e-05
        %v1374 = vrsqrt.pop %v1373
        %v1375 = vmul.f32 %v1370, %v1374
        %v1376 = vld [vmem:[%s11] sm:$0x1]
        %v1378 = vlaneseq
        %v1379 = vshrl.u32 %v1378, 7
        %v1380 = vsub.s32 0, %v1379
        %v1381 = vrot.slane %v1376, %v1380
        %v1383 = vmul.f32 %v1375, %v1381
        %v1384 = vld [vmem:[%s12] sm:$0x1]
        %v1386 = vlaneseq
        %v1387 = vshrl.u32 %v1386, 7
        %v1388 = vsub.s32 0, %v1387
        %v1389 = vrot.slane %v1384, %v1388
        %v1391 = vadd.f32 %v1383, %v1389
        %1392 = vst.msk [vmem:[%s431] sm:$0xff] %vm438, %v1391
        %s1393 = sand.u32 %s313, 1
        %s1394 = scalar_lea.sflag [#allocation3], %s1393
        %s1395 = sand.u32 %s313, 1
        %s1396 = smul.addr %s1395, 8
        %s1397 = scalar_lea.vmem [#allocation2], %s1396
        // Predicated region
        $region73: #{tpu_custom_call.1} parent=71 // pred_check
          %p1398 = pneg %p323
        $region74: #{tpu_custom_call.1} parent=71 // pred_check_branch
          %1400 = sbr.rel (%p1398) target = $region76
        $region75: #{tpu_custom_call.1} parent=71 // pred_region
          %s1402 = ssub.s32 128, 128
          %1403 = vsyncadd %s1394, %s1402
          %s1404 = smul.addr %s27, 128
          %s1405 = scalar_lea.hbm %s13, %s1404
          %s1407 = sshll.u32 %s1397, 4
          %s1408 = int_to_ptr.vmem [resolvable:$true] %s1407
          %1410 = dma.vmem_to_hbm [thread:$0]  %s1408, 128, %s1405, %s1394
        $region76: #{tpu_custom_call.1} parent=71 // pred_fallthru
          _
      $region72: #{tpu_custom_call.1} parent=5 // pred_fallthru
        _
      %p1411 = scmp.le.s32.totalorder 2, %s22
      // Predicated region
      $region77: #{tpu_custom_call.1} parent=5 // pred_check
        %p1412 = pneg %p1411
      $region78: #{tpu_custom_call.1} parent=5 // pred_check_branch
        %1414 = sbr.rel (%p1412) target = $region80
      $region79: #{tpu_custom_call.1} parent=5 // pred_region
        %s1415 = ssub.s32 %s22, 2
        // Predicated region
        $region81: #{tpu_custom_call.1} parent=79 // pred_check
          %p1416 = pneg %p329
        $region82: #{tpu_custom_call.1} parent=79 // pred_check_branch
          %1418 = sbr.rel (%p1416) target = $region84
        $region83: #{tpu_custom_call.1} parent=79 // pred_region
          %s1419 = sand.u32 %s314, 1
          %s1420 = scalar_lea.sflag [#allocation3], %s1419
          %s1421 = sand.u32 %s314, 1
          %s1422 = smul.addr %s1421, 8
          %s1423 = scalar_lea.vmem [#allocation2], %s1422
          %1424 = dma.done %s1420, 128
        $region84: #{tpu_custom_call.1} parent=79 // pred_fallthru
          _
      $region80: #{tpu_custom_call.1} parent=5 // pred_fallthru
        _
    $region6: #{tpu_custom_call.1} parent=1 // loop_footer
      %s26 = sadd.s32 1, %s22
    $region7: #{tpu_custom_call.1} parent=1 // loop_footer_branch
      %21 = sbr.rel target = $region3
    $region8: #{tpu_custom_call.1} parent=1 // loop_exit
      _
    %1425 = vsyncpa [#allocation3], 1
    %s1426 = scalar_lea.sflag [#allocation3], 1
    %1427 = vsyncpa %s1426, 1

// kernel: tpu_custom_call.1
$region0: #{tpu_custom_call.1}
  #allocation0 [shape = 'u32[]', space=smem, size = 0x4, offset = 0x4, fixed_abs, tag = 'smem constant byte address 0x4 - core index']
  #allocation1 [shape = 'u32[144,128]{1,0:T(1,128)}', space=vmem, size = 0x12000, scoped, tag = 'internal scratch']
  %s0 = inlined_call_operand.vmem [shape: f32[2,8,32], index: 0, kind: input, shape index: {}]
  %s1 = inlined_call_operand.vmem [shape: bf16[32,96], index: 1, kind: input, shape index: {}]
  %s2 = inlined_call_operand.vmem [shape: f32[1,96], index: 2, kind: input, shape index: {}]
  %s3 = inlined_call_operand.vmem [shape: bf16[32,32], index: 3, kind: input, shape index: {}]
  %s4 = inlined_call_operand.vmem [shape: f32[1,32], index: 4, kind: input, shape index: {}]
  %s5 = inlined_call_operand.vmem [shape: bf16[32,128], index: 5, kind: input, shape index: {}]
  %s6 = inlined_call_operand.vmem [shape: f32[1,128], index: 6, kind: input, shape index: {}]
  %s7 = inlined_call_operand.vmem [shape: f32[1,128], index: 7, kind: input, shape index: {}]
  %s8 = inlined_call_operand.vmem [shape: f32[1,128], index: 8, kind: input, shape index: {}]
  %s9 = inlined_call_operand.vmem [shape: bf16[128,32], index: 9, kind: input, shape index: {}]
  %s10 = inlined_call_operand.vmem [shape: f32[1,32], index: 10, kind: input, shape index: {}]
  %s11 = inlined_call_operand.vmem [shape: f32[1,32], index: 11, kind: input, shape index: {}]
  %s12 = inlined_call_operand.vmem [shape: f32[1,32], index: 12, kind: input, shape index: {}]
  %s13 = inlined_call_operand.hbm [shape: f32[2,8,32], index: 13, kind: output, shape index: {}]
  %s14 = sld [smem:[#allocation0]]
  $region85: #{tpu_custom_call.1} parent=0
    _
  %s16 = ssub.s32 1, %s14
  %s17 = scalar_select 0, %s16, %s14
  $region1: #{tpu_custom_call.1} parent=0
    #allocation2 [shape = 'u8[8192]{0}', space=vmem, size = 0x2000, scoped, tag = 'output window, operand 0']
    #allocation3 [shape = 's32[2]{0}', space=sflag, size = 0x8, scoped, tag = 'scoped memory for tpu_custom_call.1']
    %18 = vsyncpa [#allocation3], 0
    %s19 = scalar_lea.sflag [#allocation3], 1
    %20 = vsyncpa %s19, 0
    loop: start=0, step=1, limit=4
    $region2: #{tpu_custom_call.1} parent=1 // loop_pre_header
      _
    $region3: #{tpu_custom_call.1} parent=1 // loop_header
      %s22 = sphi 0, %s26
      %p23 = scmp.ge.s32.totalorder %s22, 4
      %s32 = sphi 0, %s34
      %s35 = sphi 0, %s32
      %s36 = sphi 0, %s35
      %s52 = sphi 0, %s36
      %s56 = sphi 0, %s56
      %s58 = sphi 0, %s56
      %s59 = sphi 0, %s58
      %s73 = sphi 0, %s59
      %s77 = sphi 0, %s77
      %s79 = sphi 0, %s77
      %s80 = sphi 0, %s79
      %s94 = sphi 0, %s80
      %s98 = sphi 0, %s98
      %s100 = sphi 0, %s98
      %s101 = sphi 0, %s100
      %s115 = sphi 0, %s101
      %s119 = sphi 0, %s119
      %s121 = sphi 0, %s119
      %s122 = sphi 0, %s121
      %s136 = sphi 0, %s122
      %s140 = sphi 0, %s140
      %s142 = sphi 0, %s140
      %s143 = sphi 0, %s142
      %s157 = sphi 0, %s143
      %s161 = sphi 0, %s161
      %s163 = sphi 0, %s161
      %s164 = sphi 0, %s163
      %s178 = sphi 0, %s164
      %s182 = sphi 0, %s182
      %s184 = sphi 0, %s182
      %s185 = sphi 0, %s184
      %s199 = sphi 0, %s185
      %s203 = sphi 0, %s203
      %s205 = sphi 0, %s203
      %s206 = sphi 0, %s205
      %s220 = sphi 0, %s206
      %s224 = sphi 0, %s224
      %s226 = sphi 0, %s224
      %s227 = sphi 0, %s226
      %s241 = sphi 0, %s227
      %s245 = sphi 0, %s245
      %s247 = sphi 0, %s245
      %s248 = sphi 0, %s247
      %s262 = sphi 0, %s248
      %s266 = sphi 0, %s266
      %s268 = sphi 0, %s266
      %s269 = sphi 0, %s268
      %s283 = sphi 0, %s269
      %s287 = sphi 0, %s287
      %s289 = sphi 0, %s287
      %s290 = sphi 0, %s289
      %s304 = sphi 0, %s290
      %s310 = sphi 0, %s312
      %s313 = sphi 0, %s310
      %s314 = sphi 0, %s313
      %s330 = sphi 0, %s314
    $region4: #{tpu_custom_call.1} parent=1 // loop_header_branch
      %25 = sbr.rel (%p23) target = $region8
    $region5: #{tpu_custom_call.1} parent=1 // loop_body
      %s27 = ssub.s32 %s22, 1
      %s28 = ssub.s32 %s22, 2
      %s29 = sadd.s32 %s22, 1
      %s30 = ssub.s32 %s22, %s29
      %p31 = scmp.eq.s32.totalorder %s30, 0
      %s33 = sadd.s32 %s32, 1
      %s34 = scalar_select %p31, %s32, %s33
      %p37 = pneg %p31
      %p38 = scmp.eq.s32.totalorder %s22, 1
      %p39 = por %p37, %p38
      %p40 = scmp.ne.s32.totalorder %s32, %s35
      %p41 = scmp.eq.s32.totalorder %s22, 0
      %p42 = por %p40, %p41
      %p43 = scmp.ne.s32.totalorder %s32, %s35
      %p44 = scmp.eq.s32.totalorder %s27, 1
      %p45 = por %p43, %p44
      %p46 = scmp.ne.s32.totalorder %s35, %s36
      %p47 = scmp.eq.s32.totalorder %s27, 0
      %p48 = por %p46, %p47
      %p49 = scmp.ne.s32.totalorder %s35, %s36
      %p50 = scmp.eq.s32.totalorder %s28, 1
      %p51 = por %p49, %p50
      %p53 = scmp.ne.s32.totalorder %s36, %s52
      %p54 = scmp.eq.s32.totalorder %s28, 0
      %p55 = por %p53, %p54
      %s57 = sadd.s32 %s56, 1
      %p60 = scmp.eq.s32.totalorder %s22, 1
      %p61 = scmp.ne.s32.totalorder %s56, %s58
      %p62 = scmp.eq.s32.totalorder %s22, 0
      %p63 = por %p61, %p62
      %p64 = scmp.ne.s32.totalorder %s56, %s58
      %p65 = scmp.eq.s32.totalorder %s27, 1
      %p66 = por %p64, %p65
      %p67 = scmp.ne.s32.totalorder %s58, %s59
      %p68 = scmp.eq.s32.totalorder %s27, 0
      %p69 = por %p67, %p68
      %p70 = scmp.ne.s32.totalorder %s58, %s59
      %p71 = scmp.eq.s32.totalorder %s28, 1
      %p72 = por %p70, %p71
      %p74 = scmp.ne.s32.totalorder %s59, %s73
      %p75 = scmp.eq.s32.totalorder %s28, 0
      %p76 = por %p74, %p75
      %s78 = sadd.s32 %s77, 1
      %p81 = scmp.eq.s32.totalorder %s22, 1
      %p82 = scmp.ne.s32.totalorder %s77, %s79
      %p83 = scmp.eq.s32.totalorder %s22, 0
      %p84 = por %p82, %p83
      %p85 = scmp.ne.s32.totalorder %s77, %s79
      %p86 = scmp.eq.s32.totalorder %s27, 1
      %p87 = por %p85, %p86
      %p88 = scmp.ne.s32.totalorder %s79, %s80
      %p89 = scmp.eq.s32.totalorder %s27, 0
      %p90 = por %p88, %p89
      %p91 = scmp.ne.s32.totalorder %s79, %s80
      %p92 = scmp.eq.s32.totalorder %s28, 1
      %p93 = por %p91, %p92
      %p95 = scmp.ne.s32.totalorder %s80, %s94
      %p96 = scmp.eq.s32.totalorder %s28, 0
      %p97 = por %p95, %p96
      %s99 = sadd.s32 %s98, 1
      %p102 = scmp.eq.s32.totalorder %s22, 1
      %p103 = scmp.ne.s32.totalorder %s98, %s100
      %p104 = scmp.eq.s32.totalorder %s22, 0
      %p105 = por %p103, %p104
      %p106 = scmp.ne.s32.totalorder %s98, %s100
      %p107 = scmp.eq.s32.totalorder %s27, 1
      %p108 = por %p106, %p107
      %p109 = scmp.ne.s32.totalorder %s100, %s101
      %p110 = scmp.eq.s32.totalorder %s27, 0
      %p111 = por %p109, %p110
      %p112 = scmp.ne.s32.totalorder %s100, %s101
      %p113 = scmp.eq.s32.totalorder %s28, 1
      %p114 = por %p112, %p113
      %p116 = scmp.ne.s32.totalorder %s101, %s115
      %p117 = scmp.eq.s32.totalorder %s28, 0
      %p118 = por %p116, %p117
      %s120 = sadd.s32 %s119, 1
      %p123 = scmp.eq.s32.totalorder %s22, 1
      %p124 = scmp.ne.s32.totalorder %s119, %s121
      %p125 = scmp.eq.s32.totalorder %s22, 0
      %p126 = por %p124, %p125
      %p127 = scmp.ne.s32.totalorder %s119, %s121
      %p128 = scmp.eq.s32.totalorder %s27, 1
      %p129 = por %p127, %p128
      %p130 = scmp.ne.s32.totalorder %s121, %s122
      %p131 = scmp.eq.s32.totalorder %s27, 0
      %p132 = por %p130, %p131
      %p133 = scmp.ne.s32.totalorder %s121, %s122
      %p134 = scmp.eq.s32.totalorder %s28, 1
      %p135 = por %p133, %p134
      %p137 = scmp.ne.s32.totalorder %s122, %s136
      %p138 = scmp.eq.s32.totalorder %s28, 0
      %p139 = por %p137, %p138
      %s141 = sadd.s32 %s140, 1
      %p144 = scmp.eq.s32.totalorder %s22, 1
      %p145 = scmp.ne.s32.totalorder %s140, %s142
      %p146 = scmp.eq.s32.totalorder %s22, 0
      %p147 = por %p145, %p146
      %p148 = scmp.ne.s32.totalorder %s140, %s142
      %p149 = scmp.eq.s32.totalorder %s27, 1
      %p150 = por %p148, %p149
      %p151 = scmp.ne.s32.totalorder %s142, %s143
      %p152 = scmp.eq.s32.totalorder %s27, 0
      %p153 = por %p151, %p152
      %p154 = scmp.ne.s32.totalorder %s142, %s143
      %p155 = scmp.eq.s32.totalorder %s28, 1
      %p156 = por %p154, %p155
      %p158 = scmp.ne.s32.totalorder %s143, %s157
      %p159 = scmp.eq.s32.totalorder %s28, 0
      %p160 = por %p158, %p159
      %s162 = sadd.s32 %s161, 1
      %p165 = scmp.eq.s32.totalorder %s22, 1
      %p166 = scmp.ne.s32.totalorder %s161, %s163
      %p167 = scmp.eq.s32.totalorder %s22, 0
      %p168 = por %p166, %p167
      %p169 = scmp.ne.s32.totalorder %s161, %s163
      %p170 = scmp.eq.s32.totalorder %s27, 1
      %p171 = por %p169, %p170
      %p172 = scmp.ne.s32.totalorder %s163, %s164
      %p173 = scmp.eq.s32.totalorder %s27, 0
      %p174 = por %p172, %p173
      %p175 = scmp.ne.s32.totalorder %s163, %s164
      %p176 = scmp.eq.s32.totalorder %s28, 1
      %p177 = por %p175, %p176
      %p179 = scmp.ne.s32.totalorder %s164, %s178
      %p180 = scmp.eq.s32.totalorder %s28, 0
      %p181 = por %p179, %p180
      %s183 = sadd.s32 %s182, 1
      %p186 = scmp.eq.s32.totalorder %s22, 1
      %p187 = scmp.ne.s32.totalorder %s182, %s184
      %p188 = scmp.eq.s32.totalorder %s22, 0
      %p189 = por %p187, %p188
      %p190 = scmp.ne.s32.totalorder %s182, %s184
      %p191 = scmp.eq.s32.totalorder %s27, 1
      %p192 = por %p190, %p191
      %p193 = scmp.ne.s32.totalorder %s184, %s185
      %p194 = scmp.eq.s32.totalorder %s27, 0
      %p195 = por %p193, %p194
      %p196 = scmp.ne.s32.totalorder %s184, %s185
      %p197 = scmp.eq.s32.totalorder %s28, 1
      %p198 = por %p196, %p197
      %p200 = scmp.ne.s32.totalorder %s185, %s199
      %p201 = scmp.eq.s32.totalorder %s28, 0
      %p202 = por %p200, %p201
      %s204 = sadd.s32 %s203, 1
      %p207 = scmp.eq.s32.totalorder %s22, 1
      %p208 = scmp.ne.s32.totalorder %s203, %s205
      %p209 = scmp.eq.s32.totalorder %s22, 0
      %p210 = por %p208, %p209
      %p211 = scmp.ne.s32.totalorder %s203, %s205
      %p212 = scmp.eq.s32.totalorder %s27, 1
      %p213 = por %p211, %p212
      %p214 = scmp.ne.s32.totalorder %s205, %s206
      %p215 = scmp.eq.s32.totalorder %s27, 0
      %p216 = por %p214, %p215
      %p217 = scmp.ne.s32.totalorder %s205, %s206
      %p218 = scmp.eq.s32.totalorder %s28, 1
      %p219 = por %p217, %p218
      %p221 = scmp.ne.s32.totalorder %s206, %s220
      %p222 = scmp.eq.s32.totalorder %s28, 0
      %p223 = por %p221, %p222
      %s225 = sadd.s32 %s224, 1
      %p228 = scmp.eq.s32.totalorder %s22, 1
      %p229 = scmp.ne.s32.totalorder %s224, %s226
      %p230 = scmp.eq.s32.totalorder %s22, 0
      %p231 = por %p229, %p230
      %p232 = scmp.ne.s32.totalorder %s224, %s226
      %p233 = scmp.eq.s32.totalorder %s27, 1
      %p234 = por %p232, %p233
      %p235 = scmp.ne.s32.totalorder %s226, %s227
      %p236 = scmp.eq.s32.totalorder %s27, 0
      %p237 = por %p235, %p236
      %p238 = scmp.ne.s32.totalorder %s226, %s227
      %p239 = scmp.eq.s32.totalorder %s28, 1
      %p240 = por %p238, %p239
      %p242 = scmp.ne.s32.totalorder %s227, %s241
      %p243 = scmp.eq.s32.totalorder %s28, 0
      %p244 = por %p242, %p243
      %s246 = sadd.s32 %s245, 1
      %p249 = scmp.eq.s32.totalorder %s22, 1
      %p250 = scmp.ne.s32.totalorder %s245, %s247
      %p251 = scmp.eq.s32.totalorder %s22, 0
      %p252 = por %p250, %p251
      %p253 = scmp.ne.s32.totalorder %s245, %s247
      %p254 = scmp.eq.s32.totalorder %s27, 1
      %p255 = por %p253, %p254
      %p256 = scmp.ne.s32.totalorder %s247, %s248
      %p257 = scmp.eq.s32.totalorder %s27, 0
      %p258 = por %p256, %p257
      %p259 = scmp.ne.s32.totalorder %s247, %s248
      %p260 = scmp.eq.s32.totalorder %s28, 1
      %p261 = por %p259, %p260
      %p263 = scmp.ne.s32.totalorder %s248, %s262
      %p264 = scmp.eq.s32.totalorder %s28, 0
      %p265 = por %p263, %p264
      %s267 = sadd.s32 %s266, 1
      %p270 = scmp.eq.s32.totalorder %s22, 1
      %p271 = scmp.ne.s32.totalorder %s266, %s268
      %p272 = scmp.eq.s32.totalorder %s22, 0
      %p273 = por %p271, %p272
      %p274 = scmp.ne.s32.totalorder %s266, %s268
      %p275 = scmp.eq.s32.totalorder %s27, 1
      %p276 = por %p274, %p275
      %p277 = scmp.ne.s32.totalorder %s268, %s269
      %p278 = scmp.eq.s32.totalorder %s27, 0
      %p279 = por %p277, %p278
      %p280 = scmp.ne.s32.totalorder %s268, %s269
      %p281 = scmp.eq.s32.totalorder %s28, 1
      %p282 = por %p280, %p281
      %p284 = scmp.ne.s32.totalorder %s269, %s283
      %p285 = scmp.eq.s32.totalorder %s28, 0
      %p286 = por %p284, %p285
      %s288 = sadd.s32 %s287, 1
      %p291 = scmp.eq.s32.totalorder %s22, 1
      %p292 = scmp.ne.s32.totalorder %s287, %s289
      %p293 = scmp.eq.s32.totalorder %s22, 0
      %p294 = por %p292, %p293
      %p295 = scmp.ne.s32.totalorder %s287, %s289
      %p296 = scmp.eq.s32.totalorder %s27, 1
      %p297 = por %p295, %p296
      %p298 = scmp.ne.s32.totalorder %s289, %s290
      %p299 = scmp.eq.s32.totalorder %s27, 0
      %p300 = por %p298, %p299
      %p301 = scmp.ne.s32.totalorder %s289, %s290
      %p302 = scmp.eq.s32.totalorder %s28, 1
      %p303 = por %p301, %p302
      %p305 = scmp.ne.s32.totalorder %s290, %s304
      %p306 = scmp.eq.s32.totalorder %s28, 0
      %p307 = por %p305, %p306
      %s308 = ssub.s32 %s22, %s29
      %p309 = scmp.eq.s32.totalorder %s308, 0
      %s311 = sadd.s32 %s310, 1
      %s312 = scalar_select %p309, %s310, %s311
      %p315 = pneg %p309
      %p316 = scmp.eq.s32.totalorder %s22, 1
      %p317 = por %p315, %p316
      %p318 = scmp.ne.s32.totalorder %s310, %s313
      %p319 = scmp.eq.s32.totalorder %s22, 0
      %p320 = por %p318, %p319
      %p321 = scmp.ne.s32.totalorder %s310, %s313
      %p322 = scmp.eq.s32.totalorder %s27, 1
      %p323 = por %p321, %p322
      %p324 = scmp.ne.s32.totalorder %s313, %s314
      %p325 = scmp.eq.s32.totalorder %s27, 0
      %p326 = por %p324, %p325
      %p327 = scmp.ne.s32.totalorder %s313, %s314
      %p328 = scmp.eq.s32.totalorder %s28, 1
      %p329 = por %p327, %p328
      %p331 = scmp.ne.s32.totalorder %s314, %s330
      %p332 = scmp.eq.s32.totalorder %s28, 0
      %p333 = por %p331, %p332
      %p334 = scmp.le.s32.totalorder 1, %s22
      %p335 = scmp.lt.s32.totalorder %s22, 3
      %p336 = pnand %p334, %p335
      %p337 = pneg %p336
      // Predicated region
      $region9: #{tpu_custom_call.1} parent=5 // pred_check
        _
      $region10: #{tpu_custom_call.1} parent=5 // pred_check_branch
        %339 = sbr.rel (%p336) target = $region12
      $region11: #{tpu_custom_call.1} parent=5 // pred_region
        %s340 = ssub.s32 %s22, 1
        // Predicated region
        $region13: #{tpu_custom_call.1} parent=11 // pred_check
          %p341 = pneg %p69
        $region14: #{tpu_custom_call.1} parent=11 // pred_check_branch
          %343 = sbr.rel (%p341) target = $region16
        $region15: #{tpu_custom_call.1} parent=11 // pred_region
          _
        $region16: #{tpu_custom_call.1} parent=11 // pred_fallthru
          _
        // Predicated region
        $region17: #{tpu_custom_call.1} parent=11 // pred_check
          %p344 = pneg %p90
        $region18: #{tpu_custom_call.1} parent=11 // pred_check_branch
          %346 = sbr.rel (%p344) target = $region20
        $region19: #{tpu_custom_call.1} parent=11 // pred_region
          _
        $region20: #{tpu_custom_call.1} parent=11 // pred_fallthru
          _
        // Predicated region
        $region21: #{tpu_custom_call.1} parent=11 // pred_check
          %p347 = pneg %p111
        $region22: #{tpu_custom_call.1} parent=11 // pred_check_branch
          %349 = sbr.rel (%p347) target = $region24
        $region23: #{tpu_custom_call.1} parent=11 // pred_region
          _
        $region24: #{tpu_custom_call.1} parent=11 // pred_fallthru
          _
        // Predicated region
        $region25: #{tpu_custom_call.1} parent=11 // pred_check
          %p350 = pneg %p132
        $region26: #{tpu_custom_call.1} parent=11 // pred_check_branch
          %352 = sbr.rel (%p350) target = $region28
        $region27: #{tpu_custom_call.1} parent=11 // pred_region
          _
        $region28: #{tpu_custom_call.1} parent=11 // pred_fallthru
          _
        // Predicated region
        $region29: #{tpu_custom_call.1} parent=11 // pred_check
          %p353 = pneg %p153
        $region30: #{tpu_custom_call.1} parent=11 // pred_check_branch
          %355 = sbr.rel (%p353) target = $region32
        $region31: #{tpu_custom_call.1} parent=11 // pred_region
          _
        $region32: #{tpu_custom_call.1} parent=11 // pred_fallthru
          _
        // Predicated region
        $region33: #{tpu_custom_call.1} parent=11 // pred_check
          %p356 = pneg %p174
        $region34: #{tpu_custom_call.1} parent=11 // pred_check_branch
          %358 = sbr.rel (%p356) target = $region36
        $region35: #{tpu_custom_call.1} parent=11 // pred_region
          _
        $region36: #{tpu_custom_call.1} parent=11 // pred_fallthru
          _
        // Predicated region
        $region37: #{tpu_custom_call.1} parent=11 // pred_check
          %p359 = pneg %p195
        $region38: #{tpu_custom_call.1} parent=11 // pred_check_branch
          %361 = sbr.rel (%p359) target = $region40
        $region39: #{tpu_custom_call.1} parent=11 // pred_region
          _
        $region40: #{tpu_custom_call.1} parent=11 // pred_fallthru
          _
        // Predicated region
        $region41: #{tpu_custom_call.1} parent=11 // pred_check
          %p362 = pneg %p216
        $region42: #{tpu_custom_call.1} parent=11 // pred_check_branch
          %364 = sbr.rel (%p362) target = $region44
        $region43: #{tpu_custom_call.1} parent=11 // pred_region
          _
        $region44: #{tpu_custom_call.1} parent=11 // pred_fallthru
          _
        // Predicated region
        $region45: #{tpu_custom_call.1} parent=11 // pred_check
          %p365 = pneg %p237
        $region46: #{tpu_custom_call.1} parent=11 // pred_check_branch
          %367 = sbr.rel (%p365) target = $region48
        $region47: #{tpu_custom_call.1} parent=11 // pred_region
          _
        $region48: #{tpu_custom_call.1} parent=11 // pred_fallthru
          _
        // Predicated region
        $region49: #{tpu_custom_call.1} parent=11 // pred_check
          %p368 = pneg %p258
        $region50: #{tpu_custom_call.1} parent=11 // pred_check_branch
          %370 = sbr.rel (%p368) target = $region52
        $region51: #{tpu_custom_call.1} parent=11 // pred_region
          _
        $region52: #{tpu_custom_call.1} parent=11 // pred_fallthru
          _
        // Predicated region
        $region53: #{tpu_custom_call.1} parent=11 // pred_check
          %p371 = pneg %p279
        $region54: #{tpu_custom_call.1} parent=11 // pred_check_branch
          %373 = sbr.rel (%p371) target = $region56
        $region55: #{tpu_custom_call.1} parent=11 // pred_region
          _
        $region56: #{tpu_custom_call.1} parent=11 // pred_fallthru
          _
        // Predicated region
        $region57: #{tpu_custom_call.1} parent=11 // pred_check
          %p374 = pneg %p300
        $region58: #{tpu_custom_call.1} parent=11 // pred_check_branch
          %376 = sbr.rel (%p374) target = $region60
        $region59: #{tpu_custom_call.1} parent=11 // pred_region
          _
        $region60: #{tpu_custom_call.1} parent=11 // pred_fallthru
          _
      $region12: #{tpu_custom_call.1} parent=5 // pred_fallthru
        _
      %p377 = scmp.lt.s32.totalorder %s22, 2
      // Predicated region
      $region61: #{tpu_custom_call.1} parent=5 // pred_check
        %p378 = pneg %p377
      $region62: #{tpu_custom_call.1} parent=5 // pred_check_branch
        %380 = sbr.rel (%p378) target = $region64
      $region63: #{tpu_custom_call.1} parent=5 // pred_region
        // Predicated region
        $region65: #{tpu_custom_call.1} parent=63 // pred_check
          %p381 = pneg %p42
        $region66: #{tpu_custom_call.1} parent=63 // pred_check_branch
          %383 = sbr.rel (%p381) target = $region68
        $region67: #{tpu_custom_call.1} parent=63 // pred_region
          %p384 = scmp.lt.s32.totalorder %s22, 1
          %s385 = scalar_select %p384, %s22, 1
          %s386 = smul.addr %s385, 8
          %s387 = scalar_lea.vmem %s0, %s386
        $region68: #{tpu_custom_call.1} parent=63 // pred_fallthru
          _
      $region64: #{tpu_custom_call.1} parent=5 // pred_fallthru
        _
      %p388 = scmp.le.s32.totalorder 1, %s22
      %p389 = scmp.lt.s32.totalorder %s22, 3
      %p390 = pnand %p388, %p389
      %p391 = pneg %p390
      // Predicated region
      $region69: #{tpu_custom_call.1} parent=5 // pred_check
        _
      $region70: #{tpu_custom_call.1} parent=5 // pred_check_branch
        %393 = sbr.rel (%p390) target = $region72
      $region71: #{tpu_custom_call.1} parent=5 // pred_region
        %s394 = ssub.s32 %s22, 1
        %p395 = scmp.lt.s32.totalorder %s27, 1
        %s396 = scalar_select %p395, %s27, 1
        %s397 = smul.addr %s396, 8
        %s398 = scalar_lea.vmem %s0, %s397
        %p399 = pneg %p48
        %p400 = pneg %p45
        %p401 = pneg %p69
        %p402 = pneg %p66
        %p403 = pneg %p90
        %p404 = pneg %p87
        %p405 = pneg %p111
        %p406 = pneg %p108
        %p407 = pneg %p132
        %p408 = pneg %p129
        %p409 = pneg %p153
        %p410 = pneg %p150
        %p411 = pneg %p174
        %p412 = pneg %p171
        %p413 = pneg %p195
        %p414 = pneg %p192
        %p415 = pneg %p216
        %p416 = pneg %p213
        %p417 = pneg %p237
        %p418 = pneg %p234
        %p419 = pneg %p258
        %p420 = pneg %p255
        %p421 = pneg %p279
        %p422 = pneg %p276
        %p423 = pneg %p300
        %p424 = pneg %p297
        %p425 = pneg %p326
        %p426 = pneg %p323
        %s427 = sand.u32 %s313, 1
        %s428 = scalar_lea.sflag [#allocation3], %s427
        %s429 = sand.u32 %s313, 1
        %s430 = smul.addr %s429, 8
        %s431 = scalar_lea.vmem [#allocation2], %s430
        %p432 = scmp.lt.s32.totalorder %s27, 1
        %s433 = scalar_select %p432, %s27, 1
        %s434 = smul.addr %s433, 8
        %s435 = scalar_lea.vmem %s0, %s434
        %v437 = vld [vmem:[%s435] sm:$0xff]
        %vm438 = vcmask 261120
        %v439 = vsel %vm438, %v437, 0.0
        %440 = vadd.xlane.f32.xlu0 %v439
        %v441 = vpop.xlane.xlu0 %440
        %v442 = vrcp.pop 32.0
        %v443 = vmul.f32 %v441, %v442
        %v444 = vmul.f32 %v437, %v437
        %v445 = vsel %vm438, %v444, 0.0
        %446 = vadd.xlane.f32.xlu0 %v445
        %v447 = vpop.xlane.xlu0 %446
        %v448 = vmul.f32 %v447, %v442
        %v449 = vsub.f32 %v437, %v443
        %v450 = vmul.f32 %v443, %v443
        %v451 = vsub.f32 %v448, %v450
        %v452 = vadd.f32 %v451, 1e-05
        %v453 = vrsqrt.pop %v452
        %v454 = vmul.f32 %v449, %v453
        %v455 = vpack.c.bf16 %v454, %v454
        %v456 = vld [vmem:[%s1] sm:$0xf]
        %v457 = vld [vmem:[%s1 + $0x4] sm:$0xf]
        %v458 = vld [vmem:[%s1 + $0x8] sm:$0xf]
        %v459 = vld [vmem:[%s1 + $0xc] sm:$0xf]
        %v460 = vld [vmem:[%s2] sm:$0x1]
        %v462 = vlaneseq
        %v463 = vshrl.u32 %v462, 7
        %v464 = vsub.s32 0, %v463
        %v465 = vrot.slane %v460, %v464
        %v471 = vunpack.c.l.b16 %v456
        %v472 = vunpack.c.l.b16 %v457
        %v473 = vunpack.c.l.b16 %v458
        %v474 = vunpack.c.l.b16 %v459
        %v475 = vpack.c.b16 %v472, %v471
        %v476 = vpack.c.b16 %v474, %v473
        %v480 = vsel %vm438, %v455, 0
        %482 = vmatprep.subr.bf16.mxu0 0
        %483 = vmatpush1.bf16.msra.mxu0 0
        %484 = vmatprep.subr.bf16.mxu0 0
        %485 = vmatpush1.bf16.msra.mxu0 0
        %486 = vmatprep.subr.bf16.mxu0 0
        %487 = vmatpush1.bf16.msra.mxu0 0
        %488 = vmatprep.subr.bf16.mxu0 0
        %489 = vmatpush1.bf16.msra.mxu0 0
        %490 = vmatprep.subr.bf16.mxu0 0
        %491 = vmatpush1.bf16.msra.mxu0 0
        %492 = vmatprep.subr.bf16.mxu0 0
        %493 = vmatpush1.bf16.msra.mxu0 0
        %494 = vmatprep.subr.bf16.mxu0 0
        %495 = vmatpush1.bf16.msra.mxu0 %v476
        %496 = vmatprep.subr.bf16.mxu0 0
        %497 = vmatpush1.bf16.msra.mxu0 %v475
        %498 = vmatprep.subr.bf16.mxu0 0
        %499 = vmatpush2.bf16.msra.mxu0 0
        %500 = vmatprep.subr.bf16.mxu0 0
        %501 = vmatpush2.bf16.msra.mxu0 0
        %502 = vmatprep.subr.bf16.mxu0 0
        %503 = vmatpush2.bf16.msra.mxu0 0
        %504 = vmatprep.subr.bf16.mxu0 0
        %505 = vmatpush2.bf16.msra.mxu0 0
        %506 = vmatprep.subr.bf16.mxu0 0
        %507 = vmatpush2.bf16.msra.mxu0 0
        %508 = vmatprep.subr.bf16.mxu0 0
        %509 = vmatpush2.bf16.msra.mxu0 0
        %510 = vmatprep.subr.bf16.mxu0 0
        %511 = vmatpush2.bf16.msra.mxu0 0
        %512 = vmatprep.subr.bf16.mxu0 0
        %513 = vmatpush2.bf16.msra.mxu0 0
        %514 = vmatprep.mubr.bf16.mxu0 0
        %515 = vmatmul.mubr.bf16.gmra.mxu0 %v480
        %v516 = vpop.f32.mrf.mxu0
        %v517 = vadd.f32 %v465, %v516
        %v518 = vpop.f32.mrf.mxu0
        %v519 = vpop.f32.mrf.mxu0
        %v520 = vpop.f32.mrf.mxu0
        %521 = vdwg.mxu0
        %523 = vrot.lane.b32.xlu0 %v517, 120
        %v524 = vpop.permute.xlu0 %523
        %526 = vrot.lane.b32.xlu0 %v517, 112
        %v527 = vpop.permute.xlu0 %526
        %529 = vrot.lane.b32.xlu0 %v517, 104
        %v530 = vpop.permute.xlu0 %529
        %v532 = vpack.c.bf16 %v517, %v517
        %v533 = vpack.c.bf16 %v524, %v524
        %v534 = vpack.c.bf16 %v527, %v527
        %v535 = vpack.c.bf16 %v530, %v530
        %537 = vrot.lane.b32.xlu0 %v532, 96
        %v538 = vpop.permute.xlu0 %537
        %vm539 = vcmask 64512
        %v541 = vsel %vm539, %v532, 0
        %v544 = vsel %vm539, %v538, 0
        %546 = vmatprep.subr.bf16.mxu0 0
        %547 = vmatpush1.bf16.xpose.msra.mxu0 0
        %548 = vmatprep.subr.bf16.mxu0 0
        %549 = vmatpush1.bf16.xpose.msra.mxu0 0
        %550 = vmatprep.subr.bf16.mxu0 0
        %551 = vmatpush1.bf16.xpose.msra.mxu0 0
        %552 = vmatprep.subr.bf16.mxu0 0
        %553 = vmatpush1.bf16.xpose.msra.mxu0 0
        %554 = vmatprep.subr.bf16.mxu0 0
        %555 = vmatpush1.bf16.xpose.msra.mxu0 0
        %556 = vmatprep.subr.bf16.mxu0 0
        %557 = vmatpush1.bf16.xpose.msra.mxu0 0
        %558 = vmatprep.subr.bf16.mxu0 0
        %559 = vmatpush1.bf16.xpose.msra.mxu0 0
        %560 = vmatprep.subr.bf16.mxu0 0
        %561 = vmatpush1.bf16.xpose.msra.mxu0 %v544
        %562 = vmatprep.subr.bf16.mxu0 0
        %563 = vmatpush2.bf16.xpose.msra.mxu0 0
        %564 = vmatprep.subr.bf16.mxu0 0
        %565 = vmatpush2.bf16.xpose.msra.mxu0 0
        %566 = vmatprep.subr.bf16.mxu0 0
        %567 = vmatpush2.bf16.xpose.msra.mxu0 0
        %568 = vmatprep.subr.bf16.mxu0 0
        %569 = vmatpush2.bf16.xpose.msra.mxu0 0
        %570 = vmatprep.subr.bf16.mxu0 0
        %571 = vmatpush2.bf16.xpose.msra.mxu0 0
        %572 = vmatprep.subr.bf16.mxu0 0
        %573 = vmatpush2.bf16.xpose.msra.mxu0 0
        %574 = vmatprep.subr.bf16.mxu0 0
        %575 = vmatpush2.bf16.xpose.msra.mxu0 0
        %576 = vmatprep.subr.bf16.mxu0 0
        %577 = vmatpush2.bf16.xpose.msra.mxu0 0
        %578 = vmatprep.mubr.bf16.mxu0 0
        %579 = vmatmul.mubr.bf16.gmra.mxu0 %v541
        %v580 = vpop.f32.mrf.mxu0
        %v581 = vadd.f32 0.0, %v580
        %v582 = vpop.f32.mrf.mxu0
        %v583 = vpop.f32.mrf.mxu0
        %v584 = vpop.f32.mrf.mxu0
        %585 = vdwg.mxu0
        %587 = vrot.lane.b32.xlu0 %v533, 96
        %v588 = vpop.permute.xlu0 %587
        %v590 = vsel %vm539, %v533, 0
        %v593 = vsel %vm539, %v588, 0
        %595 = vmatprep.subr.bf16.mxu0 0
        %596 = vmatpush1.bf16.xpose.msra.mxu0 0
        %597 = vmatprep.subr.bf16.mxu0 0
        %598 = vmatpush1.bf16.xpose.msra.mxu0 0
        %599 = vmatprep.subr.bf16.mxu0 0
        %600 = vmatpush1.bf16.xpose.msra.mxu0 0
        %601 = vmatprep.subr.bf16.mxu0 0
        %602 = vmatpush1.bf16.xpose.msra.mxu0 0
        %603 = vmatprep.subr.bf16.mxu0 0
        %604 = vmatpush1.bf16.xpose.msra.mxu0 0
        %605 = vmatprep.subr.bf16.mxu0 0
        %606 = vmatpush1.bf16.xpose.msra.mxu0 0
        %607 = vmatprep.subr.bf16.mxu0 0
        %608 = vmatpush1.bf16.xpose.msra.mxu0 0
        %609 = vmatprep.subr.bf16.mxu0 0
        %610 = vmatpush1.bf16.xpose.msra.mxu0 %v593
        %611 = vmatprep.subr.bf16.mxu0 0
        %612 = vmatpush2.bf16.xpose.msra.mxu0 0
        %613 = vmatprep.subr.bf16.mxu0 0
        %614 = vmatpush2.bf16.xpose.msra.mxu0 0
        %615 = vmatprep.subr.bf16.mxu0 0
        %616 = vmatpush2.bf16.xpose.msra.mxu0 0
        %617 = vmatprep.subr.bf16.mxu0 0
        %618 = vmatpush2.bf16.xpose.msra.mxu0 0
        %619 = vmatprep.subr.bf16.mxu0 0
        %620 = vmatpush2.bf16.xpose.msra.mxu0 0
        %621 = vmatprep.subr.bf16.mxu0 0
        %622 = vmatpush2.bf16.xpose.msra.mxu0 0
        %623 = vmatprep.subr.bf16.mxu0 0
        %624 = vmatpush2.bf16.xpose.msra.mxu0 0
        %625 = vmatprep.subr.bf16.mxu0 0
        %626 = vmatpush2.bf16.xpose.msra.mxu0 0
        %627 = vmatprep.mubr.bf16.mxu0 0
        %628 = vmatmul.mubr.bf16.gmra.mxu0 %v590
        %v629 = vpop.f32.mrf.mxu0
        %v630 = vadd.f32 0.0, %v629
        %v631 = vpop.f32.mrf.mxu0
        %v632 = vpop.f32.mrf.mxu0
        %v633 = vpop.f32.mrf.mxu0
        %634 = vdwg.mxu0
        %636 = vrot.lane.b32.xlu0 %v534, 96
        %v637 = vpop.permute.xlu0 %636
        %v639 = vsel %vm539, %v534, 0
        %v642 = vsel %vm539, %v637, 0
        %644 = vmatprep.subr.bf16.mxu0 0
        %645 = vmatpush1.bf16.xpose.msra.mxu0 0
        %646 = vmatprep.subr.bf16.mxu0 0
        %647 = vmatpush1.bf16.xpose.msra.mxu0 0
        %648 = vmatprep.subr.bf16.mxu0 0
        %649 = vmatpush1.bf16.xpose.msra.mxu0 0
        %650 = vmatprep.subr.bf16.mxu0 0
        %651 = vmatpush1.bf16.xpose.msra.mxu0 0
        %652 = vmatprep.subr.bf16.mxu0 0
        %653 = vmatpush1.bf16.xpose.msra.mxu0 0
        %654 = vmatprep.subr.bf16.mxu0 0
        %655 = vmatpush1.bf16.xpose.msra.mxu0 0
        %656 = vmatprep.subr.bf16.mxu0 0
        %657 = vmatpush1.bf16.xpose.msra.mxu0 0
        %658 = vmatprep.subr.bf16.mxu0 0
        %659 = vmatpush1.bf16.xpose.msra.mxu0 %v642
        %660 = vmatprep.subr.bf16.mxu0 0
        %661 = vmatpush2.bf16.xpose.msra.mxu0 0
        %662 = vmatprep.subr.bf16.mxu0 0
        %663 = vmatpush2.bf16.xpose.msra.mxu0 0
        %664 = vmatprep.subr.bf16.mxu0 0
        %665 = vmatpush2.bf16.xpose.msra.mxu0 0
        %666 = vmatprep.subr.bf16.mxu0 0
        %667 = vmatpush2.bf16.xpose.msra.mxu0 0
        %668 = vmatprep.subr.bf16.mxu0 0
        %669 = vmatpush2.bf16.xpose.msra.mxu0 0
        %670 = vmatprep.subr.bf16.mxu0 0
        %671 = vmatpush2.bf16.xpose.msra.mxu0 0
        %672 = vmatprep.subr.bf16.mxu0 0
        %673 = vmatpush2.bf16.xpose.msra.mxu0 0
        %674 = vmatprep.subr.bf16.mxu0 0
        %675 = vmatpush2.bf16.xpose.msra.mxu0 0
        %676 = vmatprep.mubr.bf16.mxu0 0
        %677 = vmatmul.mubr.bf16.gmra.mxu0 %v639
        %v678 = vpop.f32.mrf.mxu0
        %v679 = vadd.f32 0.0, %v678
        %v680 = vpop.f32.mrf.mxu0
        %v681 = vpop.f32.mrf.mxu0
        %v682 = vpop.f32.mrf.mxu0
        %683 = vdwg.mxu0
        %685 = vrot.lane.b32.xlu0 %v535, 96
        %v686 = vpop.permute.xlu0 %685
        %v688 = vsel %vm539, %v535, 0
        %v691 = vsel %vm539, %v686, 0
        %693 = vmatprep.subr.bf16.mxu0 0
        %694 = vmatpush1.bf16.xpose.msra.mxu0 0
        %695 = vmatprep.subr.bf16.mxu0 0
        %696 = vmatpush1.bf16.xpose.msra.mxu0 0
        %697 = vmatprep.subr.bf16.mxu0 0
        %698 = vmatpush1.bf16.xpose.msra.mxu0 0
        %699 = vmatprep.subr.bf16.mxu0 0
        %700 = vmatpush1.bf16.xpose.msra.mxu0 0
        %701 = vmatprep.subr.bf16.mxu0 0
        %702 = vmatpush1.bf16.xpose.msra.mxu0 0
        %703 = vmatprep.subr.bf16.mxu0 0
        %704 = vmatpush1.bf16.xpose.msra.mxu0 0
        %705 = vmatprep.subr.bf16.mxu0 0
        %706 = vmatpush1.bf16.xpose.msra.mxu0 0
        %707 = vmatprep.subr.bf16.mxu0 0
        %708 = vmatpush1.bf16.xpose.msra.mxu0 %v691
        %709 = vmatprep.subr.bf16.mxu0 0
        %710 = vmatpush2.bf16.xpose.msra.mxu0 0
        %711 = vmatprep.subr.bf16.mxu0 0
        %712 = vmatpush2.bf16.xpose.msra.mxu0 0
        %713 = vmatprep.subr.bf16.mxu0 0
        %714 = vmatpush2.bf16.xpose.msra.mxu0 0
        %715 = vmatprep.subr.bf16.mxu0 0
        %716 = vmatpush2.bf16.xpose.msra.mxu0 0
        %717 = vmatprep.subr.bf16.mxu0 0
        %718 = vmatpush2.bf16.xpose.msra.mxu0 0
        %719 = vmatprep.subr.bf16.mxu0 0
        %720 = vmatpush2.bf16.xpose.msra.mxu0 0
        %721 = vmatprep.subr.bf16.mxu0 0
        %722 = vmatpush2.bf16.xpose.msra.mxu0 0
        %723 = vmatprep.subr.bf16.mxu0 0
        %724 = vmatpush2.bf16.xpose.msra.mxu0 0
        %725 = vmatprep.mubr.bf16.mxu0 0
        %726 = vmatmul.mubr.bf16.gmra.mxu0 %v688
        %v727 = vpop.f32.mrf.mxu0
        %v728 = vadd.f32 0.0, %v727
        %v729 = vpop.f32.mrf.mxu0
        %v730 = vpop.f32.mrf.mxu0
        %v731 = vpop.f32.mrf.mxu0
        %732 = vdwg.mxu0
        %v733 = vsel %vm539, %v581, -inf
        %734 = vmax.xlane.f32.xlu0 %v733
        %v735 = vpop.xlane.xlu0 %734
        %v736 = vsel %vm539, %v630, -inf
        %737 = vmax.xlane.f32.xlu0 %v736
        %v738 = vpop.xlane.xlu0 %737
        %v739 = vsel %vm539, %v679, -inf
        %740 = vmax.xlane.f32.xlu0 %v739
        %v741 = vpop.xlane.xlu0 %740
        %v742 = vsel %vm539, %v728, -inf
        %743 = vmax.xlane.f32.xlu0 %v742
        %v744 = vpop.xlane.xlu0 %743
        %v745 = vsub.f32 %v581, %v735
        %v746 = vsub.f32 %v630, %v738
        %v747 = vsub.f32 %v679, %v741
        %v748 = vsub.f32 %v728, %v744
        %v749 = vmul.f32 %v745, 1.442695
        %v750 = vpow.pop %v749
        %v751 = vmul.f32 %v746, 1.442695
        %v752 = vpow.pop %v751
        %v753 = vmul.f32 %v747, 1.442695
        %v754 = vpow.pop %v753
        %v755 = vmul.f32 %v748, 1.442695
        %v756 = vpow.pop %v755
        %v757 = vsel %vm539, %v750, 0.0
        %758 = vadd.xlane.f32.xlu0 %v757
        %v759 = vpop.xlane.xlu0 %758
        %v760 = vsel %vm539, %v752, 0.0
        %761 = vadd.xlane.f32.xlu0 %v760
        %v762 = vpop.xlane.xlu0 %761
        %v763 = vsel %vm539, %v754, 0.0
        %764 = vadd.xlane.f32.xlu0 %v763
        %v765 = vpop.xlane.xlu0 %764
        %v766 = vsel %vm539, %v756, 0.0
        %767 = vadd.xlane.f32.xlu0 %v766
        %v768 = vpop.xlane.xlu0 %767
        %v769 = vrcp.pop %v759
        %v770 = vrcp.pop %v762
        %v771 = vrcp.pop %v765
        %v772 = vrcp.pop %v768
        %v773 = vmul.f32 %v750, %v769
        %v774 = vmul.f32 %v752, %v770
        %v775 = vmul.f32 %v754, %v771
        %v776 = vmul.f32 %v756, %v772
        %v777 = vpack.c.bf16 %v773, %v773
        %v778 = vpack.c.bf16 %v774, %v774
        %v779 = vpack.c.bf16 %v775, %v775
        %v780 = vpack.c.bf16 %v776, %v776
        %781 = vrot.lane.b32.xlu0 %v532, 64
        %v782 = vpop.permute.xlu0 %781
        %v784 = vsel %vm539, %v777, 0
        %vm786 = vcmask 1043456
        %v788 = vsel %vm786, %v782, 0
        %790 = vmatprep.subr.bf16.mxu0 0
        %791 = vmatpush1.bf16.msra.mxu0 0
        %792 = vmatprep.subr.bf16.mxu0 0
        %793 = vmatpush1.bf16.msra.mxu0 0
        %794 = vmatprep.subr.bf16.mxu0 0
        %795 = vmatpush1.bf16.msra.mxu0 0
        %796 = vmatprep.subr.bf16.mxu0 0
        %797 = vmatpush1.bf16.msra.mxu0 0
        %798 = vmatprep.subr.bf16.mxu0 0
        %799 = vmatpush1.bf16.msra.mxu0 0
        %800 = vmatprep.subr.bf16.mxu0 0
        %801 = vmatpush1.bf16.msra.mxu0 0
        %802 = vmatprep.subr.bf16.mxu0 0
        %803 = vmatpush1.bf16.msra.mxu0 0
        %804 = vmatprep.subr.bf16.mxu0 0
        %805 = vmatpush1.bf16.msra.mxu0 %v788
        %806 = vmatprep.subr.bf16.mxu0 0
        %807 = vmatpush2.bf16.msra.mxu0 0
        %808 = vmatprep.subr.bf16.mxu0 0
        %809 = vmatpush2.bf16.msra.mxu0 0
        %810 = vmatprep.subr.bf16.mxu0 0
        %811 = vmatpush2.bf16.msra.mxu0 0
        %812 = vmatprep.subr.bf16.mxu0 0
        %813 = vmatpush2.bf16.msra.mxu0 0
        %814 = vmatprep.subr.bf16.mxu0 0
        %815 = vmatpush2.bf16.msra.mxu0 0
        %816 = vmatprep.subr.bf16.mxu0 0
        %817 = vmatpush2.bf16.msra.mxu0 0
        %818 = vmatprep.subr.bf16.mxu0 0
        %819 = vmatpush2.bf16.msra.mxu0 0
        %820 = vmatprep.subr.bf16.mxu0 0
        %821 = vmatpush2.bf16.msra.mxu0 0
        %822 = vmatprep.mubr.bf16.mxu0 0
        %823 = vmatmul.mubr.bf16.gmra.mxu0 %v784
        %v824 = vpop.f32.mrf.mxu0
        %v825 = vadd.f32 0.0, %v824
        %v826 = vpop.f32.mrf.mxu0
        %v827 = vpop.f32.mrf.mxu0
        %v828 = vpop.f32.mrf.mxu0
        %829 = vdwg.mxu0
        %830 = vrot.lane.b32.xlu0 %v533, 64
        %v831 = vpop.permute.xlu0 %830
        %v833 = vsel %vm539, %v778, 0
        %v836 = vsel %vm786, %v831, 0
        %838 = vmatprep.subr.bf16.mxu0 0
        %839 = vmatpush1.bf16.msra.mxu0 0
        %840 = vmatprep.subr.bf16.mxu0 0
        %841 = vmatpush1.bf16.msra.mxu0 0
        %842 = vmatprep.subr.bf16.mxu0 0
        %843 = vmatpush1.bf16.msra.mxu0 0
        %844 = vmatprep.subr.bf16.mxu0 0
        %845 = vmatpush1.bf16.msra.mxu0 0
        %846 = vmatprep.subr.bf16.mxu0 0
        %847 = vmatpush1.bf16.msra.mxu0 0
        %848 = vmatprep.subr.bf16.mxu0 0
        %849 = vmatpush1.bf16.msra.mxu0 0
        %850 = vmatprep.subr.bf16.mxu0 0
        %851 = vmatpush1.bf16.msra.mxu0 0
        %852 = vmatprep.subr.bf16.mxu0 0
        %853 = vmatpush1.bf16.msra.mxu0 %v836
        %854 = vmatprep.subr.bf16.mxu0 0
        %855 = vmatpush2.bf16.msra.mxu0 0
        %856 = vmatprep.subr.bf16.mxu0 0
        %857 = vmatpush2.bf16.msra.mxu0 0
        %858 = vmatprep.subr.bf16.mxu0 0
        %859 = vmatpush2.bf16.msra.mxu0 0
        %860 = vmatprep.subr.bf16.mxu0 0
        %861 = vmatpush2.bf16.msra.mxu0 0
        %862 = vmatprep.subr.bf16.mxu0 0
        %863 = vmatpush2.bf16.msra.mxu0 0
        %864 = vmatprep.subr.bf16.mxu0 0
        %865 = vmatpush2.bf16.msra.mxu0 0
        %866 = vmatprep.subr.bf16.mxu0 0
        %867 = vmatpush2.bf16.msra.mxu0 0
        %868 = vmatprep.subr.bf16.mxu0 0
        %869 = vmatpush2.bf16.msra.mxu0 0
        %870 = vmatprep.mubr.bf16.mxu0 0
        %871 = vmatmul.mubr.bf16.gmra.mxu0 %v833
        %v872 = vpop.f32.mrf.mxu0
        %v873 = vadd.f32 0.0, %v872
        %v874 = vpop.f32.mrf.mxu0
        %v875 = vpop.f32.mrf.mxu0
        %v876 = vpop.f32.mrf.mxu0
        %877 = vdwg.mxu0
        %878 = vrot.lane.b32.xlu0 %v534, 64
        %v879 = vpop.permute.xlu0 %878
        %v881 = vsel %vm539, %v779, 0
        %v884 = vsel %vm786, %v879, 0
        %886 = vmatprep.subr.bf16.mxu0 0
        %887 = vmatpush1.bf16.msra.mxu0 0
        %888 = vmatprep.subr.bf16.mxu0 0
        %889 = vmatpush1.bf16.msra.mxu0 0
        %890 = vmatprep.subr.bf16.mxu0 0
        %891 = vmatpush1.bf16.msra.mxu0 0
        %892 = vmatprep.subr.bf16.mxu0 0
        %893 = vmatpush1.bf16.msra.mxu0 0
        %894 = vmatprep.subr.bf16.mxu0 0
        %895 = vmatpush1.bf16.msra.mxu0 0
        %896 = vmatprep.subr.bf16.mxu0 0
        %897 = vmatpush1.bf16.msra.mxu0 0
        %898 = vmatprep.subr.bf16.mxu0 0
        %899 = vmatpush1.bf16.msra.mxu0 0
        %900 = vmatprep.subr.bf16.mxu0 0
        %901 = vmatpush1.bf16.msra.mxu0 %v884
        %902 = vmatprep.subr.bf16.mxu0 0
        %903 = vmatpush2.bf16.msra.mxu0 0
        %904 = vmatprep.subr.bf16.mxu0 0
        %905 = vmatpush2.bf16.msra.mxu0 0
        %906 = vmatprep.subr.bf16.mxu0 0
        %907 = vmatpush2.bf16.msra.mxu0 0
        %908 = vmatprep.subr.bf16.mxu0 0
        %909 = vmatpush2.bf16.msra.mxu0 0
        %910 = vmatprep.subr.bf16.mxu0 0
        %911 = vmatpush2.bf16.msra.mxu0 0
        %912 = vmatprep.subr.bf16.mxu0 0
        %913 = vmatpush2.bf16.msra.mxu0 0
        %914 = vmatprep.subr.bf16.mxu0 0
        %915 = vmatpush2.bf16.msra.mxu0 0
        %916 = vmatprep.subr.bf16.mxu0 0
        %917 = vmatpush2.bf16.msra.mxu0 0
        %918 = vmatprep.mubr.bf16.mxu0 0
        %919 = vmatmul.mubr.bf16.gmra.mxu0 %v881
        %v920 = vpop.f32.mrf.mxu0
        %v921 = vadd.f32 0.0, %v920
        %v922 = vpop.f32.mrf.mxu0
        %v923 = vpop.f32.mrf.mxu0
        %v924 = vpop.f32.mrf.mxu0
        %925 = vdwg.mxu0
        %926 = vrot.lane.b32.xlu0 %v535, 64
        %v927 = vpop.permute.xlu0 %926
        %v929 = vsel %vm539, %v780, 0
        %v932 = vsel %vm786, %v927, 0
        %934 = vmatprep.subr.bf16.mxu0 0
        %935 = vmatpush1.bf16.msra.mxu0 0
        %936 = vmatprep.subr.bf16.mxu0 0
        %937 = vmatpush1.bf16.msra.mxu0 0
        %938 = vmatprep.subr.bf16.mxu0 0
        %939 = vmatpush1.bf16.msra.mxu0 0
        %940 = vmatprep.subr.bf16.mxu0 0
        %941 = vmatpush1.bf16.msra.mxu0 0
        %942 = vmatprep.subr.bf16.mxu0 0
        %943 = vmatpush1.bf16.msra.mxu0 0
        %944 = vmatprep.subr.bf16.mxu0 0
        %945 = vmatpush1.bf16.msra.mxu0 0
        %946 = vmatprep.subr.bf16.mxu0 0
        %947 = vmatpush1.bf16.msra.mxu0 0
        %948 = vmatprep.subr.bf16.mxu0 0
        %949 = vmatpush1.bf16.msra.mxu0 %v932
        %950 = vmatprep.subr.bf16.mxu0 0
        %951 = vmatpush2.bf16.msra.mxu0 0
        %952 = vmatprep.subr.bf16.mxu0 0
        %953 = vmatpush2.bf16.msra.mxu0 0
        %954 = vmatprep.subr.bf16.mxu0 0
        %955 = vmatpush2.bf16.msra.mxu0 0
        %956 = vmatprep.subr.bf16.mxu0 0
        %957 = vmatpush2.bf16.msra.mxu0 0
        %958 = vmatprep.subr.bf16.mxu0 0
        %959 = vmatpush2.bf16.msra.mxu0 0
        %960 = vmatprep.subr.bf16.mxu0 0
        %961 = vmatpush2.bf16.msra.mxu0 0
        %962 = vmatprep.subr.bf16.mxu0 0
        %963 = vmatpush2.bf16.msra.mxu0 0
        %964 = vmatprep.subr.bf16.mxu0 0
        %965 = vmatpush2.bf16.msra.mxu0 0
        %966 = vmatprep.mubr.bf16.mxu0 0
        %967 = vmatmul.mubr.bf16.gmra.mxu0 %v929
        %v968 = vpop.f32.mrf.mxu0
        %v969 = vadd.f32 0.0, %v968
        %v970 = vpop.f32.mrf.mxu0
        %v971 = vpop.f32.mrf.mxu0
        %v972 = vpop.f32.mrf.mxu0
        %973 = vdwg.mxu0
        %975 = vrot.lane.b32.xlu0 %v873, 8
        %v976 = vpop.permute.xlu0 %975
        %979 = vrot.lane.b32.xlu0 %v921, 16
        %v980 = vpop.permute.xlu0 %979
        %983 = vrot.lane.b32.xlu0 %v969, 24
        %v984 = vpop.permute.xlu0 %983
        %v986 = vsel %vm539, %v825, %v976
        %vm987 = vcmask 130048
        %v988 = vsel %vm987, %v986, %v980
        %vm989 = vcmask 195584
        %v990 = vsel %vm989, %v988, %v984
        %v991 = vpack.c.bf16 %v990, %v990
        %v992 = vld [vmem:[%s3] sm:$0xf]
        %v993 = vld [vmem:[%s3 + $0x4] sm:$0xf]
        %v994 = vld [vmem:[%s3 + $0x8] sm:$0xf]
        %v995 = vld [vmem:[%s3 + $0xc] sm:$0xf]
        %v996 = vld [vmem:[%s4] sm:$0x1]
        %v998 = vlaneseq
        %v999 = vshrl.u32 %v998, 7
        %v1000 = vsub.s32 0, %v999
        %v1001 = vrot.slane %v996, %v1000
        %v1007 = vunpack.c.l.b16 %v992
        %v1008 = vunpack.c.l.b16 %v993
        %v1009 = vunpack.c.l.b16 %v994
        %v1010 = vunpack.c.l.b16 %v995
        %v1011 = vpack.c.b16 %v1008, %v1007
        %v1012 = vpack.c.b16 %v1010, %v1009
        %v1016 = vsel %vm438, %v991, 0
        %1018 = vmatprep.subr.bf16.mxu0 0
        %1019 = vmatpush1.bf16.msra.mxu0 0
        %1020 = vmatprep.subr.bf16.mxu0 0
        %1021 = vmatpush1.bf16.msra.mxu0 0
        %1022 = vmatprep.subr.bf16.mxu0 0
        %1023 = vmatpush1.bf16.msra.mxu0 0
        %1024 = vmatprep.subr.bf16.mxu0 0
        %1025 = vmatpush1.bf16.msra.mxu0 0
        %1026 = vmatprep.subr.bf16.mxu0 0
        %1027 = vmatpush1.bf16.msra.mxu0 0
        %1028 = vmatprep.subr.bf16.mxu0 0
        %1029 = vmatpush1.bf16.msra.mxu0 0
        %1030 = vmatprep.subr.bf16.mxu0 0
        %1031 = vmatpush1.bf16.msra.mxu0 %v1012
        %1032 = vmatprep.subr.bf16.mxu0 0
        %1033 = vmatpush1.bf16.msra.mxu0 %v1011
        %1034 = vmatprep.subr.bf16.mxu0 0
        %1035 = vmatpush2.bf16.msra.mxu0 0
        %1036 = vmatprep.subr.bf16.mxu0 0
        %1037 = vmatpush2.bf16.msra.mxu0 0
        %1038 = vmatprep.subr.bf16.mxu0 0
        %1039 = vmatpush2.bf16.msra.mxu0 0
        %1040 = vmatprep.subr.bf16.mxu0 0
        %1041 = vmatpush2.bf16.msra.mxu0 0
        %1042 = vmatprep.subr.bf16.mxu0 0
        %1043 = vmatpush2.bf16.msra.mxu0 0
        %1044 = vmatprep.subr.bf16.mxu0 0
        %1045 = vmatpush2.bf16.msra.mxu0 0
        %1046 = vmatprep.subr.bf16.mxu0 0
        %1047 = vmatpush2.bf16.msra.mxu0 0
        %1048 = vmatprep.subr.bf16.mxu0 0
        %1049 = vmatpush2.bf16.msra.mxu0 0
        %1050 = vmatprep.mubr.bf16.mxu0 0
        %1051 = vmatmul.mubr.bf16.gmra.mxu0 %v1016
        %v1052 = vpop.f32.mrf.mxu0
        %v1053 = vadd.f32 %v1001, %v1052
        %v1054 = vpop.f32.mrf.mxu0
        %v1055 = vpop.f32.mrf.mxu0
        %v1056 = vpop.f32.mrf.mxu0
        %1057 = vdwg.mxu0
        %v1058 = vadd.f32 %v437, %v1053
        %v1059 = vld [vmem:[%s7] sm:$0x1]
        %v1060 = vld [vmem:[%s8] sm:$0x1]
        %v1061 = vpack.c.bf16 %v1058, %v1058
        %v1062 = vld [vmem:[%s5] sm:$0xf]
        %v1063 = vld [vmem:[%s5 + $0x4] sm:$0xf]
        %v1064 = vld [vmem:[%s5 + $0x8] sm:$0xf]
        %v1065 = vld [vmem:[%s5 + $0xc] sm:$0xf]
        %v1066 = vld [vmem:[%s6] sm:$0x1]
        %v1068 = vlaneseq
        %v1069 = vshrl.u32 %v1068, 7
        %v1070 = vsub.s32 0, %v1069
        %v1071 = vrot.slane %v1066, %v1070
        %v1077 = vunpack.c.l.b16 %v1062
        %v1078 = vunpack.c.l.b16 %v1063
        %v1079 = vunpack.c.l.b16 %v1064
        %v1080 = vunpack.c.l.b16 %v1065
        %v1081 = vpack.c.b16 %v1078, %v1077
        %v1082 = vpack.c.b16 %v1080, %v1079
        %v1086 = vsel %vm438, %v1061, 0
        %1088 = vmatprep.subr.bf16.mxu0 0
        %1089 = vmatpush1.bf16.msra.mxu0 0
        %1090 = vmatprep.subr.bf16.mxu0 0
        %1091 = vmatpush1.bf16.msra.mxu0 0
        %1092 = vmatprep.subr.bf16.mxu0 0
        %1093 = vmatpush1.bf16.msra.mxu0 0
        %1094 = vmatprep.subr.bf16.mxu0 0
        %1095 = vmatpush1.bf16.msra.mxu0 0
        %1096 = vmatprep.subr.bf16.mxu0 0
        %1097 = vmatpush1.bf16.msra.mxu0 0
        %1098 = vmatprep.subr.bf16.mxu0 0
        %1099 = vmatpush1.bf16.msra.mxu0 0
        %1100 = vmatprep.subr.bf16.mxu0 0
        %1101 = vmatpush1.bf16.msra.mxu0 %v1082
        %1102 = vmatprep.subr.bf16.mxu0 0
        %1103 = vmatpush1.bf16.msra.mxu0 %v1081
        %1104 = vmatprep.subr.bf16.mxu0 0
        %1105 = vmatpush2.bf16.msra.mxu0 0
        %1106 = vmatprep.subr.bf16.mxu0 0
        %1107 = vmatpush2.bf16.msra.mxu0 0
        %1108 = vmatprep.subr.bf16.mxu0 0
        %1109 = vmatpush2.bf16.msra.mxu0 0
        %1110 = vmatprep.subr.bf16.mxu0 0
        %1111 = vmatpush2.bf16.msra.mxu0 0
        %1112 = vmatprep.subr.bf16.mxu0 0
        %1113 = vmatpush2.bf16.msra.mxu0 0
        %1114 = vmatprep.subr.bf16.mxu0 0
        %1115 = vmatpush2.bf16.msra.mxu0 0
        %1116 = vmatprep.subr.bf16.mxu0 0
        %1117 = vmatpush2.bf16.msra.mxu0 0
        %1118 = vmatprep.subr.bf16.mxu0 0
        %1119 = vmatpush2.bf16.msra.mxu0 0
        %1120 = vmatprep.mubr.bf16.mxu0 0
        %1121 = vmatmul.mubr.bf16.gmra.mxu0 %v1086
        %v1122 = vpop.f32.mrf.mxu0
        %v1123 = vadd.f32 %v1071, %v1122
        %v1124 = vpop.f32.mrf.mxu0
        %v1125 = vpop.f32.mrf.mxu0
        %v1126 = vpop.f32.mrf.mxu0
        %1127 = vdwg.mxu0
        %v1129 = vlaneseq
        %v1130 = vshrl.u32 %v1129, 7
        %v1131 = vsub.s32 0, %v1130
        %v1132 = vrot.slane %v1059, %v1131
        %v1134 = vmul.f32 %v1132, %v1123
        %v1135 = vand.u32 2147483647, %v1134
        %vm1136 = vcmp.le.f32.partialorder %v1135, 0.7853982
        %vm1137 = vcmp.lt.s32.totalorder %v1134, 0
        %v1138 = vand.u32 %v1134, 2139095040
        %v1139 = vshrl.u32 %v1138, 23
        %v1140 = vsub.s32 %v1139, 127
        %v1141 = vand.u32 2147483647, %v1134
        %v1142 = vand.u32 %v1141, 8388607
        %v1143 = vor.u32 %v1142, 8388608
        %v1144 = vsub.s32 0, %v1143
        %v1145 = vadd.s32 %v1140, 1
        %vm1146 = vcmp.gt.s32.totalorder %v1145, 0
        %v1147 = vsel %vm1146, %v1145, 0
        %v1148 = vshrl.u32 %v1147, 5
        %v1149 = vand.u32 %v1147, 31
        %v1150 = vsub.s32 32, %v1149
        %v1151 = vshrl.u32 683565275, %v1150
        %v1152 = vshll.u32 683565275, %v1149
        %v1153 = vshrl.u32 2475754826, %v1150
        %v1154 = vor.u32 %v1152, %v1153
        %v1155 = vshll.u32 2475754826, %v1149
        %v1156 = vshrl.u32 2131351028, %v1150
        %v1157 = vor.u32 %v1155, %v1156
        %v1158 = vshll.u32 2131351028, %v1149
        %v1159 = vshrl.u32 2102212464, %v1150
        %v1160 = vor.u32 %v1158, %v1159
        %v1161 = vshll.u32 2102212464, %v1149
        %v1162 = vshrl.u32 920167782, %v1150
        %v1163 = vor.u32 %v1161, %v1162
        %v1164 = vshll.u32 920167782, %v1149
        %v1165 = vshrl.u32 1326507024, %v1150
        %v1166 = vor.u32 %v1164, %v1165
        %vm1167 = vcmp.lt.s32.totalorder %v1148, 1
        %vm1168 = vcmp.lt.s32.totalorder %v1148, 2
        %vm1169 = vcmp.lt.s32.totalorder %v1148, 3
        %vm1170 = vcmp.lt.s32.totalorder %v1148, 4
        %v1171 = vsel %vm1167, %v1151, %v1154
        %v1172 = vsel %vm1170, %v1160, 2102212464
        %v1173 = vsel %vm1169, %v1157, %v1172
        %v1174 = vsel %vm1168, %v1171, %v1173
        %v1175 = vsel %vm1167, %v1154, %v1157
        %v1176 = vsel %vm1170, %v1163, 920167782
        %v1177 = vsel %vm1169, %v1160, %v1176
        %v1178 = vsel %vm1168, %v1175, %v1177
        %v1179 = vsel %vm1167, %v1157, %v1160
        %v1180 = vsel %vm1170, %v1166, 1326507024
        %v1181 = vsel %vm1169, %v1163, %v1180
        %v1182 = vsel %vm1168, %v1179, %v1181
        %v1183 = vshll.u32 %v1143, 8
        %v1184 = vmul.u32.u64.compose %v1183, %v1182
        %v1185 = vextract.low.u32 %v1184
        %v1186 = vextract.high.u32 %v1184
        %v1187 = vmul.u32.u64.compose %v1183, %v1178
        %v1188 = vextract.low.u32 %v1187
        %v1189 = vextract.high.u32 %v1187
        %v1190 = vmul.u32 %v1183, %v1174
        %v1191 = vadd.s32 %v1186, %v1188
        %vm1192 = vc.u32 %v1186, %v1188
        %v1193 = vadd.s32 %v1189, 1
        %v1194 = vsel %vm1192, %v1193, %v1189
        %v1195 = vadd.s32 %v1190, %v1194
        %v1196 = vadd.s32 %v1195, 536870912
        %v1197 = vshrl.u32 %v1196, 30
        %v1198 = vshll.u32 %v1197, 30
        %v1199 = vsub.s32 %v1195, %v1198
        %vm1200 = vcmp.lt.s32.totalorder %v1199, 0
        %v1201 = vsub.s32 0, %v1199
        %v1202 = vsel %vm1200, %v1201, %v1199
        %v1203 = vclz %v1202
        %v1204 = vsub.s32 %v1203, 2
        %vm1205 = vcmp.gt.s32.totalorder 0, %v1204
        %v1206 = vsel %vm1205, 0, %v1204
        %v1207 = vsub.s32 32, %v1206
        %v1208 = vshll.u32 %v1199, %v1206
        %v1209 = vshrl.u32 %v1191, %v1207
        %v1210 = vor.u32 %v1208, %v1209
        %v1211 = vsub.s32 4294967266, %v1206
        %v1212 = vadd.s32 %v1211, 127
        %v1213 = vshll.u32 %v1212, 23
        %v1214 = vor.u32 4788187, %v1213
        %v1215 = vand.u32 2147483647, %v1214
        %v1217 = vcvt.s32.f32 %v1210
        %v1218 = vmul.f32 %v1217, %v1215
        %v1219 = vxor.u32 %v1218, 2147483648
        %v1220 = vsel %vm1137, %v1219, %v1218
        %v1221 = vsub.s32 4, %v1197
        %v1222 = vsel %vm1137, %v1221, %v1197
        %v1223 = vsel %vm1136, %v1134, %v1220
        %v1224 = vsel %vm1136, 0, %v1222
        %v1225 = vcosq.f32.pop %v1223
        %v1226 = vsinq.f32.pop %v1223
        %vm1227 = vweird.f32 %v1134
        %v1228 = vadd.s32 %v1224, 3
        %v1229 = vand.u32 %v1228, 3
        %vm1230 = vcmp.lt.s32.totalorder %v1229, 2
        %vm1231 = vcmp.eq.s32.totalorder %v1229, 0
        %v1232 = vxor.u32 %v1226, 2147483648
        %v1233 = vsel %vm1231, %v1225, %v1232
        %vm1234 = vcmp.eq.s32.totalorder %v1229, 2
        %v1235 = vxor.u32 %v1225, 2147483648
        %v1236 = vsel %vm1234, %v1235, %v1226
        %v1237 = vsel %vm1230, %v1233, %v1236
        %v1238 = vsel %vm1227, nan, %v1237
        %v1240 = vlaneseq
        %v1241 = vshrl.u32 %v1240, 7
        %v1242 = vsub.s32 0, %v1241
        %v1243 = vrot.slane %v1060, %v1242
        %v1245 = vmul.f32 %v1243, %v1238
        %v1246 = vmul.f32 %v1245, %v1238
        %v1247 = vadd.f32 %v1123, %v1246
        %v1248 = vpack.c.bf16 %v1247, %v1247
        %v1249 = vld [vmem:[%s9] sm:$0xf]
        %v1250 = vld [vmem:[%s9 + $0x4] sm:$0xf]
        %v1251 = vld [vmem:[%s9 + $0x8] sm:$0xf]
        %v1252 = vld [vmem:[%s9 + $0xc] sm:$0xf]
        %v1253 = vld [vmem:[%s9 + $0x10] sm:$0xf]
        %v1254 = vld [vmem:[%s9 + $0x14] sm:$0xf]
        %v1255 = vld [vmem:[%s9 + $0x18] sm:$0xf]
        %v1256 = vld [vmem:[%s9 + $0x1c] sm:$0xf]
        %v1257 = vld [vmem:[%s9 + $0x20] sm:$0xf]
        %v1258 = vld [vmem:[%s9 + $0x24] sm:$0xf]
        %v1259 = vld [vmem:[%s9 + $0x28] sm:$0xf]
        %v1260 = vld [vmem:[%s9 + $0x2c] sm:$0xf]
        %v1261 = vld [vmem:[%s9 + $0x30] sm:$0xf]
        %v1262 = vld [vmem:[%s9 + $0x34] sm:$0xf]
        %v1263 = vld [vmem:[%s9 + $0x38] sm:$0xf]
        %v1264 = vld [vmem:[%s9 + $0x3c] sm:$0xf]
        %v1265 = vld [vmem:[%s10] sm:$0x1]
        %v1267 = vlaneseq
        %v1268 = vshrl.u32 %v1267, 7
        %v1269 = vsub.s32 0, %v1268
        %v1270 = vrot.slane %v1265, %v1269
        %v1288 = vunpack.c.l.b16 %v1249
        %v1289 = vunpack.c.l.b16 %v1250
        %v1290 = vunpack.c.l.b16 %v1251
        %v1291 = vunpack.c.l.b16 %v1252
        %v1292 = vunpack.c.l.b16 %v1253
        %v1293 = vunpack.c.l.b16 %v1254
        %v1294 = vunpack.c.l.b16 %v1255
        %v1295 = vunpack.c.l.b16 %v1256
        %v1296 = vunpack.c.l.b16 %v1257
        %v1297 = vunpack.c.l.b16 %v1258
        %v1298 = vunpack.c.l.b16 %v1259
        %v1299 = vunpack.c.l.b16 %v1260
        %v1300 = vunpack.c.l.b16 %v1261
        %v1301 = vunpack.c.l.b16 %v1262
        %v1302 = vunpack.c.l.b16 %v1263
        %v1303 = vunpack.c.l.b16 %v1264
        %v1304 = vpack.c.b16 %v1289, %v1288
        %v1305 = vpack.c.b16 %v1291, %v1290
        %v1306 = vpack.c.b16 %v1293, %v1292
        %v1307 = vpack.c.b16 %v1295, %v1294
        %v1308 = vpack.c.b16 %v1297, %v1296
        %v1309 = vpack.c.b16 %v1299, %v1298
        %v1310 = vpack.c.b16 %v1301, %v1300
        %v1311 = vpack.c.b16 %v1303, %v1302
        %1320 = vmatprep.subr.bf16.mxu0 0
        %1321 = vmatpush1.bf16.msra.mxu0 %v1311
        %1322 = vmatprep.subr.bf16.mxu0 0
        %1323 = vmatpush1.bf16.msra.mxu0 %v1310
        %1324 = vmatprep.subr.bf16.mxu0 0
        %1325 = vmatpush1.bf16.msra.mxu0 %v1309
        %1326 = vmatprep.subr.bf16.mxu0 0
        %1327 = vmatpush1.bf16.msra.mxu0 %v1308
        %1328 = vmatprep.subr.bf16.mxu0 0
        %1329 = vmatpush1.bf16.msra.mxu0 %v1307
        %1330 = vmatprep.subr.bf16.mxu0 0
        %1331 = vmatpush1.bf16.msra.mxu0 %v1306
        %1332 = vmatprep.subr.bf16.mxu0 0
        %1333 = vmatpush1.bf16.msra.mxu0 %v1305
        %1334 = vmatprep.subr.bf16.mxu0 0
        %1335 = vmatpush1.bf16.msra.mxu0 %v1304
        %1336 = vmatprep.subr.bf16.mxu0 0
        %1337 = vmatpush2.bf16.msra.mxu0 0
        %1338 = vmatprep.subr.bf16.mxu0 0
        %1339 = vmatpush2.bf16.msra.mxu0 0
        %1340 = vmatprep.subr.bf16.mxu0 0
        %1341 = vmatpush2.bf16.msra.mxu0 0
        %1342 = vmatprep.subr.bf16.mxu0 0
        %1343 = vmatpush2.bf16.msra.mxu0 0
        %1344 = vmatprep.subr.bf16.mxu0 0
        %1345 = vmatpush2.bf16.msra.mxu0 0
        %1346 = vmatprep.subr.bf16.mxu0 0
        %1347 = vmatpush2.bf16.msra.mxu0 0
        %1348 = vmatprep.subr.bf16.mxu0 0
        %1349 = vmatpush2.bf16.msra.mxu0 0
        %1350 = vmatprep.subr.bf16.mxu0 0
        %1351 = vmatpush2.bf16.msra.mxu0 0
        %1352 = vmatprep.mubr.bf16.mxu0 0
        %1353 = vmatmul.mubr.bf16.gmra.mxu0 %v1248
        %v1354 = vpop.f32.mrf.mxu0
        %v1355 = vadd.f32 %v1270, %v1354
        %v1356 = vpop.f32.mrf.mxu0
        %v1357 = vpop.f32.mrf.mxu0
        %v1358 = vpop.f32.mrf.mxu0
        %1359 = vdwg.mxu0
        %v1360 = vadd.f32 %v1058, %v1355
        %v1361 = vsel %vm438, %v1360, 0.0
        %1362 = vadd.xlane.f32.xlu0 %v1361
        %v1363 = vpop.xlane.xlu0 %1362
        %v1364 = vmul.f32 %v1363, %v442
        %v1365 = vmul.f32 %v1360, %v1360
        %v1366 = vsel %vm438, %v1365, 0.0
        %1367 = vadd.xlane.f32.xlu0 %v1366
        %v1368 = vpop.xlane.xlu0 %1367
        %v1369 = vmul.f32 %v1368, %v442
        %v1370 = vsub.f32 %v1360, %v1364
        %v1371 = vmul.f32 %v1364, %v1364
        %v1372 = vsub.f32 %v1369, %v1371
        %v1373 = vadd.f32 %v1372, 1e-05
        %v1374 = vrsqrt.pop %v1373
        %v1375 = vmul.f32 %v1370, %v1374
        %v1376 = vld [vmem:[%s11] sm:$0x1]
        %v1378 = vlaneseq
        %v1379 = vshrl.u32 %v1378, 7
        %v1380 = vsub.s32 0, %v1379
        %v1381 = vrot.slane %v1376, %v1380
        %v1383 = vmul.f32 %v1375, %v1381
        %v1384 = vld [vmem:[%s12] sm:$0x1]
        %v1386 = vlaneseq
        %v1387 = vshrl.u32 %v1386, 7
        %v1388 = vsub.s32 0, %v1387
        %v1389 = vrot.slane %v1384, %v1388
        %v1391 = vadd.f32 %v1383, %v1389
        %1392 = vst.msk [vmem:[%s431] sm:$0xff] %vm438, %v1391
        %s1393 = sand.u32 %s313, 1
        %s1394 = scalar_lea.sflag [#allocation3], %s1393
        %s1395 = sand.u32 %s313, 1
        %s1396 = smul.addr %s1395, 8
        %s1397 = scalar_lea.vmem [#allocation2], %s1396
        // Predicated region
        $region73: #{tpu_custom_call.1} parent=71 // pred_check
          %p1398 = pneg %p323
        $region74: #{tpu_custom_call.1} parent=71 // pred_check_branch
          %1400 = sbr.rel (%p1398) target = $region76
        $region75: #{tpu_custom_call.1} parent=71 // pred_region
          %s1402 = ssub.s32 128, 128
          %1403 = vsyncadd %s1394, %s1402
          %s1404 = smul.addr %s27, 128
          %s1405 = scalar_lea.hbm %s13, %s1404
          %s1407 = sshll.u32 %s1397, 4
          %s1408 = int_to_ptr.vmem [resolvable:$true] %s1407
          %1410 = dma.vmem_to_hbm [thread:$0]  %s1408, 128, %s1405, %s1394
        $region76: #{tpu_custom_call.1} parent=71 // pred_fallthru
          _
      $region72: #{tpu_custom_call.1} parent=5 // pred_fallthru
        _
      %p1411 = scmp.le.s32.totalorder 2, %s22
      // Predicated region
      $region77: #{tpu_custom_call.1} parent=5 // pred_check
        %p1412 = pneg %p1411
      $region78: #{tpu_custom_call.1} parent=5 // pred_check_branch
        %1414 = sbr.rel (%p1412) target = $region80
      $region79: #{tpu_custom_call.1} parent=5 // pred_region
        %s1415 = ssub.s32 %s22, 2
        // Predicated region
        $region81: #{tpu_custom_call.1} parent=79 // pred_check
          %p1416 = pneg %p329
        $region82: #{tpu_custom_call.1} parent=79 // pred_check_branch
          %1418 = sbr.rel (%p1416) target = $region84
        $region83: #{tpu_custom_call.1} parent=79 // pred_region
          %s1419 = sand.u32 %s314, 1
          %s1420 = scalar_lea.sflag [#allocation3], %s1419
          %s1421 = sand.u32 %s314, 1
          %s1422 = smul.addr %s1421, 8
          %s1423 = scalar_lea.vmem [#allocation2], %s1422
          %1424 = dma.done %s1420, 128
        $region84: #{tpu_custom_call.1} parent=79 // pred_fallthru
          _
      $region80: #{tpu_custom_call.1} parent=5 // pred_fallthru
        _
    $region6: #{tpu_custom_call.1} parent=1 // loop_footer
      %s26 = sadd.s32 1, %s22
    $region7: #{tpu_custom_call.1} parent=1 // loop_footer_branch
      %21 = sbr.rel target = $region3
    $region8: #{tpu_custom_call.1} parent=1 // loop_exit
      _
    %1425 = vsyncpa [#allocation3], 1
    %s1426 = scalar_lea.sflag [#allocation3], 1
    %1427 = vsyncpa %s1426, 1

</llo_original>
